<compile_context>
chip_gen: v6e
topology: v6e:2x2x1
jax: 0.10.0
libtpu: 0.0.40
codegen_flags: <defaults>
</compile_context>

<pallas_src>
import jax
import jax.numpy as jnp
from jax.experimental import pallas as pl
from jax.experimental.pallas import tpu as pltpu

D_IN = 1320       # module input features
D_HID = 150       # module hidden features
D_HID_PAD = 256   # hidden dim zero-padded to a lane multiple (128)
D_OUT = 1


def _round_up(x, m):
    return (x + m - 1) // m * m


def ffnn_mention_kernel(x_ref, w0_ref, b0_ref, w1_ref, b1_ref, w2_ref, b2_ref,
                        o_ref):
    # Layer 0: (tile_m, 1320) @ (1320, 256) on the MXU; bf16 operands, f32 acc.
    x = x_ref[...].astype(jnp.bfloat16)
    h0 = jnp.dot(x, w0_ref[...], preferred_element_type=jnp.float32) + b0_ref[...]
    h0 = jnp.maximum(h0, 0.0)
    # dropout (eval mode) == identity

    # Layer 1: (tile_m, 256) @ (256, 256) on the MXU; bf16 operands, f32 acc.
    h1 = jnp.dot(h0.astype(jnp.bfloat16), w1_ref[...],
                 preferred_element_type=jnp.float32) + b1_ref[...]
    h1 = jnp.maximum(h1, 0.0)
    # dropout (eval mode) == identity

    # Layer 2 (256 -> 1): an N=1 matmul would use 1 of 256 MXU columns, so do
    # it on the VPU/XLU instead: broadcast-multiply by the weight row and
    # reduce over lanes.  Padded hidden columns of h1 are exactly zero.
    logits = jnp.sum(h1 * w2_ref[...], axis=-1, keepdims=True) + b2_ref[...]
    o_ref[...] = jnp.maximum(logits, 0.0).astype(o_ref.dtype)


def prepare_params(params):
    """One-time weight prep: pad hidden dim 150->256 with zeros, cast the
    matmul weights to bf16 (biases stay f32), and lay w2 out as a (1, 256) row
    for the VPU reduction."""
    w0, b0, w1, b1, w2, b2 = params
    pad_h = D_HID_PAD - D_HID
    w0p = jnp.pad(w0, ((0, 0), (0, pad_h))).astype(jnp.bfloat16)       # (1320, 256)
    b0p = jnp.pad(b0, ((0, 0), (0, pad_h))).astype(jnp.float32)        # (1, 256)
    w1p = jnp.pad(w1, ((0, pad_h), (0, pad_h))).astype(jnp.bfloat16)   # (256, 256)
    b1p = jnp.pad(b1, ((0, 0), (0, pad_h))).astype(jnp.float32)        # (1, 256)
    w2p = jnp.pad(w2.T, ((0, 0), (0, pad_h))).astype(jnp.float32)      # (1, 256)
    b2p = b2.astype(jnp.float32)                                       # (1, 1)
    return (w0p, b0p, w1p, b1p, w2p, b2p)


def ffnn_mention(x, prepared_params, *, tile_m=512):
    """x: (N, 1320) f32 (or bf16) -> (N, 1) f32."""
    w0, b0, w1, b1, w2, b2 = prepared_params
    N, d_in = x.shape
    assert d_in == D_IN

    # Clamp the batch tile for tiny inputs, keep it a multiple of 8, then pad
    # the batch up to a tile multiple (the padded rows are sliced off below).
    tile_m = _round_up(max(8, min(tile_m, _round_up(N, 8))), 8)
    n_pad = _round_up(N, tile_m)
    if n_pad != N:
        x = jnp.pad(x, ((0, n_pad - N), (0, 0)))
    grid = (n_pad // tile_m,)

    # Weights/biases are small (<1 MiB total in bf16) -> whole-array blocks
    # with a constant index_map (re-used across every grid step).
    def full(shape):
        return pl.BlockSpec(shape, lambda i: (0,) * len(shape))

    flops = 2 * n_pad * (D_IN * D_HID_PAD + D_HID_PAD * D_HID_PAD + D_HID_PAD)
    bytes_accessed = (
        int(x.size) * x.dtype.itemsize
        + sum(int(p.size) * p.dtype.itemsize for p in prepared_params)
        + n_pad * D_OUT * 4)

    out = pl.pallas_call(
        ffnn_mention_kernel,
        out_shape=jax.ShapeDtypeStruct((n_pad, D_OUT), jnp.float32),
        grid_spec=pltpu.PrefetchScalarGridSpec(
            num_scalar_prefetch=0,
            grid=grid,
            in_specs=[
                pl.BlockSpec((tile_m, D_IN), lambda i: (i, 0)),  # x tile
                full((D_IN, D_HID_PAD)),                         # w0 (bf16)
                full((1, D_HID_PAD)),                            # b0
                full((D_HID_PAD, D_HID_PAD)),                    # w1 (bf16)
                full((1, D_HID_PAD)),                            # b1
                full((1, D_HID_PAD)),                            # w2 row (f32)
                full((1, 1)),                                    # b2
            ],
            out_specs=pl.BlockSpec((tile_m, D_OUT), lambda i: (i, 0)),
        ),
        compiler_params=pltpu.CompilerParams(
            dimension_semantics=("parallel",)),
        cost_estimate=pl.CostEstimate(
            flops=flops, transcendentals=0, bytes_accessed=bytes_accessed),
    )(x, w0, b0, w1, b1, w2, b2)
    return out[:N]


def init_params(key):
    """Deterministic init mimicking nn.Linear default (U[-1/sqrt(fan_in), ..])."""
    ks = jax.random.split(key, 6)

    def linear(kw, kb, fan_in, fan_out):
        bound = 1.0 / jnp.sqrt(fan_in)
        w = jax.random.uniform(kw, (fan_in, fan_out), jnp.float32, -bound, bound)
        b = jax.random.uniform(kb, (1, fan_out), jnp.float32, -bound, bound)
        return w, b

    w0, b0 = linear(ks[0], ks[1], D_IN, D_HID)
    w1, b1 = linear(ks[2], ks[3], D_HID, D_HID)
    w2, b2 = linear(ks[4], ks[5], D_HID, D_OUT)
    return (w0, b0, w1, b1, w2, b2)


def ffnn_mention_ref(x, prepared_params):
    """Reference using the same bf16-quantized operands (f32 math), so the
    only difference vs. the kernel is f32 accumulation order."""
    w0, b0, w1, b1, w2, b2 = prepared_params
    f32 = lambda a: a.astype(jnp.float32)
    q = lambda a: a.astype(jnp.bfloat16).astype(jnp.float32)
    h = jnp.maximum(q(x) @ f32(w0) + b0, 0.0)
    h = jnp.maximum(q(h) @ f32(w1) + b1, 0.0)
    return jnp.maximum(jnp.sum(h * w2, axis=-1, keepdims=True) + b2, 0.0)


if __name__ == "__main__":
    key = jax.random.PRNGKey(0)
    k_param, k_x = jax.random.split(key)

    params = prepare_params(init_params(k_param))

    # Small demo batch of candidate mentions; not a multiple of tile_m, so the
    # wrapper's padding path and a 2-step grid (tile_m=512) are exercised.
    N = 600
    x = jax.random.normal(k_x, (N, D_IN), dtype=jnp.float32)

    out = ffnn_mention(x, params)
    out = jax.block_until_ready(out)

    ref = ffnn_mention_ref(x, params)
    assert out.shape == (N, D_OUT), out.shape
    assert jnp.allclose(out, ref, atol=1e-3, rtol=1e-3), "mismatch vs reference"

    print("KERNEL_OK")
</pallas_src>

<mosaic_0001>
module attributes {stable_mosaic.version = 11 : i64} {
  func.func @ffnn_mention_kernel(%arg0: i32, %arg1: memref<512x1320xf32, #tpu.memory_space<vmem>>, %arg2: memref<1320x256xbf16, #tpu.memory_space<vmem>>, %arg3: memref<1x256xf32, #tpu.memory_space<vmem>>, %arg4: memref<256x256xbf16, #tpu.memory_space<vmem>>, %arg5: memref<1x256xf32, #tpu.memory_space<vmem>>, %arg6: memref<1x256xf32, #tpu.memory_space<vmem>>, %arg7: memref<1x1xf32, #tpu.memory_space<vmem>>, %arg8: memref<512x1xf32, #tpu.memory_space<vmem>>) attributes {dimension_semantics = [#tpu.dimension_semantics<parallel>], iteration_bounds = array<i64: 2>, scalar_prefetch = 0 : i64, scratch_operands = 0 : i64, tpu.core_type = #tpu.core_type<tc>, window_params = [{transform_indices = @transform_0, window_bounds = array<i64: 512, 1320>}, {pipeline_mode = #tpu.pipeline_mode<synchronous>, transform_indices = @transform_1, window_bounds = array<i64: 1320, 256>}, {pipeline_mode = #tpu.pipeline_mode<synchronous>, transform_indices = @transform_2, window_bounds = array<i64: 1, 256>}, {pipeline_mode = #tpu.pipeline_mode<synchronous>, transform_indices = @transform_3, window_bounds = array<i64: 256, 256>}, {pipeline_mode = #tpu.pipeline_mode<synchronous>, transform_indices = @transform_4, window_bounds = array<i64: 1, 256>}, {pipeline_mode = #tpu.pipeline_mode<synchronous>, transform_indices = @transform_5, window_bounds = array<i64: 1, 256>}, {pipeline_mode = #tpu.pipeline_mode<synchronous>, transform_indices = @transform_6, window_bounds = array<i64: 1, 1>}, {transform_indices = @transform_7, window_bounds = array<i64: 512, 1>}]} {
    %c0 = arith.constant 0 : index
    %c0_0 = arith.constant 0 : index
    %0 = vector.load %arg1[%c0, %c0_0] : memref<512x1320xf32, #tpu.memory_space<vmem>>, vector<512x1320xf32>
    %1 = arith.truncf %0 : vector<512x1320xf32> to vector<512x1320xbf16>
    %c0_1 = arith.constant 0 : index
    %c0_2 = arith.constant 0 : index
    %2 = vector.load %arg2[%c0_1, %c0_2] : memref<1320x256xbf16, #tpu.memory_space<vmem>>, vector<1320x256xbf16>
    %cst = arith.constant dense<0.000000e+00> : vector<512x256xf32>
    %3 = tpu.matmul %1, %2, %cst {dimension_numbers = #tpu.dot_dimension_numbers<[1], [0], [0], [1], [0, 0, 1, 1], [], []>} : vector<512x1320xbf16>, vector<1320x256xbf16>, vector<512x256xf32> -> vector<512x256xf32>
    %c0_3 = arith.constant 0 : index
    %c0_4 = arith.constant 0 : index
    %4 = vector.load %arg3[%c0_3, %c0_4] : memref<1x256xf32, #tpu.memory_space<vmem>>, vector<1x256xf32>
    %5 = vector.broadcast %4 : vector<1x256xf32> to vector<512x256xf32>
    %6 = arith.addf %3, %5 : vector<512x256xf32>
    %cst_5 = arith.constant 0.000000e+00 : f32
    %7 = vector.broadcast %cst_5 : f32 to vector<512x256xf32>
    %8 = arith.maximumf %6, %7 : vector<512x256xf32>
    %9 = arith.truncf %8 : vector<512x256xf32> to vector<512x256xbf16>
    %c0_6 = arith.constant 0 : index
    %c0_7 = arith.constant 0 : index
    %10 = vector.load %arg4[%c0_6, %c0_7] : memref<256x256xbf16, #tpu.memory_space<vmem>>, vector<256x256xbf16>
    %cst_8 = arith.constant dense<0.000000e+00> : vector<512x256xf32>
    %11 = tpu.matmul %9, %10, %cst_8 {dimension_numbers = #tpu.dot_dimension_numbers<[1], [0], [0], [1], [0, 0, 1, 1], [], []>} : vector<512x256xbf16>, vector<256x256xbf16>, vector<512x256xf32> -> vector<512x256xf32>
    %c0_9 = arith.constant 0 : index
    %c0_10 = arith.constant 0 : index
    %12 = vector.load %arg5[%c0_9, %c0_10] : memref<1x256xf32, #tpu.memory_space<vmem>>, vector<1x256xf32>
    %13 = vector.broadcast %12 : vector<1x256xf32> to vector<512x256xf32>
    %14 = arith.addf %11, %13 : vector<512x256xf32>
    %cst_11 = arith.constant 0.000000e+00 : f32
    %15 = vector.broadcast %cst_11 : f32 to vector<512x256xf32>
    %16 = arith.maximumf %14, %15 : vector<512x256xf32>
    %c0_12 = arith.constant 0 : index
    %c0_13 = arith.constant 0 : index
    %17 = vector.load %arg6[%c0_12, %c0_13] : memref<1x256xf32, #tpu.memory_space<vmem>>, vector<1x256xf32>
    %18 = vector.broadcast %17 : vector<1x256xf32> to vector<512x256xf32>
    %19 = arith.mulf %16, %18 : vector<512x256xf32>
    %cst_14 = arith.constant dense<0.000000e+00> : vector<512xf32>
    %20 = vector.multi_reduction <add>, %19, %cst_14 [1] : vector<512x256xf32> to vector<512xf32>
    %21 = vector.shape_cast %20 : vector<512xf32> to vector<512x1xf32>
    %c0_15 = arith.constant 0 : index
    %c0_16 = arith.constant 0 : index
    %22 = vector.load %arg7[%c0_15, %c0_16] : memref<1x1xf32, #tpu.memory_space<vmem>>, vector<1x1xf32>
    %23 = vector.broadcast %22 : vector<1x1xf32> to vector<512x1xf32>
    %24 = arith.addf %21, %23 : vector<512x1xf32>
    %cst_17 = arith.constant 0.000000e+00 : f32
    %25 = vector.broadcast %cst_17 : f32 to vector<512x1xf32>
    %26 = arith.maximumf %24, %25 : vector<512x1xf32>
    %c0_18 = arith.constant 0 : index
    %c0_19 = arith.constant 0 : index
    %27 = vector.load %arg8[%c0_18, %c0_19] : memref<512x1xf32, #tpu.memory_space<vmem>>, vector<512x1xf32>
    tpu.vector_store %arg8[%c0_18, %c0_19], %26 {strides = array<i32>} : memref<512x1xf32, #tpu.memory_space<vmem>>, vector<512x1xf32>,
    return
  }
  func.func @transform_0(%arg0: i32) -> (i32, i32) {
    %c0_i32 = arith.constant 0 : i32
    %c0_i32_0 = arith.constant 0 : i32
    return %arg0, %c0_i32 : i32, i32
  }
  func.func @transform_1(%arg0: i32) -> (i32, i32) {
    %c0_i32 = arith.constant 0 : i32
    %c0_i32_0 = arith.constant 0 : i32
    %c0_i32_1 = arith.constant 0 : i32
    return %c0_i32, %c0_i32_0 : i32, i32
  }
  func.func @transform_2(%arg0: i32) -> (i32, i32) {
    %c0_i32 = arith.constant 0 : i32
    %c0_i32_0 = arith.constant 0 : i32
    %c0_i32_1 = arith.constant 0 : i32
    return %c0_i32, %c0_i32_0 : i32, i32
  }
  func.func @transform_3(%arg0: i32) -> (i32, i32) {
    %c0_i32 = arith.constant 0 : i32
    %c0_i32_0 = arith.constant 0 : i32
    %c0_i32_1 = arith.constant 0 : i32
    return %c0_i32, %c0_i32_0 : i32, i32
  }
  func.func @transform_4(%arg0: i32) -> (i32, i32) {
    %c0_i32 = arith.constant 0 : i32
    %c0_i32_0 = arith.constant 0 : i32
    %c0_i32_1 = arith.constant 0 : i32
    return %c0_i32, %c0_i32_0 : i32, i32
  }
  func.func @transform_5(%arg0: i32) -> (i32, i32) {
    %c0_i32 = arith.constant 0 : i32
    %c0_i32_0 = arith.constant 0 : i32
    %c0_i32_1 = arith.constant 0 : i32
    return %c0_i32, %c0_i32_0 : i32, i32
  }
  func.func @transform_6(%arg0: i32) -> (i32, i32) {
    %c0_i32 = arith.constant 0 : i32
    %c0_i32_0 = arith.constant 0 : i32
    %c0_i32_1 = arith.constant 0 : i32
    return %c0_i32, %c0_i32_0 : i32, i32
  }
  func.func @transform_7(%arg0: i32) -> (i32, i32) {
    %c0_i32 = arith.constant 0 : i32
    %c0_i32_0 = arith.constant 0 : i32
    return %arg0, %c0_i32 : i32, i32
  }
}

</mosaic_0001>

<llo_original>
// kernel: tpu_custom_call.1
$region0: #{tpu_custom_call.1}
  #allocation0 [shape = 'u32[]', space=smem, size = 0x4, offset = 0x4, fixed_abs, tag = 'smem constant byte address 0x4 - core index']
  #allocation1 [shape = 'u32[144,128]{1,0:T(1,128)}', space=vmem, size = 0x12000, scoped, tag = 'internal scratch']
  #allocation2 [shape = 'f32[1,1]{1,0:T(1,128)S(1)}', space=vmem, size = 0x200, scoped, tag = 'scoped memory for tpu_custom_call.1']
  %s0 = inlined_call_operand.vmem [shape: f32[1024,1320], index: 0, kind: input, shape index: {}]
  %s1 = inlined_call_operand.vmem [shape: bf16[1320,256], index: 1, kind: input, shape index: {}]
  %s2 = inlined_call_operand.vmem [shape: f32[1,256], index: 2, kind: input, shape index: {}]
  %s3 = inlined_call_operand.vmem [shape: bf16[256,256], index: 3, kind: input, shape index: {}]
  %s4 = inlined_call_operand.vmem [shape: f32[1,256], index: 4, kind: input, shape index: {}]
  %s5 = inlined_call_operand.vmem [shape: f32[1,256], index: 5, kind: input, shape index: {}]
  %s6 = inlined_call_operand.<no memory space> [shape: f32[1,1], index: 6, kind: input, shape index: {}]
  %s7 = inlined_call_operand.vmem [shape: f32[1024,1], index: 7, kind: output, shape index: {}]
  %s8 = sld [smem:[#allocation0]]
  $region61: #{tpu_custom_call.1} parent=0
    _
  %s10 = ssub.s32 1, %s8
  %s11 = scalar_select 0, %s10, %s8
  %v12 = vstv %s6
  %13 = vst [vmem:[#allocation2] sm:$0x1] %v12
  loop: start=0, step=1, limit=4
  $region2: #{tpu_custom_call.1} parent=0 // loop_pre_header
    _
  $region3: #{tpu_custom_call.1} parent=0 // loop_header
    %s15 = sphi 0, %s19
    %p16 = scmp.ge.s32.totalorder %s15, 4
    %s25 = sphi 0, %s27
    %s28 = sphi 0, %s25
    %s29 = sphi 0, %s28
    %s45 = sphi 0, %s29
    %s49 = sphi 0, %s49
    %s51 = sphi 0, %s49
    %s52 = sphi 0, %s51
    %s66 = sphi 0, %s52
    %s70 = sphi 0, %s70
    %s72 = sphi 0, %s70
    %s73 = sphi 0, %s72
    %s87 = sphi 0, %s73
    %s91 = sphi 0, %s91
    %s93 = sphi 0, %s91
    %s94 = sphi 0, %s93
    %s108 = sphi 0, %s94
    %s112 = sphi 0, %s112
    %s114 = sphi 0, %s112
    %s115 = sphi 0, %s114
    %s129 = sphi 0, %s115
    %s133 = sphi 0, %s133
    %s135 = sphi 0, %s133
    %s136 = sphi 0, %s135
    %s150 = sphi 0, %s136
    %s154 = sphi 0, %s154
    %s156 = sphi 0, %s154
    %s157 = sphi 0, %s156
    %s171 = sphi 0, %s157
    %s177 = sphi 0, %s179
    %s180 = sphi 0, %s177
    %s181 = sphi 0, %s180
    %s197 = sphi 0, %s181
  $region4: #{tpu_custom_call.1} parent=0 // loop_header_branch
    %18 = sbr.rel (%p16) target = $region8
  $region5: #{tpu_custom_call.1} parent=0 // loop_body
    %s20 = ssub.s32 %s15, 1
    %s21 = ssub.s32 %s15, 2
    %s22 = sadd.s32 %s15, 1
    %s23 = ssub.s32 %s15, %s22
    %p24 = scmp.eq.s32.totalorder %s23, 0
    %s26 = sadd.s32 %s25, 1
    %s27 = scalar_select %p24, %s25, %s26
    %p30 = pneg %p24
    %p31 = scmp.eq.s32.totalorder %s15, 1
    %p32 = por %p30, %p31
    %p33 = scmp.ne.s32.totalorder %s25, %s28
    %p34 = scmp.eq.s32.totalorder %s15, 0
    %p35 = por %p33, %p34
    %p36 = scmp.ne.s32.totalorder %s25, %s28
    %p37 = scmp.eq.s32.totalorder %s20, 1
    %p38 = por %p36, %p37
    %p39 = scmp.ne.s32.totalorder %s28, %s29
    %p40 = scmp.eq.s32.totalorder %s20, 0
    %p41 = por %p39, %p40
    %p42 = scmp.ne.s32.totalorder %s28, %s29
    %p43 = scmp.eq.s32.totalorder %s21, 1
    %p44 = por %p42, %p43
    %p46 = scmp.ne.s32.totalorder %s29, %s45
    %p47 = scmp.eq.s32.totalorder %s21, 0
    %p48 = por %p46, %p47
    %s50 = sadd.s32 %s49, 1
    %p53 = scmp.eq.s32.totalorder %s15, 1
    %p54 = scmp.ne.s32.totalorder %s49, %s51
    %p55 = scmp.eq.s32.totalorder %s15, 0
    %p56 = por %p54, %p55
    %p57 = scmp.ne.s32.totalorder %s49, %s51
    %p58 = scmp.eq.s32.totalorder %s20, 1
    %p59 = por %p57, %p58
    %p60 = scmp.ne.s32.totalorder %s51, %s52
    %p61 = scmp.eq.s32.totalorder %s20, 0
    %p62 = por %p60, %p61
    %p63 = scmp.ne.s32.totalorder %s51, %s52
    %p64 = scmp.eq.s32.totalorder %s21, 1
    %p65 = por %p63, %p64
    %p67 = scmp.ne.s32.totalorder %s52, %s66
    %p68 = scmp.eq.s32.totalorder %s21, 0
    %p69 = por %p67, %p68
    %s71 = sadd.s32 %s70, 1
    %p74 = scmp.eq.s32.totalorder %s15, 1
    %p75 = scmp.ne.s32.totalorder %s70, %s72
    %p76 = scmp.eq.s32.totalorder %s15, 0
    %p77 = por %p75, %p76
    %p78 = scmp.ne.s32.totalorder %s70, %s72
    %p79 = scmp.eq.s32.totalorder %s20, 1
    %p80 = por %p78, %p79
    %p81 = scmp.ne.s32.totalorder %s72, %s73
    %p82 = scmp.eq.s32.totalorder %s20, 0
    %p83 = por %p81, %p82
    %p84 = scmp.ne.s32.totalorder %s72, %s73
    %p85 = scmp.eq.s32.totalorder %s21, 1
    %p86 = por %p84, %p85
    %p88 = scmp.ne.s32.totalorder %s73, %s87
    %p89 = scmp.eq.s32.totalorder %s21, 0
    %p90 = por %p88, %p89
    %s92 = sadd.s32 %s91, 1
    %p95 = scmp.eq.s32.totalorder %s15, 1
    %p96 = scmp.ne.s32.totalorder %s91, %s93
    %p97 = scmp.eq.s32.totalorder %s15, 0
    %p98 = por %p96, %p97
    %p99 = scmp.ne.s32.totalorder %s91, %s93
    %p100 = scmp.eq.s32.totalorder %s20, 1
    %p101 = por %p99, %p100
    %p102 = scmp.ne.s32.totalorder %s93, %s94
    %p103 = scmp.eq.s32.totalorder %s20, 0
    %p104 = por %p102, %p103
    %p105 = scmp.ne.s32.totalorder %s93, %s94
    %p106 = scmp.eq.s32.totalorder %s21, 1
    %p107 = por %p105, %p106
    %p109 = scmp.ne.s32.totalorder %s94, %s108
    %p110 = scmp.eq.s32.totalorder %s21, 0
    %p111 = por %p109, %p110
    %s113 = sadd.s32 %s112, 1
    %p116 = scmp.eq.s32.totalorder %s15, 1
    %p117 = scmp.ne.s32.totalorder %s112, %s114
    %p118 = scmp.eq.s32.totalorder %s15, 0
    %p119 = por %p117, %p118
    %p120 = scmp.ne.s32.totalorder %s112, %s114
    %p121 = scmp.eq.s32.totalorder %s20, 1
    %p122 = por %p120, %p121
    %p123 = scmp.ne.s32.totalorder %s114, %s115
    %p124 = scmp.eq.s32.totalorder %s20, 0
    %p125 = por %p123, %p124
    %p126 = scmp.ne.s32.totalorder %s114, %s115
    %p127 = scmp.eq.s32.totalorder %s21, 1
    %p128 = por %p126, %p127
    %p130 = scmp.ne.s32.totalorder %s115, %s129
    %p131 = scmp.eq.s32.totalorder %s21, 0
    %p132 = por %p130, %p131
    %s134 = sadd.s32 %s133, 1
    %p137 = scmp.eq.s32.totalorder %s15, 1
    %p138 = scmp.ne.s32.totalorder %s133, %s135
    %p139 = scmp.eq.s32.totalorder %s15, 0
    %p140 = por %p138, %p139
    %p141 = scmp.ne.s32.totalorder %s133, %s135
    %p142 = scmp.eq.s32.totalorder %s20, 1
    %p143 = por %p141, %p142
    %p144 = scmp.ne.s32.totalorder %s135, %s136
    %p145 = scmp.eq.s32.totalorder %s20, 0
    %p146 = por %p144, %p145
    %p147 = scmp.ne.s32.totalorder %s135, %s136
    %p148 = scmp.eq.s32.totalorder %s21, 1
    %p149 = por %p147, %p148
    %p151 = scmp.ne.s32.totalorder %s136, %s150
    %p152 = scmp.eq.s32.totalorder %s21, 0
    %p153 = por %p151, %p152
    %s155 = sadd.s32 %s154, 1
    %p158 = scmp.eq.s32.totalorder %s15, 1
    %p159 = scmp.ne.s32.totalorder %s154, %s156
    %p160 = scmp.eq.s32.totalorder %s15, 0
    %p161 = por %p159, %p160
    %p162 = scmp.ne.s32.totalorder %s154, %s156
    %p163 = scmp.eq.s32.totalorder %s20, 1
    %p164 = por %p162, %p163
    %p165 = scmp.ne.s32.totalorder %s156, %s157
    %p166 = scmp.eq.s32.totalorder %s20, 0
    %p167 = por %p165, %p166
    %p168 = scmp.ne.s32.totalorder %s156, %s157
    %p169 = scmp.eq.s32.totalorder %s21, 1
    %p170 = por %p168, %p169
    %p172 = scmp.ne.s32.totalorder %s157, %s171
    %p173 = scmp.eq.s32.totalorder %s21, 0
    %p174 = por %p172, %p173
    %s175 = ssub.s32 %s15, %s22
    %p176 = scmp.eq.s32.totalorder %s175, 0
    %s178 = sadd.s32 %s177, 1
    %s179 = scalar_select %p176, %s177, %s178
    %p182 = pneg %p176
    %p183 = scmp.eq.s32.totalorder %s15, 1
    %p184 = por %p182, %p183
    %p185 = scmp.ne.s32.totalorder %s177, %s180
    %p186 = scmp.eq.s32.totalorder %s15, 0
    %p187 = por %p185, %p186
    %p188 = scmp.ne.s32.totalorder %s177, %s180
    %p189 = scmp.eq.s32.totalorder %s20, 1
    %p190 = por %p188, %p189
    %p191 = scmp.ne.s32.totalorder %s180, %s181
    %p192 = scmp.eq.s32.totalorder %s20, 0
    %p193 = por %p191, %p192
    %p194 = scmp.ne.s32.totalorder %s180, %s181
    %p195 = scmp.eq.s32.totalorder %s21, 1
    %p196 = por %p194, %p195
    %p198 = scmp.ne.s32.totalorder %s181, %s197
    %p199 = scmp.eq.s32.totalorder %s21, 0
    %p200 = por %p198, %p199
    %p201 = scmp.le.s32.totalorder 1, %s15
    %p202 = scmp.lt.s32.totalorder %s15, 3
    %p203 = pnand %p201, %p202
    %p204 = pneg %p203
    // Predicated region
    $region9: #{tpu_custom_call.1} parent=5 // pred_check
      _
    $region10: #{tpu_custom_call.1} parent=5 // pred_check_branch
      %206 = sbr.rel (%p203) target = $region12
    $region11: #{tpu_custom_call.1} parent=5 // pred_region
      %s207 = ssub.s32 %s15, 1
      // Predicated region
      $region13: #{tpu_custom_call.1} parent=11 // pred_check
        %p208 = pneg %p62
      $region14: #{tpu_custom_call.1} parent=11 // pred_check_branch
        %210 = sbr.rel (%p208) target = $region16
      $region15: #{tpu_custom_call.1} parent=11 // pred_region
        _
      $region16: #{tpu_custom_call.1} parent=11 // pred_fallthru
        _
      // Predicated region
      $region17: #{tpu_custom_call.1} parent=11 // pred_check
        %p211 = pneg %p83
      $region18: #{tpu_custom_call.1} parent=11 // pred_check_branch
        %213 = sbr.rel (%p211) target = $region20
      $region19: #{tpu_custom_call.1} parent=11 // pred_region
        _
      $region20: #{tpu_custom_call.1} parent=11 // pred_fallthru
        _
      // Predicated region
      $region21: #{tpu_custom_call.1} parent=11 // pred_check
        %p214 = pneg %p104
      $region22: #{tpu_custom_call.1} parent=11 // pred_check_branch
        %216 = sbr.rel (%p214) target = $region24
      $region23: #{tpu_custom_call.1} parent=11 // pred_region
        _
      $region24: #{tpu_custom_call.1} parent=11 // pred_fallthru
        _
      // Predicated region
      $region25: #{tpu_custom_call.1} parent=11 // pred_check
        %p217 = pneg %p125
      $region26: #{tpu_custom_call.1} parent=11 // pred_check_branch
        %219 = sbr.rel (%p217) target = $region28
      $region27: #{tpu_custom_call.1} parent=11 // pred_region
        _
      $region28: #{tpu_custom_call.1} parent=11 // pred_fallthru
        _
      // Predicated region
      $region29: #{tpu_custom_call.1} parent=11 // pred_check
        %p220 = pneg %p146
      $region30: #{tpu_custom_call.1} parent=11 // pred_check_branch
        %222 = sbr.rel (%p220) target = $region32
      $region31: #{tpu_custom_call.1} parent=11 // pred_region
        _
      $region32: #{tpu_custom_call.1} parent=11 // pred_fallthru
        _
      // Predicated region
      $region33: #{tpu_custom_call.1} parent=11 // pred_check
        %p223 = pneg %p167
      $region34: #{tpu_custom_call.1} parent=11 // pred_check_branch
        %225 = sbr.rel (%p223) target = $region36
      $region35: #{tpu_custom_call.1} parent=11 // pred_region
        _
      $region36: #{tpu_custom_call.1} parent=11 // pred_fallthru
        _
    $region12: #{tpu_custom_call.1} parent=5 // pred_fallthru
      _
    %p226 = scmp.lt.s32.totalorder %s15, 2
    // Predicated region
    $region37: #{tpu_custom_call.1} parent=5 // pred_check
      %p227 = pneg %p226
    $region38: #{tpu_custom_call.1} parent=5 // pred_check_branch
      %229 = sbr.rel (%p227) target = $region40
    $region39: #{tpu_custom_call.1} parent=5 // pred_region
      // Predicated region
      $region41: #{tpu_custom_call.1} parent=39 // pred_check
        %p230 = pneg %p35
      $region42: #{tpu_custom_call.1} parent=39 // pred_check_branch
        %232 = sbr.rel (%p230) target = $region44
      $region43: #{tpu_custom_call.1} parent=39 // pred_region
        %s233 = smul.u32 64, %s15
        %p234 = scmp.lt.s32.totalorder %s233, 127
        %s235 = scalar_select %p234, %s233, 127
        %s236 = smul.addr %s235, 11
        %s237 = smul.addr %s236, 8
        %s238 = scalar_lea.vmem %s0, %s237
        %s239 = smul.u32 64, %s15
      $region44: #{tpu_custom_call.1} parent=39 // pred_fallthru
        _
    $region40: #{tpu_custom_call.1} parent=5 // pred_fallthru
      _
    %p240 = scmp.le.s32.totalorder 1, %s15
    %p241 = scmp.lt.s32.totalorder %s15, 3
    %p242 = pnand %p240, %p241
    %p243 = pneg %p242
    // Predicated region
    $region45: #{tpu_custom_call.1} parent=5 // pred_check
      _
    $region46: #{tpu_custom_call.1} parent=5 // pred_check_branch
      %245 = sbr.rel (%p242) target = $region48
    $region47: #{tpu_custom_call.1} parent=5 // pred_region
      %s246 = ssub.s32 %s15, 1
      %s247 = smul.u32 64, %s20
      %p248 = scmp.lt.s32.totalorder %s247, 127
      %s249 = scalar_select %p248, %s247, 127
      %s250 = smul.addr %s249, 11
      %s251 = smul.addr %s250, 8
      %s252 = scalar_lea.vmem %s0, %s251
      %p253 = pneg %p41
      %p254 = pneg %p38
      %p255 = pneg %p62
      %p256 = pneg %p59
      %p257 = pneg %p83
      %p258 = pneg %p80
      %p259 = pneg %p104
      %p260 = pneg %p101
      %p261 = pneg %p125
      %p262 = pneg %p122
      %p263 = pneg %p146
      %p264 = pneg %p143
      %p265 = pneg %p167
      %p266 = pneg %p164
      %p267 = pneg %p193
      %p268 = pneg %p190
      %s269 = smul.u32 64, %s20
      %p270 = scmp.lt.s32.totalorder %s269, 127
      %s271 = scalar_select %p270, %s269, 127
      %s272 = smul.addr %s271, 8
      %s273 = scalar_lea.vmem %s7, %s272
      %s274 = smul.u32 64, %s20
      %p275 = scmp.lt.s32.totalorder %s274, 127
      %s276 = scalar_select %p275, %s274, 127
      %s277 = smul.addr %s276, 11
      %s278 = smul.addr %s277, 8
      %s279 = scalar_lea.vmem %s0, %s278
      %s280 = smul.u32 64, %s20
      %s281 = smul.u32 64, %s20
      %p282 = scmp.lt.s32.totalorder %s281, 127
      %s283 = scalar_select %p282, %s281, 127
      %s284 = smul.addr %s283, 8
      %s285 = scalar_lea.vmem %s7, %s284
      %s286 = smul.u32 64, %s20
      %v288 = vld [vmem:[%s279] sm:$0xff]
      %v289 = vld [vmem:[%s279 + $0x8] sm:$0xff]
      %v290 = vld [vmem:[%s279 + $0x10] sm:$0xff]
      %v291 = vld [vmem:[%s279 + $0x18] sm:$0xff]
      %v292 = vld [vmem:[%s279 + $0x20] sm:$0xff]
      %v293 = vld [vmem:[%s279 + $0x28] sm:$0xff]
      %v294 = vld [vmem:[%s279 + $0x30] sm:$0xff]
      %v295 = vld [vmem:[%s279 + $0x38] sm:$0xff]
      %v296 = vld [vmem:[%s279 + $0x40] sm:$0xff]
      %v297 = vld [vmem:[%s279 + $0x48] sm:$0xff]
      %v298 = vld [vmem:[%s279 + $0x50] sm:$0xff]
      %v299 = vld [vmem:[%s279 + $0x58] sm:$0xff]
      %v300 = vld [vmem:[%s279 + $0x60] sm:$0xff]
      %v301 = vld [vmem:[%s279 + $0x68] sm:$0xff]
      %v302 = vld [vmem:[%s279 + $0x70] sm:$0xff]
      %v303 = vld [vmem:[%s279 + $0x78] sm:$0xff]
      %v304 = vld [vmem:[%s279 + $0x80] sm:$0xff]
      %v305 = vld [vmem:[%s279 + $0x88] sm:$0xff]
      %v306 = vld [vmem:[%s279 + $0x90] sm:$0xff]
      %v307 = vld [vmem:[%s279 + $0x98] sm:$0xff]
      %v308 = vld [vmem:[%s279 + $0xa0] sm:$0xff]
      %v309 = vld [vmem:[%s279 + $0xa8] sm:$0xff]
      %v310 = vld [vmem:[%s279 + $0xb0] sm:$0xff]
      %v311 = vld [vmem:[%s279 + $0xb8] sm:$0xff]
      %v312 = vld [vmem:[%s279 + $0xc0] sm:$0xff]
      %v313 = vld [vmem:[%s279 + $0xc8] sm:$0xff]
      %v314 = vld [vmem:[%s279 + $0xd0] sm:$0xff]
      %v315 = vld [vmem:[%s279 + $0xd8] sm:$0xff]
      %v316 = vld [vmem:[%s279 + $0xe0] sm:$0xff]
      %v317 = vld [vmem:[%s279 + $0xe8] sm:$0xff]
      %v318 = vld [vmem:[%s279 + $0xf0] sm:$0xff]
      %v319 = vld [vmem:[%s279 + $0xf8] sm:$0xff]
      %v320 = vld [vmem:[%s279 + $0x100] sm:$0xff]
      %v321 = vld [vmem:[%s279 + $0x108] sm:$0xff]
      %v322 = vld [vmem:[%s279 + $0x110] sm:$0xff]
      %v323 = vld [vmem:[%s279 + $0x118] sm:$0xff]
      %v324 = vld [vmem:[%s279 + $0x120] sm:$0xff]
      %v325 = vld [vmem:[%s279 + $0x128] sm:$0xff]
      %v326 = vld [vmem:[%s279 + $0x130] sm:$0xff]
      %v327 = vld [vmem:[%s279 + $0x138] sm:$0xff]
      %v328 = vld [vmem:[%s279 + $0x140] sm:$0xff]
      %v329 = vld [vmem:[%s279 + $0x148] sm:$0xff]
      %v330 = vld [vmem:[%s279 + $0x150] sm:$0xff]
      %v331 = vld [vmem:[%s279 + $0x158] sm:$0xff]
      %v332 = vld [vmem:[%s279 + $0x160] sm:$0xff]
      %v333 = vld [vmem:[%s279 + $0x168] sm:$0xff]
      %v334 = vld [vmem:[%s279 + $0x170] sm:$0xff]
      %v335 = vld [vmem:[%s279 + $0x178] sm:$0xff]
      %v336 = vld [vmem:[%s279 + $0x180] sm:$0xff]
      %v337 = vld [vmem:[%s279 + $0x188] sm:$0xff]
      %v338 = vld [vmem:[%s279 + $0x190] sm:$0xff]
      %v339 = vld [vmem:[%s279 + $0x198] sm:$0xff]
      %v340 = vld [vmem:[%s279 + $0x1a0] sm:$0xff]
      %v341 = vld [vmem:[%s279 + $0x1a8] sm:$0xff]
      %v342 = vld [vmem:[%s279 + $0x1b0] sm:$0xff]
      %v343 = vld [vmem:[%s279 + $0x1b8] sm:$0xff]
      %v344 = vld [vmem:[%s279 + $0x1c0] sm:$0xff]
      %v345 = vld [vmem:[%s279 + $0x1c8] sm:$0xff]
      %v346 = vld [vmem:[%s279 + $0x1d0] sm:$0xff]
      %v347 = vld [vmem:[%s279 + $0x1d8] sm:$0xff]
      %v348 = vld [vmem:[%s279 + $0x1e0] sm:$0xff]
      %v349 = vld [vmem:[%s279 + $0x1e8] sm:$0xff]
      %v350 = vld [vmem:[%s279 + $0x1f0] sm:$0xff]
      %v351 = vld [vmem:[%s279 + $0x1f8] sm:$0xff]
      %v352 = vld [vmem:[%s279 + $0x200] sm:$0xff]
      %v353 = vld [vmem:[%s279 + $0x208] sm:$0xff]
      %v354 = vld [vmem:[%s279 + $0x210] sm:$0xff]
      %v355 = vld [vmem:[%s279 + $0x218] sm:$0xff]
      %v356 = vld [vmem:[%s279 + $0x220] sm:$0xff]
      %v357 = vld [vmem:[%s279 + $0x228] sm:$0xff]
      %v358 = vld [vmem:[%s279 + $0x230] sm:$0xff]
      %v359 = vld [vmem:[%s279 + $0x238] sm:$0xff]
      %v360 = vld [vmem:[%s279 + $0x240] sm:$0xff]
      %v361 = vld [vmem:[%s279 + $0x248] sm:$0xff]
      %v362 = vld [vmem:[%s279 + $0x250] sm:$0xff]
      %v363 = vld [vmem:[%s279 + $0x258] sm:$0xff]
      %v364 = vld [vmem:[%s279 + $0x260] sm:$0xff]
      %v365 = vld [vmem:[%s279 + $0x268] sm:$0xff]
      %v366 = vld [vmem:[%s279 + $0x270] sm:$0xff]
      %v367 = vld [vmem:[%s279 + $0x278] sm:$0xff]
      %v368 = vld [vmem:[%s279 + $0x280] sm:$0xff]
      %v369 = vld [vmem:[%s279 + $0x288] sm:$0xff]
      %v370 = vld [vmem:[%s279 + $0x290] sm:$0xff]
      %v371 = vld [vmem:[%s279 + $0x298] sm:$0xff]
      %v372 = vld [vmem:[%s279 + $0x2a0] sm:$0xff]
      %v373 = vld [vmem:[%s279 + $0x2a8] sm:$0xff]
      %v374 = vld [vmem:[%s279 + $0x2b0] sm:$0xff]
      %v375 = vld [vmem:[%s279 + $0x2b8] sm:$0xff]
      %v376 = vld [vmem:[%s279 + $0x2c0] sm:$0xff]
      %v377 = vld [vmem:[%s279 + $0x2c8] sm:$0xff]
      %v378 = vld [vmem:[%s279 + $0x2d0] sm:$0xff]
      %v379 = vld [vmem:[%s279 + $0x2d8] sm:$0xff]
      %v380 = vld [vmem:[%s279 + $0x2e0] sm:$0xff]
      %v381 = vld [vmem:[%s279 + $0x2e8] sm:$0xff]
      %v382 = vld [vmem:[%s279 + $0x2f0] sm:$0xff]
      %v383 = vld [vmem:[%s279 + $0x2f8] sm:$0xff]
      %v384 = vld [vmem:[%s279 + $0x300] sm:$0xff]
      %v385 = vld [vmem:[%s279 + $0x308] sm:$0xff]
      %v386 = vld [vmem:[%s279 + $0x310] sm:$0xff]
      %v387 = vld [vmem:[%s279 + $0x318] sm:$0xff]
      %v388 = vld [vmem:[%s279 + $0x320] sm:$0xff]
      %v389 = vld [vmem:[%s279 + $0x328] sm:$0xff]
      %v390 = vld [vmem:[%s279 + $0x330] sm:$0xff]
      %v391 = vld [vmem:[%s279 + $0x338] sm:$0xff]
      %v392 = vld [vmem:[%s279 + $0x340] sm:$0xff]
      %v393 = vld [vmem:[%s279 + $0x348] sm:$0xff]
      %v394 = vld [vmem:[%s279 + $0x350] sm:$0xff]
      %v395 = vld [vmem:[%s279 + $0x358] sm:$0xff]
      %v396 = vld [vmem:[%s279 + $0x360] sm:$0xff]
      %v397 = vld [vmem:[%s279 + $0x368] sm:$0xff]
      %v398 = vld [vmem:[%s279 + $0x370] sm:$0xff]
      %v399 = vld [vmem:[%s279 + $0x378] sm:$0xff]
      %v400 = vld [vmem:[%s279 + $0x380] sm:$0xff]
      %v401 = vld [vmem:[%s279 + $0x388] sm:$0xff]
      %v402 = vld [vmem:[%s279 + $0x390] sm:$0xff]
      %v403 = vld [vmem:[%s279 + $0x398] sm:$0xff]
      %v404 = vld [vmem:[%s279 + $0x3a0] sm:$0xff]
      %v405 = vld [vmem:[%s279 + $0x3a8] sm:$0xff]
      %v406 = vld [vmem:[%s279 + $0x3b0] sm:$0xff]
      %v407 = vld [vmem:[%s279 + $0x3b8] sm:$0xff]
      %v408 = vld [vmem:[%s279 + $0x3c0] sm:$0xff]
      %v409 = vld [vmem:[%s279 + $0x3c8] sm:$0xff]
      %v410 = vld [vmem:[%s279 + $0x3d0] sm:$0xff]
      %v411 = vld [vmem:[%s279 + $0x3d8] sm:$0xff]
      %v412 = vld [vmem:[%s279 + $0x3e0] sm:$0xff]
      %v413 = vld [vmem:[%s279 + $0x3e8] sm:$0xff]
      %v414 = vld [vmem:[%s279 + $0x3f0] sm:$0xff]
      %v415 = vld [vmem:[%s279 + $0x3f8] sm:$0xff]
      %v416 = vld [vmem:[%s279 + $0x400] sm:$0xff]
      %v417 = vld [vmem:[%s279 + $0x408] sm:$0xff]
      %v418 = vld [vmem:[%s279 + $0x410] sm:$0xff]
      %v419 = vld [vmem:[%s279 + $0x418] sm:$0xff]
      %v420 = vld [vmem:[%s279 + $0x420] sm:$0xff]
      %v421 = vld [vmem:[%s279 + $0x428] sm:$0xff]
      %v422 = vld [vmem:[%s279 + $0x430] sm:$0xff]
      %v423 = vld [vmem:[%s279 + $0x438] sm:$0xff]
      %v424 = vld [vmem:[%s279 + $0x440] sm:$0xff]
      %v425 = vld [vmem:[%s279 + $0x448] sm:$0xff]
      %v426 = vld [vmem:[%s279 + $0x450] sm:$0xff]
      %v427 = vld [vmem:[%s279 + $0x458] sm:$0xff]
      %v428 = vld [vmem:[%s279 + $0x460] sm:$0xff]
      %v429 = vld [vmem:[%s279 + $0x468] sm:$0xff]
      %v430 = vld [vmem:[%s279 + $0x470] sm:$0xff]
      %v431 = vld [vmem:[%s279 + $0x478] sm:$0xff]
      %v432 = vld [vmem:[%s279 + $0x480] sm:$0xff]
      %v433 = vld [vmem:[%s279 + $0x488] sm:$0xff]
      %v434 = vld [vmem:[%s279 + $0x490] sm:$0xff]
      %v435 = vld [vmem:[%s279 + $0x498] sm:$0xff]
      %v436 = vld [vmem:[%s279 + $0x4a0] sm:$0xff]
      %v437 = vld [vmem:[%s279 + $0x4a8] sm:$0xff]
      %v438 = vld [vmem:[%s279 + $0x4b0] sm:$0xff]
      %v439 = vld [vmem:[%s279 + $0x4b8] sm:$0xff]
      %v440 = vld [vmem:[%s279 + $0x4c0] sm:$0xff]
      %v441 = vld [vmem:[%s279 + $0x4c8] sm:$0xff]
      %v442 = vld [vmem:[%s279 + $0x4d0] sm:$0xff]
      %v443 = vld [vmem:[%s279 + $0x4d8] sm:$0xff]
      %v444 = vld [vmem:[%s279 + $0x4e0] sm:$0xff]
      %v445 = vld [vmem:[%s279 + $0x4e8] sm:$0xff]
      %v446 = vld [vmem:[%s279 + $0x4f0] sm:$0xff]
      %v447 = vld [vmem:[%s279 + $0x4f8] sm:$0xff]
      %v448 = vld [vmem:[%s279 + $0x500] sm:$0xff]
      %v449 = vld [vmem:[%s279 + $0x508] sm:$0xff]
      %v450 = vld [vmem:[%s279 + $0x510] sm:$0xff]
      %v451 = vld [vmem:[%s279 + $0x518] sm:$0xff]
      %v452 = vld [vmem:[%s279 + $0x520] sm:$0xff]
      %v453 = vld [vmem:[%s279 + $0x528] sm:$0xff]
      %v454 = vld [vmem:[%s279 + $0x530] sm:$0xff]
      %v455 = vld [vmem:[%s279 + $0x538] sm:$0xff]
      %v456 = vld [vmem:[%s279 + $0x540] sm:$0xff]
      %v457 = vld [vmem:[%s279 + $0x548] sm:$0xff]
      %v458 = vld [vmem:[%s279 + $0x550] sm:$0xff]
      %v459 = vld [vmem:[%s279 + $0x558] sm:$0xff]
      %v460 = vld [vmem:[%s279 + $0x560] sm:$0xff]
      %v461 = vld [vmem:[%s279 + $0x568] sm:$0xff]
      %v462 = vld [vmem:[%s279 + $0x570] sm:$0xff]
      %v463 = vld [vmem:[%s279 + $0x578] sm:$0xff]
      %v464 = vld [vmem:[%s279 + $0x580] sm:$0xff]
      %v465 = vld [vmem:[%s279 + $0x588] sm:$0xff]
      %v466 = vld [vmem:[%s279 + $0x590] sm:$0xff]
      %v467 = vld [vmem:[%s279 + $0x598] sm:$0xff]
      %v468 = vld [vmem:[%s279 + $0x5a0] sm:$0xff]
      %v469 = vld [vmem:[%s279 + $0x5a8] sm:$0xff]
      %v470 = vld [vmem:[%s279 + $0x5b0] sm:$0xff]
      %v471 = vld [vmem:[%s279 + $0x5b8] sm:$0xff]
      %v472 = vld [vmem:[%s279 + $0x5c0] sm:$0xff]
      %v473 = vld [vmem:[%s279 + $0x5c8] sm:$0xff]
      %v474 = vld [vmem:[%s279 + $0x5d0] sm:$0xff]
      %v475 = vld [vmem:[%s279 + $0x5d8] sm:$0xff]
      %v476 = vld [vmem:[%s279 + $0x5e0] sm:$0xff]
      %v477 = vld [vmem:[%s279 + $0x5e8] sm:$0xff]
      %v478 = vld [vmem:[%s279 + $0x5f0] sm:$0xff]
      %v479 = vld [vmem:[%s279 + $0x5f8] sm:$0xff]
      %v480 = vld [vmem:[%s279 + $0x600] sm:$0xff]
      %v481 = vld [vmem:[%s279 + $0x608] sm:$0xff]
      %v482 = vld [vmem:[%s279 + $0x610] sm:$0xff]
      %v483 = vld [vmem:[%s279 + $0x618] sm:$0xff]
      %v484 = vld [vmem:[%s279 + $0x620] sm:$0xff]
      %v485 = vld [vmem:[%s279 + $0x628] sm:$0xff]
      %v486 = vld [vmem:[%s279 + $0x630] sm:$0xff]
      %v487 = vld [vmem:[%s279 + $0x638] sm:$0xff]
      %v488 = vld [vmem:[%s279 + $0x640] sm:$0xff]
      %v489 = vld [vmem:[%s279 + $0x648] sm:$0xff]
      %v490 = vld [vmem:[%s279 + $0x650] sm:$0xff]
      %v491 = vld [vmem:[%s279 + $0x658] sm:$0xff]
      %v492 = vld [vmem:[%s279 + $0x660] sm:$0xff]
      %v493 = vld [vmem:[%s279 + $0x668] sm:$0xff]
      %v494 = vld [vmem:[%s279 + $0x670] sm:$0xff]
      %v495 = vld [vmem:[%s279 + $0x678] sm:$0xff]
      %v496 = vld [vmem:[%s279 + $0x680] sm:$0xff]
      %v497 = vld [vmem:[%s279 + $0x688] sm:$0xff]
      %v498 = vld [vmem:[%s279 + $0x690] sm:$0xff]
      %v499 = vld [vmem:[%s279 + $0x698] sm:$0xff]
      %v500 = vld [vmem:[%s279 + $0x6a0] sm:$0xff]
      %v501 = vld [vmem:[%s279 + $0x6a8] sm:$0xff]
      %v502 = vld [vmem:[%s279 + $0x6b0] sm:$0xff]
      %v503 = vld [vmem:[%s279 + $0x6b8] sm:$0xff]
      %v504 = vld [vmem:[%s279 + $0x6c0] sm:$0xff]
      %v505 = vld [vmem:[%s279 + $0x6c8] sm:$0xff]
      %v506 = vld [vmem:[%s279 + $0x6d0] sm:$0xff]
      %v507 = vld [vmem:[%s279 + $0x6d8] sm:$0xff]
      %v508 = vld [vmem:[%s279 + $0x6e0] sm:$0xff]
      %v509 = vld [vmem:[%s279 + $0x6e8] sm:$0xff]
      %v510 = vld [vmem:[%s279 + $0x6f0] sm:$0xff]
      %v511 = vld [vmem:[%s279 + $0x6f8] sm:$0xff]
      %v512 = vld [vmem:[%s279 + $0x700] sm:$0xff]
      %v513 = vld [vmem:[%s279 + $0x708] sm:$0xff]
      %v514 = vld [vmem:[%s279 + $0x710] sm:$0xff]
      %v515 = vld [vmem:[%s279 + $0x718] sm:$0xff]
      %v516 = vld [vmem:[%s279 + $0x720] sm:$0xff]
      %v517 = vld [vmem:[%s279 + $0x728] sm:$0xff]
      %v518 = vld [vmem:[%s279 + $0x730] sm:$0xff]
      %v519 = vld [vmem:[%s279 + $0x738] sm:$0xff]
      %v520 = vld [vmem:[%s279 + $0x740] sm:$0xff]
      %v521 = vld [vmem:[%s279 + $0x748] sm:$0xff]
      %v522 = vld [vmem:[%s279 + $0x750] sm:$0xff]
      %v523 = vld [vmem:[%s279 + $0x758] sm:$0xff]
      %v524 = vld [vmem:[%s279 + $0x760] sm:$0xff]
      %v525 = vld [vmem:[%s279 + $0x768] sm:$0xff]
      %v526 = vld [vmem:[%s279 + $0x770] sm:$0xff]
      %v527 = vld [vmem:[%s279 + $0x778] sm:$0xff]
      %v528 = vld [vmem:[%s279 + $0x780] sm:$0xff]
      %v529 = vld [vmem:[%s279 + $0x788] sm:$0xff]
      %v530 = vld [vmem:[%s279 + $0x790] sm:$0xff]
      %v531 = vld [vmem:[%s279 + $0x798] sm:$0xff]
      %v532 = vld [vmem:[%s279 + $0x7a0] sm:$0xff]
      %v533 = vld [vmem:[%s279 + $0x7a8] sm:$0xff]
      %v534 = vld [vmem:[%s279 + $0x7b0] sm:$0xff]
      %v535 = vld [vmem:[%s279 + $0x7b8] sm:$0xff]
      %v536 = vld [vmem:[%s279 + $0x7c0] sm:$0xff]
      %v537 = vld [vmem:[%s279 + $0x7c8] sm:$0xff]
      %v538 = vld [vmem:[%s279 + $0x7d0] sm:$0xff]
      %v539 = vld [vmem:[%s279 + $0x7d8] sm:$0xff]
      %v540 = vld [vmem:[%s279 + $0x7e0] sm:$0xff]
      %v541 = vld [vmem:[%s279 + $0x7e8] sm:$0xff]
      %v542 = vld [vmem:[%s279 + $0x7f0] sm:$0xff]
      %v543 = vld [vmem:[%s279 + $0x7f8] sm:$0xff]
      %v544 = vld [vmem:[%s279 + $0x800] sm:$0xff]
      %v545 = vld [vmem:[%s279 + $0x808] sm:$0xff]
      %v546 = vld [vmem:[%s279 + $0x810] sm:$0xff]
      %v547 = vld [vmem:[%s279 + $0x818] sm:$0xff]
      %v548 = vld [vmem:[%s279 + $0x820] sm:$0xff]
      %v549 = vld [vmem:[%s279 + $0x828] sm:$0xff]
      %v550 = vld [vmem:[%s279 + $0x830] sm:$0xff]
      %v551 = vld [vmem:[%s279 + $0x838] sm:$0xff]
      %v552 = vld [vmem:[%s279 + $0x840] sm:$0xff]
      %v553 = vld [vmem:[%s279 + $0x848] sm:$0xff]
      %v554 = vld [vmem:[%s279 + $0x850] sm:$0xff]
      %v555 = vld [vmem:[%s279 + $0x858] sm:$0xff]
      %v556 = vld [vmem:[%s279 + $0x860] sm:$0xff]
      %v557 = vld [vmem:[%s279 + $0x868] sm:$0xff]
      %v558 = vld [vmem:[%s279 + $0x870] sm:$0xff]
      %v559 = vld [vmem:[%s279 + $0x878] sm:$0xff]
      %v560 = vld [vmem:[%s279 + $0x880] sm:$0xff]
      %v561 = vld [vmem:[%s279 + $0x888] sm:$0xff]
      %v562 = vld [vmem:[%s279 + $0x890] sm:$0xff]
      %v563 = vld [vmem:[%s279 + $0x898] sm:$0xff]
      %v564 = vld [vmem:[%s279 + $0x8a0] sm:$0xff]
      %v565 = vld [vmem:[%s279 + $0x8a8] sm:$0xff]
      %v566 = vld [vmem:[%s279 + $0x8b0] sm:$0xff]
      %v567 = vld [vmem:[%s279 + $0x8b8] sm:$0xff]
      %v568 = vld [vmem:[%s279 + $0x8c0] sm:$0xff]
      %v569 = vld [vmem:[%s279 + $0x8c8] sm:$0xff]
      %v570 = vld [vmem:[%s279 + $0x8d0] sm:$0xff]
      %v571 = vld [vmem:[%s279 + $0x8d8] sm:$0xff]
      %v572 = vld [vmem:[%s279 + $0x8e0] sm:$0xff]
      %v573 = vld [vmem:[%s279 + $0x8e8] sm:$0xff]
      %v574 = vld [vmem:[%s279 + $0x8f0] sm:$0xff]
      %v575 = vld [vmem:[%s279 + $0x8f8] sm:$0xff]
      %v576 = vld [vmem:[%s279 + $0x900] sm:$0xff]
      %v577 = vld [vmem:[%s279 + $0x908] sm:$0xff]
      %v578 = vld [vmem:[%s279 + $0x910] sm:$0xff]
      %v579 = vld [vmem:[%s279 + $0x918] sm:$0xff]
      %v580 = vld [vmem:[%s279 + $0x920] sm:$0xff]
      %v581 = vld [vmem:[%s279 + $0x928] sm:$0xff]
      %v582 = vld [vmem:[%s279 + $0x930] sm:$0xff]
      %v583 = vld [vmem:[%s279 + $0x938] sm:$0xff]
      %v584 = vld [vmem:[%s279 + $0x940] sm:$0xff]
      %v585 = vld [vmem:[%s279 + $0x948] sm:$0xff]
      %v586 = vld [vmem:[%s279 + $0x950] sm:$0xff]
      %v587 = vld [vmem:[%s279 + $0x958] sm:$0xff]
      %v588 = vld [vmem:[%s279 + $0x960] sm:$0xff]
      %v589 = vld [vmem:[%s279 + $0x968] sm:$0xff]
      %v590 = vld [vmem:[%s279 + $0x970] sm:$0xff]
      %v591 = vld [vmem:[%s279 + $0x978] sm:$0xff]
      %v592 = vld [vmem:[%s279 + $0x980] sm:$0xff]
      %v593 = vld [vmem:[%s279 + $0x988] sm:$0xff]
      %v594 = vld [vmem:[%s279 + $0x990] sm:$0xff]
      %v595 = vld [vmem:[%s279 + $0x998] sm:$0xff]
      %v596 = vld [vmem:[%s279 + $0x9a0] sm:$0xff]
      %v597 = vld [vmem:[%s279 + $0x9a8] sm:$0xff]
      %v598 = vld [vmem:[%s279 + $0x9b0] sm:$0xff]
      %v599 = vld [vmem:[%s279 + $0x9b8] sm:$0xff]
      %v600 = vld [vmem:[%s279 + $0x9c0] sm:$0xff]
      %v601 = vld [vmem:[%s279 + $0x9c8] sm:$0xff]
      %v602 = vld [vmem:[%s279 + $0x9d0] sm:$0xff]
      %v603 = vld [vmem:[%s279 + $0x9d8] sm:$0xff]
      %v604 = vld [vmem:[%s279 + $0x9e0] sm:$0xff]
      %v605 = vld [vmem:[%s279 + $0x9e8] sm:$0xff]
      %v606 = vld [vmem:[%s279 + $0x9f0] sm:$0xff]
      %v607 = vld [vmem:[%s279 + $0x9f8] sm:$0xff]
      %v608 = vld [vmem:[%s279 + $0xa00] sm:$0xff]
      %v609 = vld [vmem:[%s279 + $0xa08] sm:$0xff]
      %v610 = vld [vmem:[%s279 + $0xa10] sm:$0xff]
      %v611 = vld [vmem:[%s279 + $0xa18] sm:$0xff]
      %v612 = vld [vmem:[%s279 + $0xa20] sm:$0xff]
      %v613 = vld [vmem:[%s279 + $0xa28] sm:$0xff]
      %v614 = vld [vmem:[%s279 + $0xa30] sm:$0xff]
      %v615 = vld [vmem:[%s279 + $0xa38] sm:$0xff]
      %v616 = vld [vmem:[%s279 + $0xa40] sm:$0xff]
      %v617 = vld [vmem:[%s279 + $0xa48] sm:$0xff]
      %v618 = vld [vmem:[%s279 + $0xa50] sm:$0xff]
      %v619 = vld [vmem:[%s279 + $0xa58] sm:$0xff]
      %v620 = vld [vmem:[%s279 + $0xa60] sm:$0xff]
      %v621 = vld [vmem:[%s279 + $0xa68] sm:$0xff]
      %v622 = vld [vmem:[%s279 + $0xa70] sm:$0xff]
      %v623 = vld [vmem:[%s279 + $0xa78] sm:$0xff]
      %v624 = vld [vmem:[%s279 + $0xa80] sm:$0xff]
      %v625 = vld [vmem:[%s279 + $0xa88] sm:$0xff]
      %v626 = vld [vmem:[%s279 + $0xa90] sm:$0xff]
      %v627 = vld [vmem:[%s279 + $0xa98] sm:$0xff]
      %v628 = vld [vmem:[%s279 + $0xaa0] sm:$0xff]
      %v629 = vld [vmem:[%s279 + $0xaa8] sm:$0xff]
      %v630 = vld [vmem:[%s279 + $0xab0] sm:$0xff]
      %v631 = vld [vmem:[%s279 + $0xab8] sm:$0xff]
      %v632 = vld [vmem:[%s279 + $0xac0] sm:$0xff]
      %v633 = vld [vmem:[%s279 + $0xac8] sm:$0xff]
      %v634 = vld [vmem:[%s279 + $0xad0] sm:$0xff]
      %v635 = vld [vmem:[%s279 + $0xad8] sm:$0xff]
      %v636 = vld [vmem:[%s279 + $0xae0] sm:$0xff]
      %v637 = vld [vmem:[%s279 + $0xae8] sm:$0xff]
      %v638 = vld [vmem:[%s279 + $0xaf0] sm:$0xff]
      %v639 = vld [vmem:[%s279 + $0xaf8] sm:$0xff]
      %v640 = vld [vmem:[%s279 + $0xb00] sm:$0xff]
      %v641 = vld [vmem:[%s279 + $0xb08] sm:$0xff]
      %v642 = vld [vmem:[%s279 + $0xb10] sm:$0xff]
      %v643 = vld [vmem:[%s279 + $0xb18] sm:$0xff]
      %v644 = vld [vmem:[%s279 + $0xb20] sm:$0xff]
      %v645 = vld [vmem:[%s279 + $0xb28] sm:$0xff]
      %v646 = vld [vmem:[%s279 + $0xb30] sm:$0xff]
      %v647 = vld [vmem:[%s279 + $0xb38] sm:$0xff]
      %v648 = vld [vmem:[%s279 + $0xb40] sm:$0xff]
      %v649 = vld [vmem:[%s279 + $0xb48] sm:$0xff]
      %v650 = vld [vmem:[%s279 + $0xb50] sm:$0xff]
      %v651 = vld [vmem:[%s279 + $0xb58] sm:$0xff]
      %v652 = vld [vmem:[%s279 + $0xb60] sm:$0xff]
      %v653 = vld [vmem:[%s279 + $0xb68] sm:$0xff]
      %v654 = vld [vmem:[%s279 + $0xb70] sm:$0xff]
      %v655 = vld [vmem:[%s279 + $0xb78] sm:$0xff]
      %v656 = vld [vmem:[%s279 + $0xb80] sm:$0xff]
      %v657 = vld [vmem:[%s279 + $0xb88] sm:$0xff]
      %v658 = vld [vmem:[%s279 + $0xb90] sm:$0xff]
      %v659 = vld [vmem:[%s279 + $0xb98] sm:$0xff]
      %v660 = vld [vmem:[%s279 + $0xba0] sm:$0xff]
      %v661 = vld [vmem:[%s279 + $0xba8] sm:$0xff]
      %v662 = vld [vmem:[%s279 + $0xbb0] sm:$0xff]
      %v663 = vld [vmem:[%s279 + $0xbb8] sm:$0xff]
      %v664 = vld [vmem:[%s279 + $0xbc0] sm:$0xff]
      %v665 = vld [vmem:[%s279 + $0xbc8] sm:$0xff]
      %v666 = vld [vmem:[%s279 + $0xbd0] sm:$0xff]
      %v667 = vld [vmem:[%s279 + $0xbd8] sm:$0xff]
      %v668 = vld [vmem:[%s279 + $0xbe0] sm:$0xff]
      %v669 = vld [vmem:[%s279 + $0xbe8] sm:$0xff]
      %v670 = vld [vmem:[%s279 + $0xbf0] sm:$0xff]
      %v671 = vld [vmem:[%s279 + $0xbf8] sm:$0xff]
      %v672 = vld [vmem:[%s279 + $0xc00] sm:$0xff]
      %v673 = vld [vmem:[%s279 + $0xc08] sm:$0xff]
      %v674 = vld [vmem:[%s279 + $0xc10] sm:$0xff]
      %v675 = vld [vmem:[%s279 + $0xc18] sm:$0xff]
      %v676 = vld [vmem:[%s279 + $0xc20] sm:$0xff]
      %v677 = vld [vmem:[%s279 + $0xc28] sm:$0xff]
      %v678 = vld [vmem:[%s279 + $0xc30] sm:$0xff]
      %v679 = vld [vmem:[%s279 + $0xc38] sm:$0xff]
      %v680 = vld [vmem:[%s279 + $0xc40] sm:$0xff]
      %v681 = vld [vmem:[%s279 + $0xc48] sm:$0xff]
      %v682 = vld [vmem:[%s279 + $0xc50] sm:$0xff]
      %v683 = vld [vmem:[%s279 + $0xc58] sm:$0xff]
      %v684 = vld [vmem:[%s279 + $0xc60] sm:$0xff]
      %v685 = vld [vmem:[%s279 + $0xc68] sm:$0xff]
      %v686 = vld [vmem:[%s279 + $0xc70] sm:$0xff]
      %v687 = vld [vmem:[%s279 + $0xc78] sm:$0xff]
      %v688 = vld [vmem:[%s279 + $0xc80] sm:$0xff]
      %v689 = vld [vmem:[%s279 + $0xc88] sm:$0xff]
      %v690 = vld [vmem:[%s279 + $0xc90] sm:$0xff]
      %v691 = vld [vmem:[%s279 + $0xc98] sm:$0xff]
      %v692 = vld [vmem:[%s279 + $0xca0] sm:$0xff]
      %v693 = vld [vmem:[%s279 + $0xca8] sm:$0xff]
      %v694 = vld [vmem:[%s279 + $0xcb0] sm:$0xff]
      %v695 = vld [vmem:[%s279 + $0xcb8] sm:$0xff]
      %v696 = vld [vmem:[%s279 + $0xcc0] sm:$0xff]
      %v697 = vld [vmem:[%s279 + $0xcc8] sm:$0xff]
      %v698 = vld [vmem:[%s279 + $0xcd0] sm:$0xff]
      %v699 = vld [vmem:[%s279 + $0xcd8] sm:$0xff]
      %v700 = vld [vmem:[%s279 + $0xce0] sm:$0xff]
      %v701 = vld [vmem:[%s279 + $0xce8] sm:$0xff]
      %v702 = vld [vmem:[%s279 + $0xcf0] sm:$0xff]
      %v703 = vld [vmem:[%s279 + $0xcf8] sm:$0xff]
      %v704 = vld [vmem:[%s279 + $0xd00] sm:$0xff]
      %v705 = vld [vmem:[%s279 + $0xd08] sm:$0xff]
      %v706 = vld [vmem:[%s279 + $0xd10] sm:$0xff]
      %v707 = vld [vmem:[%s279 + $0xd18] sm:$0xff]
      %v708 = vld [vmem:[%s279 + $0xd20] sm:$0xff]
      %v709 = vld [vmem:[%s279 + $0xd28] sm:$0xff]
      %v710 = vld [vmem:[%s279 + $0xd30] sm:$0xff]
      %v711 = vld [vmem:[%s279 + $0xd38] sm:$0xff]
      %v712 = vld [vmem:[%s279 + $0xd40] sm:$0xff]
      %v713 = vld [vmem:[%s279 + $0xd48] sm:$0xff]
      %v714 = vld [vmem:[%s279 + $0xd50] sm:$0xff]
      %v715 = vld [vmem:[%s279 + $0xd58] sm:$0xff]
      %v716 = vld [vmem:[%s279 + $0xd60] sm:$0xff]
      %v717 = vld [vmem:[%s279 + $0xd68] sm:$0xff]
      %v718 = vld [vmem:[%s279 + $0xd70] sm:$0xff]
      %v719 = vld [vmem:[%s279 + $0xd78] sm:$0xff]
      %v720 = vld [vmem:[%s279 + $0xd80] sm:$0xff]
      %v721 = vld [vmem:[%s279 + $0xd88] sm:$0xff]
      %v722 = vld [vmem:[%s279 + $0xd90] sm:$0xff]
      %v723 = vld [vmem:[%s279 + $0xd98] sm:$0xff]
      %v724 = vld [vmem:[%s279 + $0xda0] sm:$0xff]
      %v725 = vld [vmem:[%s279 + $0xda8] sm:$0xff]
      %v726 = vld [vmem:[%s279 + $0xdb0] sm:$0xff]
      %v727 = vld [vmem:[%s279 + $0xdb8] sm:$0xff]
      %v728 = vld [vmem:[%s279 + $0xdc0] sm:$0xff]
      %v729 = vld [vmem:[%s279 + $0xdc8] sm:$0xff]
      %v730 = vld [vmem:[%s279 + $0xdd0] sm:$0xff]
      %v731 = vld [vmem:[%s279 + $0xdd8] sm:$0xff]
      %v732 = vld [vmem:[%s279 + $0xde0] sm:$0xff]
      %v733 = vld [vmem:[%s279 + $0xde8] sm:$0xff]
      %v734 = vld [vmem:[%s279 + $0xdf0] sm:$0xff]
      %v735 = vld [vmem:[%s279 + $0xdf8] sm:$0xff]
      %v736 = vld [vmem:[%s279 + $0xe00] sm:$0xff]
      %v737 = vld [vmem:[%s279 + $0xe08] sm:$0xff]
      %v738 = vld [vmem:[%s279 + $0xe10] sm:$0xff]
      %v739 = vld [vmem:[%s279 + $0xe18] sm:$0xff]
      %v740 = vld [vmem:[%s279 + $0xe20] sm:$0xff]
      %v741 = vld [vmem:[%s279 + $0xe28] sm:$0xff]
      %v742 = vld [vmem:[%s279 + $0xe30] sm:$0xff]
      %v743 = vld [vmem:[%s279 + $0xe38] sm:$0xff]
      %v744 = vld [vmem:[%s279 + $0xe40] sm:$0xff]
      %v745 = vld [vmem:[%s279 + $0xe48] sm:$0xff]
      %v746 = vld [vmem:[%s279 + $0xe50] sm:$0xff]
      %v747 = vld [vmem:[%s279 + $0xe58] sm:$0xff]
      %v748 = vld [vmem:[%s279 + $0xe60] sm:$0xff]
      %v749 = vld [vmem:[%s279 + $0xe68] sm:$0xff]
      %v750 = vld [vmem:[%s279 + $0xe70] sm:$0xff]
      %v751 = vld [vmem:[%s279 + $0xe78] sm:$0xff]
      %v752 = vld [vmem:[%s279 + $0xe80] sm:$0xff]
      %v753 = vld [vmem:[%s279 + $0xe88] sm:$0xff]
      %v754 = vld [vmem:[%s279 + $0xe90] sm:$0xff]
      %v755 = vld [vmem:[%s279 + $0xe98] sm:$0xff]
      %v756 = vld [vmem:[%s279 + $0xea0] sm:$0xff]
      %v757 = vld [vmem:[%s279 + $0xea8] sm:$0xff]
      %v758 = vld [vmem:[%s279 + $0xeb0] sm:$0xff]
      %v759 = vld [vmem:[%s279 + $0xeb8] sm:$0xff]
      %v760 = vld [vmem:[%s279 + $0xec0] sm:$0xff]
      %v761 = vld [vmem:[%s279 + $0xec8] sm:$0xff]
      %v762 = vld [vmem:[%s279 + $0xed0] sm:$0xff]
      %v763 = vld [vmem:[%s279 + $0xed8] sm:$0xff]
      %v764 = vld [vmem:[%s279 + $0xee0] sm:$0xff]
      %v765 = vld [vmem:[%s279 + $0xee8] sm:$0xff]
      %v766 = vld [vmem:[%s279 + $0xef0] sm:$0xff]
      %v767 = vld [vmem:[%s279 + $0xef8] sm:$0xff]
      %v768 = vld [vmem:[%s279 + $0xf00] sm:$0xff]
      %v769 = vld [vmem:[%s279 + $0xf08] sm:$0xff]
      %v770 = vld [vmem:[%s279 + $0xf10] sm:$0xff]
      %v771 = vld [vmem:[%s279 + $0xf18] sm:$0xff]
      %v772 = vld [vmem:[%s279 + $0xf20] sm:$0xff]
      %v773 = vld [vmem:[%s279 + $0xf28] sm:$0xff]
      %v774 = vld [vmem:[%s279 + $0xf30] sm:$0xff]
      %v775 = vld [vmem:[%s279 + $0xf38] sm:$0xff]
      %v776 = vld [vmem:[%s279 + $0xf40] sm:$0xff]
      %v777 = vld [vmem:[%s279 + $0xf48] sm:$0xff]
      %v778 = vld [vmem:[%s279 + $0xf50] sm:$0xff]
      %v779 = vld [vmem:[%s279 + $0xf58] sm:$0xff]
      %v780 = vld [vmem:[%s279 + $0xf60] sm:$0xff]
      %v781 = vld [vmem:[%s279 + $0xf68] sm:$0xff]
      %v782 = vld [vmem:[%s279 + $0xf70] sm:$0xff]
      %v783 = vld [vmem:[%s279 + $0xf78] sm:$0xff]
      %v784 = vld [vmem:[%s279 + $0xf80] sm:$0xff]
      %v785 = vld [vmem:[%s279 + $0xf88] sm:$0xff]
      %v786 = vld [vmem:[%s279 + $0xf90] sm:$0xff]
      %v787 = vld [vmem:[%s279 + $0xf98] sm:$0xff]
      %v788 = vld [vmem:[%s279 + $0xfa0] sm:$0xff]
      %v789 = vld [vmem:[%s279 + $0xfa8] sm:$0xff]
      %v790 = vld [vmem:[%s279 + $0xfb0] sm:$0xff]
      %v791 = vld [vmem:[%s279 + $0xfb8] sm:$0xff]
      %v792 = vld [vmem:[%s279 + $0xfc0] sm:$0xff]
      %v793 = vld [vmem:[%s279 + $0xfc8] sm:$0xff]
      %v794 = vld [vmem:[%s279 + $0xfd0] sm:$0xff]
      %v795 = vld [vmem:[%s279 + $0xfd8] sm:$0xff]
      %v796 = vld [vmem:[%s279 + $0xfe0] sm:$0xff]
      %v797 = vld [vmem:[%s279 + $0xfe8] sm:$0xff]
      %v798 = vld [vmem:[%s279 + $0xff0] sm:$0xff]
      %v799 = vld [vmem:[%s279 + $0xff8] sm:$0xff]
      %v800 = vld [vmem:[%s279 + $0x1000] sm:$0xff]
      %v801 = vld [vmem:[%s279 + $0x1008] sm:$0xff]
      %v802 = vld [vmem:[%s279 + $0x1010] sm:$0xff]
      %v803 = vld [vmem:[%s279 + $0x1018] sm:$0xff]
      %v804 = vld [vmem:[%s279 + $0x1020] sm:$0xff]
      %v805 = vld [vmem:[%s279 + $0x1028] sm:$0xff]
      %v806 = vld [vmem:[%s279 + $0x1030] sm:$0xff]
      %v807 = vld [vmem:[%s279 + $0x1038] sm:$0xff]
      %v808 = vld [vmem:[%s279 + $0x1040] sm:$0xff]
      %v809 = vld [vmem:[%s279 + $0x1048] sm:$0xff]
      %v810 = vld [vmem:[%s279 + $0x1050] sm:$0xff]
      %v811 = vld [vmem:[%s279 + $0x1058] sm:$0xff]
      %v812 = vld [vmem:[%s279 + $0x1060] sm:$0xff]
      %v813 = vld [vmem:[%s279 + $0x1068] sm:$0xff]
      %v814 = vld [vmem:[%s279 + $0x1070] sm:$0xff]
      %v815 = vld [vmem:[%s279 + $0x1078] sm:$0xff]
      %v816 = vld [vmem:[%s279 + $0x1080] sm:$0xff]
      %v817 = vld [vmem:[%s279 + $0x1088] sm:$0xff]
      %v818 = vld [vmem:[%s279 + $0x1090] sm:$0xff]
      %v819 = vld [vmem:[%s279 + $0x1098] sm:$0xff]
      %v820 = vld [vmem:[%s279 + $0x10a0] sm:$0xff]
      %v821 = vld [vmem:[%s279 + $0x10a8] sm:$0xff]
      %v822 = vld [vmem:[%s279 + $0x10b0] sm:$0xff]
      %v823 = vld [vmem:[%s279 + $0x10b8] sm:$0xff]
      %v824 = vld [vmem:[%s279 + $0x10c0] sm:$0xff]
      %v825 = vld [vmem:[%s279 + $0x10c8] sm:$0xff]
      %v826 = vld [vmem:[%s279 + $0x10d0] sm:$0xff]
      %v827 = vld [vmem:[%s279 + $0x10d8] sm:$0xff]
      %v828 = vld [vmem:[%s279 + $0x10e0] sm:$0xff]
      %v829 = vld [vmem:[%s279 + $0x10e8] sm:$0xff]
      %v830 = vld [vmem:[%s279 + $0x10f0] sm:$0xff]
      %v831 = vld [vmem:[%s279 + $0x10f8] sm:$0xff]
      %v832 = vld [vmem:[%s279 + $0x1100] sm:$0xff]
      %v833 = vld [vmem:[%s279 + $0x1108] sm:$0xff]
      %v834 = vld [vmem:[%s279 + $0x1110] sm:$0xff]
      %v835 = vld [vmem:[%s279 + $0x1118] sm:$0xff]
      %v836 = vld [vmem:[%s279 + $0x1120] sm:$0xff]
      %v837 = vld [vmem:[%s279 + $0x1128] sm:$0xff]
      %v838 = vld [vmem:[%s279 + $0x1130] sm:$0xff]
      %v839 = vld [vmem:[%s279 + $0x1138] sm:$0xff]
      %v840 = vld [vmem:[%s279 + $0x1140] sm:$0xff]
      %v841 = vld [vmem:[%s279 + $0x1148] sm:$0xff]
      %v842 = vld [vmem:[%s279 + $0x1150] sm:$0xff]
      %v843 = vld [vmem:[%s279 + $0x1158] sm:$0xff]
      %v844 = vld [vmem:[%s279 + $0x1160] sm:$0xff]
      %v845 = vld [vmem:[%s279 + $0x1168] sm:$0xff]
      %v846 = vld [vmem:[%s279 + $0x1170] sm:$0xff]
      %v847 = vld [vmem:[%s279 + $0x1178] sm:$0xff]
      %v848 = vld [vmem:[%s279 + $0x1180] sm:$0xff]
      %v849 = vld [vmem:[%s279 + $0x1188] sm:$0xff]
      %v850 = vld [vmem:[%s279 + $0x1190] sm:$0xff]
      %v851 = vld [vmem:[%s279 + $0x1198] sm:$0xff]
      %v852 = vld [vmem:[%s279 + $0x11a0] sm:$0xff]
      %v853 = vld [vmem:[%s279 + $0x11a8] sm:$0xff]
      %v854 = vld [vmem:[%s279 + $0x11b0] sm:$0xff]
      %v855 = vld [vmem:[%s279 + $0x11b8] sm:$0xff]
      %v856 = vld [vmem:[%s279 + $0x11c0] sm:$0xff]
      %v857 = vld [vmem:[%s279 + $0x11c8] sm:$0xff]
      %v858 = vld [vmem:[%s279 + $0x11d0] sm:$0xff]
      %v859 = vld [vmem:[%s279 + $0x11d8] sm:$0xff]
      %v860 = vld [vmem:[%s279 + $0x11e0] sm:$0xff]
      %v861 = vld [vmem:[%s279 + $0x11e8] sm:$0xff]
      %v862 = vld [vmem:[%s279 + $0x11f0] sm:$0xff]
      %v863 = vld [vmem:[%s279 + $0x11f8] sm:$0xff]
      %v864 = vld [vmem:[%s279 + $0x1200] sm:$0xff]
      %v865 = vld [vmem:[%s279 + $0x1208] sm:$0xff]
      %v866 = vld [vmem:[%s279 + $0x1210] sm:$0xff]
      %v867 = vld [vmem:[%s279 + $0x1218] sm:$0xff]
      %v868 = vld [vmem:[%s279 + $0x1220] sm:$0xff]
      %v869 = vld [vmem:[%s279 + $0x1228] sm:$0xff]
      %v870 = vld [vmem:[%s279 + $0x1230] sm:$0xff]
      %v871 = vld [vmem:[%s279 + $0x1238] sm:$0xff]
      %v872 = vld [vmem:[%s279 + $0x1240] sm:$0xff]
      %v873 = vld [vmem:[%s279 + $0x1248] sm:$0xff]
      %v874 = vld [vmem:[%s279 + $0x1250] sm:$0xff]
      %v875 = vld [vmem:[%s279 + $0x1258] sm:$0xff]
      %v876 = vld [vmem:[%s279 + $0x1260] sm:$0xff]
      %v877 = vld [vmem:[%s279 + $0x1268] sm:$0xff]
      %v878 = vld [vmem:[%s279 + $0x1270] sm:$0xff]
      %v879 = vld [vmem:[%s279 + $0x1278] sm:$0xff]
      %v880 = vld [vmem:[%s279 + $0x1280] sm:$0xff]
      %v881 = vld [vmem:[%s279 + $0x1288] sm:$0xff]
      %v882 = vld [vmem:[%s279 + $0x1290] sm:$0xff]
      %v883 = vld [vmem:[%s279 + $0x1298] sm:$0xff]
      %v884 = vld [vmem:[%s279 + $0x12a0] sm:$0xff]
      %v885 = vld [vmem:[%s279 + $0x12a8] sm:$0xff]
      %v886 = vld [vmem:[%s279 + $0x12b0] sm:$0xff]
      %v887 = vld [vmem:[%s279 + $0x12b8] sm:$0xff]
      %v888 = vld [vmem:[%s279 + $0x12c0] sm:$0xff]
      %v889 = vld [vmem:[%s279 + $0x12c8] sm:$0xff]
      %v890 = vld [vmem:[%s279 + $0x12d0] sm:$0xff]
      %v891 = vld [vmem:[%s279 + $0x12d8] sm:$0xff]
      %v892 = vld [vmem:[%s279 + $0x12e0] sm:$0xff]
      %v893 = vld [vmem:[%s279 + $0x12e8] sm:$0xff]
      %v894 = vld [vmem:[%s279 + $0x12f0] sm:$0xff]
      %v895 = vld [vmem:[%s279 + $0x12f8] sm:$0xff]
      %v896 = vld [vmem:[%s279 + $0x1300] sm:$0xff]
      %v897 = vld [vmem:[%s279 + $0x1308] sm:$0xff]
      %v898 = vld [vmem:[%s279 + $0x1310] sm:$0xff]
      %v899 = vld [vmem:[%s279 + $0x1318] sm:$0xff]
      %v900 = vld [vmem:[%s279 + $0x1320] sm:$0xff]
      %v901 = vld [vmem:[%s279 + $0x1328] sm:$0xff]
      %v902 = vld [vmem:[%s279 + $0x1330] sm:$0xff]
      %v903 = vld [vmem:[%s279 + $0x1338] sm:$0xff]
      %v904 = vld [vmem:[%s279 + $0x1340] sm:$0xff]
      %v905 = vld [vmem:[%s279 + $0x1348] sm:$0xff]
      %v906 = vld [vmem:[%s279 + $0x1350] sm:$0xff]
      %v907 = vld [vmem:[%s279 + $0x1358] sm:$0xff]
      %v908 = vld [vmem:[%s279 + $0x1360] sm:$0xff]
      %v909 = vld [vmem:[%s279 + $0x1368] sm:$0xff]
      %v910 = vld [vmem:[%s279 + $0x1370] sm:$0xff]
      %v911 = vld [vmem:[%s279 + $0x1378] sm:$0xff]
      %v912 = vld [vmem:[%s279 + $0x1380] sm:$0xff]
      %v913 = vld [vmem:[%s279 + $0x1388] sm:$0xff]
      %v914 = vld [vmem:[%s279 + $0x1390] sm:$0xff]
      %v915 = vld [vmem:[%s279 + $0x1398] sm:$0xff]
      %v916 = vld [vmem:[%s279 + $0x13a0] sm:$0xff]
      %v917 = vld [vmem:[%s279 + $0x13a8] sm:$0xff]
      %v918 = vld [vmem:[%s279 + $0x13b0] sm:$0xff]
      %v919 = vld [vmem:[%s279 + $0x13b8] sm:$0xff]
      %v920 = vld [vmem:[%s279 + $0x13c0] sm:$0xff]
      %v921 = vld [vmem:[%s279 + $0x13c8] sm:$0xff]
      %v922 = vld [vmem:[%s279 + $0x13d0] sm:$0xff]
      %v923 = vld [vmem:[%s279 + $0x13d8] sm:$0xff]
      %v924 = vld [vmem:[%s279 + $0x13e0] sm:$0xff]
      %v925 = vld [vmem:[%s279 + $0x13e8] sm:$0xff]
      %v926 = vld [vmem:[%s279 + $0x13f0] sm:$0xff]
      %v927 = vld [vmem:[%s279 + $0x13f8] sm:$0xff]
      %v928 = vld [vmem:[%s279 + $0x1400] sm:$0xff]
      %v929 = vld [vmem:[%s279 + $0x1408] sm:$0xff]
      %v930 = vld [vmem:[%s279 + $0x1410] sm:$0xff]
      %v931 = vld [vmem:[%s279 + $0x1418] sm:$0xff]
      %v932 = vld [vmem:[%s279 + $0x1420] sm:$0xff]
      %v933 = vld [vmem:[%s279 + $0x1428] sm:$0xff]
      %v934 = vld [vmem:[%s279 + $0x1430] sm:$0xff]
      %v935 = vld [vmem:[%s279 + $0x1438] sm:$0xff]
      %v936 = vld [vmem:[%s279 + $0x1440] sm:$0xff]
      %v937 = vld [vmem:[%s279 + $0x1448] sm:$0xff]
      %v938 = vld [vmem:[%s279 + $0x1450] sm:$0xff]
      %v939 = vld [vmem:[%s279 + $0x1458] sm:$0xff]
      %v940 = vld [vmem:[%s279 + $0x1460] sm:$0xff]
      %v941 = vld [vmem:[%s279 + $0x1468] sm:$0xff]
      %v942 = vld [vmem:[%s279 + $0x1470] sm:$0xff]
      %v943 = vld [vmem:[%s279 + $0x1478] sm:$0xff]
      %v944 = vld [vmem:[%s279 + $0x1480] sm:$0xff]
      %v945 = vld [vmem:[%s279 + $0x1488] sm:$0xff]
      %v946 = vld [vmem:[%s279 + $0x1490] sm:$0xff]
      %v947 = vld [vmem:[%s279 + $0x1498] sm:$0xff]
      %v948 = vld [vmem:[%s279 + $0x14a0] sm:$0xff]
      %v949 = vld [vmem:[%s279 + $0x14a8] sm:$0xff]
      %v950 = vld [vmem:[%s279 + $0x14b0] sm:$0xff]
      %v951 = vld [vmem:[%s279 + $0x14b8] sm:$0xff]
      %v952 = vld [vmem:[%s279 + $0x14c0] sm:$0xff]
      %v953 = vld [vmem:[%s279 + $0x14c8] sm:$0xff]
      %v954 = vld [vmem:[%s279 + $0x14d0] sm:$0xff]
      %v955 = vld [vmem:[%s279 + $0x14d8] sm:$0xff]
      %v956 = vld [vmem:[%s279 + $0x14e0] sm:$0xff]
      %v957 = vld [vmem:[%s279 + $0x14e8] sm:$0xff]
      %v958 = vld [vmem:[%s279 + $0x14f0] sm:$0xff]
      %v959 = vld [vmem:[%s279 + $0x14f8] sm:$0xff]
      %v960 = vld [vmem:[%s279 + $0x1500] sm:$0xff]
      %v961 = vld [vmem:[%s279 + $0x1508] sm:$0xff]
      %v962 = vld [vmem:[%s279 + $0x1510] sm:$0xff]
      %v963 = vld [vmem:[%s279 + $0x1518] sm:$0xff]
      %v964 = vld [vmem:[%s279 + $0x1520] sm:$0xff]
      %v965 = vld [vmem:[%s279 + $0x1528] sm:$0xff]
      %v966 = vld [vmem:[%s279 + $0x1530] sm:$0xff]
      %v967 = vld [vmem:[%s279 + $0x1538] sm:$0xff]
      %v968 = vld [vmem:[%s279 + $0x1540] sm:$0xff]
      %v969 = vld [vmem:[%s279 + $0x1548] sm:$0xff]
      %v970 = vld [vmem:[%s279 + $0x1550] sm:$0xff]
      %v971 = vld [vmem:[%s279 + $0x1558] sm:$0xff]
      %v972 = vld [vmem:[%s279 + $0x1560] sm:$0xff]
      %v973 = vld [vmem:[%s279 + $0x1568] sm:$0xff]
      %v974 = vld [vmem:[%s279 + $0x1570] sm:$0xff]
      %v975 = vld [vmem:[%s279 + $0x1578] sm:$0xff]
      %v976 = vld [vmem:[%s279 + $0x1580] sm:$0xff]
      %v977 = vld [vmem:[%s279 + $0x1588] sm:$0xff]
      %v978 = vld [vmem:[%s279 + $0x1590] sm:$0xff]
      %v979 = vld [vmem:[%s279 + $0x1598] sm:$0xff]
      %v980 = vld [vmem:[%s279 + $0x15a0] sm:$0xff]
      %v981 = vld [vmem:[%s279 + $0x15a8] sm:$0xff]
      %v982 = vld [vmem:[%s279 + $0x15b0] sm:$0xff]
      %v983 = vld [vmem:[%s279 + $0x15b8] sm:$0xff]
      %v984 = vld [vmem:[%s279 + $0x15c0] sm:$0xff]
      %v985 = vld [vmem:[%s279 + $0x15c8] sm:$0xff]
      %v986 = vld [vmem:[%s279 + $0x15d0] sm:$0xff]
      %v987 = vld [vmem:[%s279 + $0x15d8] sm:$0xff]
      %v988 = vld [vmem:[%s279 + $0x15e0] sm:$0xff]
      %v989 = vld [vmem:[%s279 + $0x15e8] sm:$0xff]
      %v990 = vld [vmem:[%s279 + $0x15f0] sm:$0xff]
      %v991 = vld [vmem:[%s279 + $0x15f8] sm:$0xff]
      %v992 = vpack.c.bf16 %v299, %v288
      %v993 = vpack.c.bf16 %v300, %v289
      %v994 = vpack.c.bf16 %v301, %v290
      %v995 = vpack.c.bf16 %v302, %v291
      %v996 = vpack.c.bf16 %v303, %v292
      %v997 = vpack.c.bf16 %v304, %v293
      %v998 = vpack.c.bf16 %v305, %v294
      %v999 = vpack.c.bf16 %v306, %v295
      %v1000 = vpack.c.bf16 %v307, %v296
      %v1001 = vpack.c.bf16 %v308, %v297
      %v1002 = vpack.c.bf16 %v309, %v298
      %v1003 = vpack.c.bf16 %v321, %v310
      %v1004 = vpack.c.bf16 %v322, %v311
      %v1005 = vpack.c.bf16 %v323, %v312
      %v1006 = vpack.c.bf16 %v324, %v313
      %v1007 = vpack.c.bf16 %v325, %v314
      %v1008 = vpack.c.bf16 %v326, %v315
      %v1009 = vpack.c.bf16 %v327, %v316
      %v1010 = vpack.c.bf16 %v328, %v317
      %v1011 = vpack.c.bf16 %v329, %v318
      %v1012 = vpack.c.bf16 %v330, %v319
      %v1013 = vpack.c.bf16 %v331, %v320
      %v1014 = vpack.c.bf16 %v343, %v332
      %v1015 = vpack.c.bf16 %v344, %v333
      %v1016 = vpack.c.bf16 %v345, %v334
      %v1017 = vpack.c.bf16 %v346, %v335
      %v1018 = vpack.c.bf16 %v347, %v336
      %v1019 = vpack.c.bf16 %v348, %v337
      %v1020 = vpack.c.bf16 %v349, %v338
      %v1021 = vpack.c.bf16 %v350, %v339
      %v1022 = vpack.c.bf16 %v351, %v340
      %v1023 = vpack.c.bf16 %v352, %v341
      %v1024 = vpack.c.bf16 %v353, %v342
      %v1025 = vpack.c.bf16 %v365, %v354
      %v1026 = vpack.c.bf16 %v366, %v355
      %v1027 = vpack.c.bf16 %v367, %v356
      %v1028 = vpack.c.bf16 %v368, %v357
      %v1029 = vpack.c.bf16 %v369, %v358
      %v1030 = vpack.c.bf16 %v370, %v359
      %v1031 = vpack.c.bf16 %v371, %v360
      %v1032 = vpack.c.bf16 %v372, %v361
      %v1033 = vpack.c.bf16 %v373, %v362
      %v1034 = vpack.c.bf16 %v374, %v363
      %v1035 = vpack.c.bf16 %v375, %v364
      %v1036 = vpack.c.bf16 %v387, %v376
      %v1037 = vpack.c.bf16 %v388, %v377
      %v1038 = vpack.c.bf16 %v389, %v378
      %v1039 = vpack.c.bf16 %v390, %v379
      %v1040 = vpack.c.bf16 %v391, %v380
      %v1041 = vpack.c.bf16 %v392, %v381
      %v1042 = vpack.c.bf16 %v393, %v382
      %v1043 = vpack.c.bf16 %v394, %v383
      %v1044 = vpack.c.bf16 %v395, %v384
      %v1045 = vpack.c.bf16 %v396, %v385
      %v1046 = vpack.c.bf16 %v397, %v386
      %v1047 = vpack.c.bf16 %v409, %v398
      %v1048 = vpack.c.bf16 %v410, %v399
      %v1049 = vpack.c.bf16 %v411, %v400
      %v1050 = vpack.c.bf16 %v412, %v401
      %v1051 = vpack.c.bf16 %v413, %v402
      %v1052 = vpack.c.bf16 %v414, %v403
      %v1053 = vpack.c.bf16 %v415, %v404
      %v1054 = vpack.c.bf16 %v416, %v405
      %v1055 = vpack.c.bf16 %v417, %v406
      %v1056 = vpack.c.bf16 %v418, %v407
      %v1057 = vpack.c.bf16 %v419, %v408
      %v1058 = vpack.c.bf16 %v431, %v420
      %v1059 = vpack.c.bf16 %v432, %v421
      %v1060 = vpack.c.bf16 %v433, %v422
      %v1061 = vpack.c.bf16 %v434, %v423
      %v1062 = vpack.c.bf16 %v435, %v424
      %v1063 = vpack.c.bf16 %v436, %v425
      %v1064 = vpack.c.bf16 %v437, %v426
      %v1065 = vpack.c.bf16 %v438, %v427
      %v1066 = vpack.c.bf16 %v439, %v428
      %v1067 = vpack.c.bf16 %v440, %v429
      %v1068 = vpack.c.bf16 %v441, %v430
      %v1069 = vpack.c.bf16 %v453, %v442
      %v1070 = vpack.c.bf16 %v454, %v443
      %v1071 = vpack.c.bf16 %v455, %v444
      %v1072 = vpack.c.bf16 %v456, %v445
      %v1073 = vpack.c.bf16 %v457, %v446
      %v1074 = vpack.c.bf16 %v458, %v447
      %v1075 = vpack.c.bf16 %v459, %v448
      %v1076 = vpack.c.bf16 %v460, %v449
      %v1077 = vpack.c.bf16 %v461, %v450
      %v1078 = vpack.c.bf16 %v462, %v451
      %v1079 = vpack.c.bf16 %v463, %v452
      %v1080 = vpack.c.bf16 %v475, %v464
      %v1081 = vpack.c.bf16 %v476, %v465
      %v1082 = vpack.c.bf16 %v477, %v466
      %v1083 = vpack.c.bf16 %v478, %v467
      %v1084 = vpack.c.bf16 %v479, %v468
      %v1085 = vpack.c.bf16 %v480, %v469
      %v1086 = vpack.c.bf16 %v481, %v470
      %v1087 = vpack.c.bf16 %v482, %v471
      %v1088 = vpack.c.bf16 %v483, %v472
      %v1089 = vpack.c.bf16 %v484, %v473
      %v1090 = vpack.c.bf16 %v485, %v474
      %v1091 = vpack.c.bf16 %v497, %v486
      %v1092 = vpack.c.bf16 %v498, %v487
      %v1093 = vpack.c.bf16 %v499, %v488
      %v1094 = vpack.c.bf16 %v500, %v489
      %v1095 = vpack.c.bf16 %v501, %v490
      %v1096 = vpack.c.bf16 %v502, %v491
      %v1097 = vpack.c.bf16 %v503, %v492
      %v1098 = vpack.c.bf16 %v504, %v493
      %v1099 = vpack.c.bf16 %v505, %v494
      %v1100 = vpack.c.bf16 %v506, %v495
      %v1101 = vpack.c.bf16 %v507, %v496
      %v1102 = vpack.c.bf16 %v519, %v508
      %v1103 = vpack.c.bf16 %v520, %v509
      %v1104 = vpack.c.bf16 %v521, %v510
      %v1105 = vpack.c.bf16 %v522, %v511
      %v1106 = vpack.c.bf16 %v523, %v512
      %v1107 = vpack.c.bf16 %v524, %v513
      %v1108 = vpack.c.bf16 %v525, %v514
      %v1109 = vpack.c.bf16 %v526, %v515
      %v1110 = vpack.c.bf16 %v527, %v516
      %v1111 = vpack.c.bf16 %v528, %v517
      %v1112 = vpack.c.bf16 %v529, %v518
      %v1113 = vpack.c.bf16 %v541, %v530
      %v1114 = vpack.c.bf16 %v542, %v531
      %v1115 = vpack.c.bf16 %v543, %v532
      %v1116 = vpack.c.bf16 %v544, %v533
      %v1117 = vpack.c.bf16 %v545, %v534
      %v1118 = vpack.c.bf16 %v546, %v535
      %v1119 = vpack.c.bf16 %v547, %v536
      %v1120 = vpack.c.bf16 %v548, %v537
      %v1121 = vpack.c.bf16 %v549, %v538
      %v1122 = vpack.c.bf16 %v550, %v539
      %v1123 = vpack.c.bf16 %v551, %v540
      %v1124 = vpack.c.bf16 %v563, %v552
      %v1125 = vpack.c.bf16 %v564, %v553
      %v1126 = vpack.c.bf16 %v565, %v554
      %v1127 = vpack.c.bf16 %v566, %v555
      %v1128 = vpack.c.bf16 %v567, %v556
      %v1129 = vpack.c.bf16 %v568, %v557
      %v1130 = vpack.c.bf16 %v569, %v558
      %v1131 = vpack.c.bf16 %v570, %v559
      %v1132 = vpack.c.bf16 %v571, %v560
      %v1133 = vpack.c.bf16 %v572, %v561
      %v1134 = vpack.c.bf16 %v573, %v562
      %v1135 = vpack.c.bf16 %v585, %v574
      %v1136 = vpack.c.bf16 %v586, %v575
      %v1137 = vpack.c.bf16 %v587, %v576
      %v1138 = vpack.c.bf16 %v588, %v577
      %v1139 = vpack.c.bf16 %v589, %v578
      %v1140 = vpack.c.bf16 %v590, %v579
      %v1141 = vpack.c.bf16 %v591, %v580
      %v1142 = vpack.c.bf16 %v592, %v581
      %v1143 = vpack.c.bf16 %v593, %v582
      %v1144 = vpack.c.bf16 %v594, %v583
      %v1145 = vpack.c.bf16 %v595, %v584
      %v1146 = vpack.c.bf16 %v607, %v596
      %v1147 = vpack.c.bf16 %v608, %v597
      %v1148 = vpack.c.bf16 %v609, %v598
      %v1149 = vpack.c.bf16 %v610, %v599
      %v1150 = vpack.c.bf16 %v611, %v600
      %v1151 = vpack.c.bf16 %v612, %v601
      %v1152 = vpack.c.bf16 %v613, %v602
      %v1153 = vpack.c.bf16 %v614, %v603
      %v1154 = vpack.c.bf16 %v615, %v604
      %v1155 = vpack.c.bf16 %v616, %v605
      %v1156 = vpack.c.bf16 %v617, %v606
      %v1157 = vpack.c.bf16 %v629, %v618
      %v1158 = vpack.c.bf16 %v630, %v619
      %v1159 = vpack.c.bf16 %v631, %v620
      %v1160 = vpack.c.bf16 %v632, %v621
      %v1161 = vpack.c.bf16 %v633, %v622
      %v1162 = vpack.c.bf16 %v634, %v623
      %v1163 = vpack.c.bf16 %v635, %v624
      %v1164 = vpack.c.bf16 %v636, %v625
      %v1165 = vpack.c.bf16 %v637, %v626
      %v1166 = vpack.c.bf16 %v638, %v627
      %v1167 = vpack.c.bf16 %v639, %v628
      %v1168 = vpack.c.bf16 %v651, %v640
      %v1169 = vpack.c.bf16 %v652, %v641
      %v1170 = vpack.c.bf16 %v653, %v642
      %v1171 = vpack.c.bf16 %v654, %v643
      %v1172 = vpack.c.bf16 %v655, %v644
      %v1173 = vpack.c.bf16 %v656, %v645
      %v1174 = vpack.c.bf16 %v657, %v646
      %v1175 = vpack.c.bf16 %v658, %v647
      %v1176 = vpack.c.bf16 %v659, %v648
      %v1177 = vpack.c.bf16 %v660, %v649
      %v1178 = vpack.c.bf16 %v661, %v650
      %v1179 = vpack.c.bf16 %v673, %v662
      %v1180 = vpack.c.bf16 %v674, %v663
      %v1181 = vpack.c.bf16 %v675, %v664
      %v1182 = vpack.c.bf16 %v676, %v665
      %v1183 = vpack.c.bf16 %v677, %v666
      %v1184 = vpack.c.bf16 %v678, %v667
      %v1185 = vpack.c.bf16 %v679, %v668
      %v1186 = vpack.c.bf16 %v680, %v669
      %v1187 = vpack.c.bf16 %v681, %v670
      %v1188 = vpack.c.bf16 %v682, %v671
      %v1189 = vpack.c.bf16 %v683, %v672
      %v1190 = vpack.c.bf16 %v695, %v684
      %v1191 = vpack.c.bf16 %v696, %v685
      %v1192 = vpack.c.bf16 %v697, %v686
      %v1193 = vpack.c.bf16 %v698, %v687
      %v1194 = vpack.c.bf16 %v699, %v688
      %v1195 = vpack.c.bf16 %v700, %v689
      %v1196 = vpack.c.bf16 %v701, %v690
      %v1197 = vpack.c.bf16 %v702, %v691
      %v1198 = vpack.c.bf16 %v703, %v692
      %v1199 = vpack.c.bf16 %v704, %v693
      %v1200 = vpack.c.bf16 %v705, %v694
      %v1201 = vpack.c.bf16 %v717, %v706
      %v1202 = vpack.c.bf16 %v718, %v707
      %v1203 = vpack.c.bf16 %v719, %v708
      %v1204 = vpack.c.bf16 %v720, %v709
      %v1205 = vpack.c.bf16 %v721, %v710
      %v1206 = vpack.c.bf16 %v722, %v711
      %v1207 = vpack.c.bf16 %v723, %v712
      %v1208 = vpack.c.bf16 %v724, %v713
      %v1209 = vpack.c.bf16 %v725, %v714
      %v1210 = vpack.c.bf16 %v726, %v715
      %v1211 = vpack.c.bf16 %v727, %v716
      %v1212 = vpack.c.bf16 %v739, %v728
      %v1213 = vpack.c.bf16 %v740, %v729
      %v1214 = vpack.c.bf16 %v741, %v730
      %v1215 = vpack.c.bf16 %v742, %v731
      %v1216 = vpack.c.bf16 %v743, %v732
      %v1217 = vpack.c.bf16 %v744, %v733
      %v1218 = vpack.c.bf16 %v745, %v734
      %v1219 = vpack.c.bf16 %v746, %v735
      %v1220 = vpack.c.bf16 %v747, %v736
      %v1221 = vpack.c.bf16 %v748, %v737
      %v1222 = vpack.c.bf16 %v749, %v738
      %v1223 = vpack.c.bf16 %v761, %v750
      %v1224 = vpack.c.bf16 %v762, %v751
      %v1225 = vpack.c.bf16 %v763, %v752
      %v1226 = vpack.c.bf16 %v764, %v753
      %v1227 = vpack.c.bf16 %v765, %v754
      %v1228 = vpack.c.bf16 %v766, %v755
      %v1229 = vpack.c.bf16 %v767, %v756
      %v1230 = vpack.c.bf16 %v768, %v757
      %v1231 = vpack.c.bf16 %v769, %v758
      %v1232 = vpack.c.bf16 %v770, %v759
      %v1233 = vpack.c.bf16 %v771, %v760
      %v1234 = vpack.c.bf16 %v783, %v772
      %v1235 = vpack.c.bf16 %v784, %v773
      %v1236 = vpack.c.bf16 %v785, %v774
      %v1237 = vpack.c.bf16 %v786, %v775
      %v1238 = vpack.c.bf16 %v787, %v776
      %v1239 = vpack.c.bf16 %v788, %v777
      %v1240 = vpack.c.bf16 %v789, %v778
      %v1241 = vpack.c.bf16 %v790, %v779
      %v1242 = vpack.c.bf16 %v791, %v780
      %v1243 = vpack.c.bf16 %v792, %v781
      %v1244 = vpack.c.bf16 %v793, %v782
      %v1245 = vpack.c.bf16 %v805, %v794
      %v1246 = vpack.c.bf16 %v806, %v795
      %v1247 = vpack.c.bf16 %v807, %v796
      %v1248 = vpack.c.bf16 %v808, %v797
      %v1249 = vpack.c.bf16 %v809, %v798
      %v1250 = vpack.c.bf16 %v810, %v799
      %v1251 = vpack.c.bf16 %v811, %v800
      %v1252 = vpack.c.bf16 %v812, %v801
      %v1253 = vpack.c.bf16 %v813, %v802
      %v1254 = vpack.c.bf16 %v814, %v803
      %v1255 = vpack.c.bf16 %v815, %v804
      %v1256 = vpack.c.bf16 %v827, %v816
      %v1257 = vpack.c.bf16 %v828, %v817
      %v1258 = vpack.c.bf16 %v829, %v818
      %v1259 = vpack.c.bf16 %v830, %v819
      %v1260 = vpack.c.bf16 %v831, %v820
      %v1261 = vpack.c.bf16 %v832, %v821
      %v1262 = vpack.c.bf16 %v833, %v822
      %v1263 = vpack.c.bf16 %v834, %v823
      %v1264 = vpack.c.bf16 %v835, %v824
      %v1265 = vpack.c.bf16 %v836, %v825
      %v1266 = vpack.c.bf16 %v837, %v826
      %v1267 = vpack.c.bf16 %v849, %v838
      %v1268 = vpack.c.bf16 %v850, %v839
      %v1269 = vpack.c.bf16 %v851, %v840
      %v1270 = vpack.c.bf16 %v852, %v841
      %v1271 = vpack.c.bf16 %v853, %v842
      %v1272 = vpack.c.bf16 %v854, %v843
      %v1273 = vpack.c.bf16 %v855, %v844
      %v1274 = vpack.c.bf16 %v856, %v845
      %v1275 = vpack.c.bf16 %v857, %v846
      %v1276 = vpack.c.bf16 %v858, %v847
      %v1277 = vpack.c.bf16 %v859, %v848
      %v1278 = vpack.c.bf16 %v871, %v860
      %v1279 = vpack.c.bf16 %v872, %v861
      %v1280 = vpack.c.bf16 %v873, %v862
      %v1281 = vpack.c.bf16 %v874, %v863
      %v1282 = vpack.c.bf16 %v875, %v864
      %v1283 = vpack.c.bf16 %v876, %v865
      %v1284 = vpack.c.bf16 %v877, %v866
      %v1285 = vpack.c.bf16 %v878, %v867
      %v1286 = vpack.c.bf16 %v879, %v868
      %v1287 = vpack.c.bf16 %v880, %v869
      %v1288 = vpack.c.bf16 %v881, %v870
      %v1289 = vpack.c.bf16 %v893, %v882
      %v1290 = vpack.c.bf16 %v894, %v883
      %v1291 = vpack.c.bf16 %v895, %v884
      %v1292 = vpack.c.bf16 %v896, %v885
      %v1293 = vpack.c.bf16 %v897, %v886
      %v1294 = vpack.c.bf16 %v898, %v887
      %v1295 = vpack.c.bf16 %v899, %v888
      %v1296 = vpack.c.bf16 %v900, %v889
      %v1297 = vpack.c.bf16 %v901, %v890
      %v1298 = vpack.c.bf16 %v902, %v891
      %v1299 = vpack.c.bf16 %v903, %v892
      %v1300 = vpack.c.bf16 %v915, %v904
      %v1301 = vpack.c.bf16 %v916, %v905
      %v1302 = vpack.c.bf16 %v917, %v906
      %v1303 = vpack.c.bf16 %v918, %v907
      %v1304 = vpack.c.bf16 %v919, %v908
      %v1305 = vpack.c.bf16 %v920, %v909
      %v1306 = vpack.c.bf16 %v921, %v910
      %v1307 = vpack.c.bf16 %v922, %v911
      %v1308 = vpack.c.bf16 %v923, %v912
      %v1309 = vpack.c.bf16 %v924, %v913
      %v1310 = vpack.c.bf16 %v925, %v914
      %v1311 = vpack.c.bf16 %v937, %v926
      %v1312 = vpack.c.bf16 %v938, %v927
      %v1313 = vpack.c.bf16 %v939, %v928
      %v1314 = vpack.c.bf16 %v940, %v929
      %v1315 = vpack.c.bf16 %v941, %v930
      %v1316 = vpack.c.bf16 %v942, %v931
      %v1317 = vpack.c.bf16 %v943, %v932
      %v1318 = vpack.c.bf16 %v944, %v933
      %v1319 = vpack.c.bf16 %v945, %v934
      %v1320 = vpack.c.bf16 %v946, %v935
      %v1321 = vpack.c.bf16 %v947, %v936
      %v1322 = vpack.c.bf16 %v959, %v948
      %v1323 = vpack.c.bf16 %v960, %v949
      %v1324 = vpack.c.bf16 %v961, %v950
      %v1325 = vpack.c.bf16 %v962, %v951
      %v1326 = vpack.c.bf16 %v963, %v952
      %v1327 = vpack.c.bf16 %v964, %v953
      %v1328 = vpack.c.bf16 %v965, %v954
      %v1329 = vpack.c.bf16 %v966, %v955
      %v1330 = vpack.c.bf16 %v967, %v956
      %v1331 = vpack.c.bf16 %v968, %v957
      %v1332 = vpack.c.bf16 %v969, %v958
      %v1333 = vpack.c.bf16 %v981, %v970
      %v1334 = vpack.c.bf16 %v982, %v971
      %v1335 = vpack.c.bf16 %v983, %v972
      %v1336 = vpack.c.bf16 %v984, %v973
      %v1337 = vpack.c.bf16 %v985, %v974
      %v1338 = vpack.c.bf16 %v986, %v975
      %v1339 = vpack.c.bf16 %v987, %v976
      %v1340 = vpack.c.bf16 %v988, %v977
      %v1341 = vpack.c.bf16 %v989, %v978
      %v1342 = vpack.c.bf16 %v990, %v979
      %v1343 = vpack.c.bf16 %v991, %v980
      %v1344 = vld [vmem:[%s1] sm:$0xff]
      %v1345 = vld [vmem:[%s1 + $0x8] sm:$0xff]
      %v1346 = vld [vmem:[%s1 + $0x10] sm:$0xff]
      %v1347 = vld [vmem:[%s1 + $0x18] sm:$0xff]
      %v1348 = vld [vmem:[%s1 + $0x20] sm:$0xff]
      %v1349 = vld [vmem:[%s1 + $0x28] sm:$0xff]
      %v1350 = vld [vmem:[%s1 + $0x30] sm:$0xff]
      %v1351 = vld [vmem:[%s1 + $0x38] sm:$0xff]
      %v1352 = vld [vmem:[%s1 + $0x40] sm:$0xff]
      %v1353 = vld [vmem:[%s1 + $0x48] sm:$0xff]
      %v1354 = vld [vmem:[%s1 + $0x50] sm:$0xff]
      %v1355 = vld [vmem:[%s1 + $0x58] sm:$0xff]
      %v1356 = vld [vmem:[%s1 + $0x60] sm:$0xff]
      %v1357 = vld [vmem:[%s1 + $0x68] sm:$0xff]
      %v1358 = vld [vmem:[%s1 + $0x70] sm:$0xff]
      %v1359 = vld [vmem:[%s1 + $0x78] sm:$0xff]
      %v1360 = vld [vmem:[%s1 + $0x80] sm:$0xff]
      %v1361 = vld [vmem:[%s1 + $0x88] sm:$0xff]
      %v1362 = vld [vmem:[%s1 + $0x90] sm:$0xff]
      %v1363 = vld [vmem:[%s1 + $0x98] sm:$0xff]
      %v1364 = vld [vmem:[%s1 + $0xa0] sm:$0xff]
      %v1365 = vld [vmem:[%s1 + $0xa8] sm:$0xff]
      %v1366 = vld [vmem:[%s1 + $0xb0] sm:$0xff]
      %v1367 = vld [vmem:[%s1 + $0xb8] sm:$0xff]
      %v1368 = vld [vmem:[%s1 + $0xc0] sm:$0xff]
      %v1369 = vld [vmem:[%s1 + $0xc8] sm:$0xff]
      %v1370 = vld [vmem:[%s1 + $0xd0] sm:$0xff]
      %v1371 = vld [vmem:[%s1 + $0xd8] sm:$0xff]
      %v1372 = vld [vmem:[%s1 + $0xe0] sm:$0xff]
      %v1373 = vld [vmem:[%s1 + $0xe8] sm:$0xff]
      %v1374 = vld [vmem:[%s1 + $0xf0] sm:$0xff]
      %v1375 = vld [vmem:[%s1 + $0xf8] sm:$0xff]
      %v1376 = vld [vmem:[%s1 + $0x100] sm:$0xff]
      %v1377 = vld [vmem:[%s1 + $0x108] sm:$0xff]
      %v1378 = vld [vmem:[%s1 + $0x110] sm:$0xff]
      %v1379 = vld [vmem:[%s1 + $0x118] sm:$0xff]
      %v1380 = vld [vmem:[%s1 + $0x120] sm:$0xff]
      %v1381 = vld [vmem:[%s1 + $0x128] sm:$0xff]
      %v1382 = vld [vmem:[%s1 + $0x130] sm:$0xff]
      %v1383 = vld [vmem:[%s1 + $0x138] sm:$0xff]
      %v1384 = vld [vmem:[%s1 + $0x140] sm:$0xff]
      %v1385 = vld [vmem:[%s1 + $0x148] sm:$0xff]
      %v1386 = vld [vmem:[%s1 + $0x150] sm:$0xff]
      %v1387 = vld [vmem:[%s1 + $0x158] sm:$0xff]
      %v1388 = vld [vmem:[%s1 + $0x160] sm:$0xff]
      %v1389 = vld [vmem:[%s1 + $0x168] sm:$0xff]
      %v1390 = vld [vmem:[%s1 + $0x170] sm:$0xff]
      %v1391 = vld [vmem:[%s1 + $0x178] sm:$0xff]
      %v1392 = vld [vmem:[%s1 + $0x180] sm:$0xff]
      %v1393 = vld [vmem:[%s1 + $0x188] sm:$0xff]
      %v1394 = vld [vmem:[%s1 + $0x190] sm:$0xff]
      %v1395 = vld [vmem:[%s1 + $0x198] sm:$0xff]
      %v1396 = vld [vmem:[%s1 + $0x1a0] sm:$0xff]
      %v1397 = vld [vmem:[%s1 + $0x1a8] sm:$0xff]
      %v1398 = vld [vmem:[%s1 + $0x1b0] sm:$0xff]
      %v1399 = vld [vmem:[%s1 + $0x1b8] sm:$0xff]
      %v1400 = vld [vmem:[%s1 + $0x1c0] sm:$0xff]
      %v1401 = vld [vmem:[%s1 + $0x1c8] sm:$0xff]
      %v1402 = vld [vmem:[%s1 + $0x1d0] sm:$0xff]
      %v1403 = vld [vmem:[%s1 + $0x1d8] sm:$0xff]
      %v1404 = vld [vmem:[%s1 + $0x1e0] sm:$0xff]
      %v1405 = vld [vmem:[%s1 + $0x1e8] sm:$0xff]
      %v1406 = vld [vmem:[%s1 + $0x1f0] sm:$0xff]
      %v1407 = vld [vmem:[%s1 + $0x1f8] sm:$0xff]
      %v1408 = vld [vmem:[%s1 + $0x200] sm:$0xff]
      %v1409 = vld [vmem:[%s1 + $0x208] sm:$0xff]
      %v1410 = vld [vmem:[%s1 + $0x210] sm:$0xff]
      %v1411 = vld [vmem:[%s1 + $0x218] sm:$0xff]
      %v1412 = vld [vmem:[%s1 + $0x220] sm:$0xff]
      %v1413 = vld [vmem:[%s1 + $0x228] sm:$0xff]
      %v1414 = vld [vmem:[%s1 + $0x230] sm:$0xff]
      %v1415 = vld [vmem:[%s1 + $0x238] sm:$0xff]
      %v1416 = vld [vmem:[%s1 + $0x240] sm:$0xff]
      %v1417 = vld [vmem:[%s1 + $0x248] sm:$0xff]
      %v1418 = vld [vmem:[%s1 + $0x250] sm:$0xff]
      %v1419 = vld [vmem:[%s1 + $0x258] sm:$0xff]
      %v1420 = vld [vmem:[%s1 + $0x260] sm:$0xff]
      %v1421 = vld [vmem:[%s1 + $0x268] sm:$0xff]
      %v1422 = vld [vmem:[%s1 + $0x270] sm:$0xff]
      %v1423 = vld [vmem:[%s1 + $0x278] sm:$0xff]
      %v1424 = vld [vmem:[%s1 + $0x280] sm:$0xff]
      %v1425 = vld [vmem:[%s1 + $0x288] sm:$0xff]
      %v1426 = vld [vmem:[%s1 + $0x290] sm:$0xff]
      %v1427 = vld [vmem:[%s1 + $0x298] sm:$0xff]
      %v1428 = vld [vmem:[%s1 + $0x2a0] sm:$0xff]
      %v1429 = vld [vmem:[%s1 + $0x2a8] sm:$0xff]
      %v1430 = vld [vmem:[%s1 + $0x2b0] sm:$0xff]
      %v1431 = vld [vmem:[%s1 + $0x2b8] sm:$0xff]
      %v1432 = vld [vmem:[%s1 + $0x2c0] sm:$0xff]
      %v1433 = vld [vmem:[%s1 + $0x2c8] sm:$0xff]
      %v1434 = vld [vmem:[%s1 + $0x2d0] sm:$0xff]
      %v1435 = vld [vmem:[%s1 + $0x2d8] sm:$0xff]
      %v1436 = vld [vmem:[%s1 + $0x2e0] sm:$0xff]
      %v1437 = vld [vmem:[%s1 + $0x2e8] sm:$0xff]
      %v1438 = vld [vmem:[%s1 + $0x2f0] sm:$0xff]
      %v1439 = vld [vmem:[%s1 + $0x2f8] sm:$0xff]
      %v1440 = vld [vmem:[%s1 + $0x300] sm:$0xff]
      %v1441 = vld [vmem:[%s1 + $0x308] sm:$0xff]
      %v1442 = vld [vmem:[%s1 + $0x310] sm:$0xff]
      %v1443 = vld [vmem:[%s1 + $0x318] sm:$0xff]
      %v1444 = vld [vmem:[%s1 + $0x320] sm:$0xff]
      %v1445 = vld [vmem:[%s1 + $0x328] sm:$0xff]
      %v1446 = vld [vmem:[%s1 + $0x330] sm:$0xff]
      %v1447 = vld [vmem:[%s1 + $0x338] sm:$0xff]
      %v1448 = vld [vmem:[%s1 + $0x340] sm:$0xff]
      %v1449 = vld [vmem:[%s1 + $0x348] sm:$0xff]
      %v1450 = vld [vmem:[%s1 + $0x350] sm:$0xff]
      %v1451 = vld [vmem:[%s1 + $0x358] sm:$0xff]
      %v1452 = vld [vmem:[%s1 + $0x360] sm:$0xff]
      %v1453 = vld [vmem:[%s1 + $0x368] sm:$0xff]
      %v1454 = vld [vmem:[%s1 + $0x370] sm:$0xff]
      %v1455 = vld [vmem:[%s1 + $0x378] sm:$0xff]
      %v1456 = vld [vmem:[%s1 + $0x380] sm:$0xff]
      %v1457 = vld [vmem:[%s1 + $0x388] sm:$0xff]
      %v1458 = vld [vmem:[%s1 + $0x390] sm:$0xff]
      %v1459 = vld [vmem:[%s1 + $0x398] sm:$0xff]
      %v1460 = vld [vmem:[%s1 + $0x3a0] sm:$0xff]
      %v1461 = vld [vmem:[%s1 + $0x3a8] sm:$0xff]
      %v1462 = vld [vmem:[%s1 + $0x3b0] sm:$0xff]
      %v1463 = vld [vmem:[%s1 + $0x3b8] sm:$0xff]
      %v1464 = vld [vmem:[%s1 + $0x3c0] sm:$0xff]
      %v1465 = vld [vmem:[%s1 + $0x3c8] sm:$0xff]
      %v1466 = vld [vmem:[%s1 + $0x3d0] sm:$0xff]
      %v1467 = vld [vmem:[%s1 + $0x3d8] sm:$0xff]
      %v1468 = vld [vmem:[%s1 + $0x3e0] sm:$0xff]
      %v1469 = vld [vmem:[%s1 + $0x3e8] sm:$0xff]
      %v1470 = vld [vmem:[%s1 + $0x3f0] sm:$0xff]
      %v1471 = vld [vmem:[%s1 + $0x3f8] sm:$0xff]
      %v1472 = vld [vmem:[%s1 + $0x400] sm:$0xff]
      %v1473 = vld [vmem:[%s1 + $0x408] sm:$0xff]
      %v1474 = vld [vmem:[%s1 + $0x410] sm:$0xff]
      %v1475 = vld [vmem:[%s1 + $0x418] sm:$0xff]
      %v1476 = vld [vmem:[%s1 + $0x420] sm:$0xff]
      %v1477 = vld [vmem:[%s1 + $0x428] sm:$0xff]
      %v1478 = vld [vmem:[%s1 + $0x430] sm:$0xff]
      %v1479 = vld [vmem:[%s1 + $0x438] sm:$0xff]
      %v1480 = vld [vmem:[%s1 + $0x440] sm:$0xff]
      %v1481 = vld [vmem:[%s1 + $0x448] sm:$0xff]
      %v1482 = vld [vmem:[%s1 + $0x450] sm:$0xff]
      %v1483 = vld [vmem:[%s1 + $0x458] sm:$0xff]
      %v1484 = vld [vmem:[%s1 + $0x460] sm:$0xff]
      %v1485 = vld [vmem:[%s1 + $0x468] sm:$0xff]
      %v1486 = vld [vmem:[%s1 + $0x470] sm:$0xff]
      %v1487 = vld [vmem:[%s1 + $0x478] sm:$0xff]
      %v1488 = vld [vmem:[%s1 + $0x480] sm:$0xff]
      %v1489 = vld [vmem:[%s1 + $0x488] sm:$0xff]
      %v1490 = vld [vmem:[%s1 + $0x490] sm:$0xff]
      %v1491 = vld [vmem:[%s1 + $0x498] sm:$0xff]
      %v1492 = vld [vmem:[%s1 + $0x4a0] sm:$0xff]
      %v1493 = vld [vmem:[%s1 + $0x4a8] sm:$0xff]
      %v1494 = vld [vmem:[%s1 + $0x4b0] sm:$0xff]
      %v1495 = vld [vmem:[%s1 + $0x4b8] sm:$0xff]
      %v1496 = vld [vmem:[%s1 + $0x4c0] sm:$0xff]
      %v1497 = vld [vmem:[%s1 + $0x4c8] sm:$0xff]
      %v1498 = vld [vmem:[%s1 + $0x4d0] sm:$0xff]
      %v1499 = vld [vmem:[%s1 + $0x4d8] sm:$0xff]
      %v1500 = vld [vmem:[%s1 + $0x4e0] sm:$0xff]
      %v1501 = vld [vmem:[%s1 + $0x4e8] sm:$0xff]
      %v1502 = vld [vmem:[%s1 + $0x4f0] sm:$0xff]
      %v1503 = vld [vmem:[%s1 + $0x4f8] sm:$0xff]
      %v1504 = vld [vmem:[%s1 + $0x500] sm:$0xff]
      %v1505 = vld [vmem:[%s1 + $0x508] sm:$0xff]
      %v1506 = vld [vmem:[%s1 + $0x510] sm:$0xff]
      %v1507 = vld [vmem:[%s1 + $0x518] sm:$0xff]
      %v1508 = vld [vmem:[%s1 + $0x520] sm:$0xff]
      %v1509 = vld [vmem:[%s2] sm:$0x3]
      %v1511 = vlaneseq
      %v1512 = vshrl.u32 %v1511, 7
      %v1513 = vsub.s32 0, %v1512
      %v1514 = vrot.slane %v1509, %v1513
      %v1515 = vlaneseq
      %v1516 = vshrl.u32 %v1515, 7
      %v1517 = vsub.s32 1, %v1516
      %v1518 = vrot.slane %v1509, %v1517
      %v1686 = vunpack.c.l.b16 %v1344
      %v1687 = vunpack.c.h.b16 %v1344
      %v1688 = vunpack.c.l.b16 %v1345
      %v1689 = vunpack.c.h.b16 %v1345
      %v1690 = vunpack.c.l.b16 %v1346
      %v1691 = vunpack.c.h.b16 %v1346
      %v1692 = vunpack.c.l.b16 %v1347
      %v1693 = vunpack.c.h.b16 %v1347
      %v1694 = vunpack.c.l.b16 %v1348
      %v1695 = vunpack.c.h.b16 %v1348
      %v1696 = vunpack.c.l.b16 %v1349
      %v1697 = vunpack.c.h.b16 %v1349
      %v1698 = vunpack.c.l.b16 %v1350
      %v1699 = vunpack.c.h.b16 %v1350
      %v1700 = vunpack.c.l.b16 %v1351
      %v1701 = vunpack.c.h.b16 %v1351
      %v1702 = vunpack.c.l.b16 %v1352
      %v1703 = vunpack.c.h.b16 %v1352
      %v1704 = vunpack.c.l.b16 %v1353
      %v1705 = vunpack.c.h.b16 %v1353
      %v1706 = vunpack.c.l.b16 %v1354
      %v1707 = vunpack.c.h.b16 %v1354
      %v1708 = vunpack.c.l.b16 %v1355
      %v1709 = vunpack.c.h.b16 %v1355
      %v1710 = vunpack.c.l.b16 %v1356
      %v1711 = vunpack.c.h.b16 %v1356
      %v1712 = vunpack.c.l.b16 %v1357
      %v1713 = vunpack.c.h.b16 %v1357
      %v1714 = vunpack.c.l.b16 %v1358
      %v1715 = vunpack.c.h.b16 %v1358
      %v1716 = vunpack.c.l.b16 %v1359
      %v1717 = vunpack.c.h.b16 %v1359
      %v1718 = vunpack.c.l.b16 %v1360
      %v1719 = vunpack.c.h.b16 %v1360
      %v1720 = vunpack.c.l.b16 %v1361
      %v1721 = vunpack.c.h.b16 %v1361
      %v1722 = vunpack.c.l.b16 %v1362
      %v1723 = vunpack.c.h.b16 %v1362
      %v1724 = vunpack.c.l.b16 %v1363
      %v1725 = vunpack.c.h.b16 %v1363
      %v1726 = vunpack.c.l.b16 %v1364
      %v1727 = vunpack.c.h.b16 %v1364
      %v1728 = vunpack.c.l.b16 %v1365
      %v1729 = vunpack.c.h.b16 %v1365
      %v1730 = vunpack.c.l.b16 %v1366
      %v1731 = vunpack.c.h.b16 %v1366
      %v1732 = vunpack.c.l.b16 %v1367
      %v1733 = vunpack.c.h.b16 %v1367
      %v1734 = vunpack.c.l.b16 %v1368
      %v1735 = vunpack.c.h.b16 %v1368
      %v1736 = vunpack.c.l.b16 %v1369
      %v1737 = vunpack.c.h.b16 %v1369
      %v1738 = vunpack.c.l.b16 %v1370
      %v1739 = vunpack.c.h.b16 %v1370
      %v1740 = vunpack.c.l.b16 %v1371
      %v1741 = vunpack.c.h.b16 %v1371
      %v1742 = vunpack.c.l.b16 %v1372
      %v1743 = vunpack.c.h.b16 %v1372
      %v1744 = vunpack.c.l.b16 %v1373
      %v1745 = vunpack.c.h.b16 %v1373
      %v1746 = vunpack.c.l.b16 %v1374
      %v1747 = vunpack.c.h.b16 %v1374
      %v1748 = vunpack.c.l.b16 %v1375
      %v1749 = vunpack.c.h.b16 %v1375
      %v1750 = vunpack.c.l.b16 %v1376
      %v1751 = vunpack.c.h.b16 %v1376
      %v1752 = vunpack.c.l.b16 %v1377
      %v1753 = vunpack.c.h.b16 %v1377
      %v1754 = vunpack.c.l.b16 %v1378
      %v1755 = vunpack.c.h.b16 %v1378
      %v1756 = vunpack.c.l.b16 %v1379
      %v1757 = vunpack.c.h.b16 %v1379
      %v1758 = vunpack.c.l.b16 %v1380
      %v1759 = vunpack.c.h.b16 %v1380
      %v1760 = vunpack.c.l.b16 %v1381
      %v1761 = vunpack.c.h.b16 %v1381
      %v1762 = vunpack.c.l.b16 %v1382
      %v1763 = vunpack.c.h.b16 %v1382
      %v1764 = vunpack.c.l.b16 %v1383
      %v1765 = vunpack.c.h.b16 %v1383
      %v1766 = vunpack.c.l.b16 %v1384
      %v1767 = vunpack.c.h.b16 %v1384
      %v1768 = vunpack.c.l.b16 %v1385
      %v1769 = vunpack.c.h.b16 %v1385
      %v1770 = vunpack.c.l.b16 %v1386
      %v1771 = vunpack.c.h.b16 %v1386
      %v1772 = vunpack.c.l.b16 %v1387
      %v1773 = vunpack.c.h.b16 %v1387
      %v1774 = vunpack.c.l.b16 %v1388
      %v1775 = vunpack.c.h.b16 %v1388
      %v1776 = vunpack.c.l.b16 %v1389
      %v1777 = vunpack.c.h.b16 %v1389
      %v1778 = vunpack.c.l.b16 %v1390
      %v1779 = vunpack.c.h.b16 %v1390
      %v1780 = vunpack.c.l.b16 %v1391
      %v1781 = vunpack.c.h.b16 %v1391
      %v1782 = vunpack.c.l.b16 %v1392
      %v1783 = vunpack.c.h.b16 %v1392
      %v1784 = vunpack.c.l.b16 %v1393
      %v1785 = vunpack.c.h.b16 %v1393
      %v1786 = vunpack.c.l.b16 %v1394
      %v1787 = vunpack.c.h.b16 %v1394
      %v1788 = vunpack.c.l.b16 %v1395
      %v1789 = vunpack.c.h.b16 %v1395
      %v1790 = vunpack.c.l.b16 %v1396
      %v1791 = vunpack.c.h.b16 %v1396
      %v1792 = vunpack.c.l.b16 %v1397
      %v1793 = vunpack.c.h.b16 %v1397
      %v1794 = vunpack.c.l.b16 %v1398
      %v1795 = vunpack.c.h.b16 %v1398
      %v1796 = vunpack.c.l.b16 %v1399
      %v1797 = vunpack.c.h.b16 %v1399
      %v1798 = vunpack.c.l.b16 %v1400
      %v1799 = vunpack.c.h.b16 %v1400
      %v1800 = vunpack.c.l.b16 %v1401
      %v1801 = vunpack.c.h.b16 %v1401
      %v1802 = vunpack.c.l.b16 %v1402
      %v1803 = vunpack.c.h.b16 %v1402
      %v1804 = vunpack.c.l.b16 %v1403
      %v1805 = vunpack.c.h.b16 %v1403
      %v1806 = vunpack.c.l.b16 %v1404
      %v1807 = vunpack.c.h.b16 %v1404
      %v1808 = vunpack.c.l.b16 %v1405
      %v1809 = vunpack.c.h.b16 %v1405
      %v1810 = vunpack.c.l.b16 %v1406
      %v1811 = vunpack.c.h.b16 %v1406
      %v1812 = vunpack.c.l.b16 %v1407
      %v1813 = vunpack.c.h.b16 %v1407
      %v1814 = vunpack.c.l.b16 %v1408
      %v1815 = vunpack.c.h.b16 %v1408
      %v1816 = vunpack.c.l.b16 %v1409
      %v1817 = vunpack.c.h.b16 %v1409
      %v1818 = vunpack.c.l.b16 %v1410
      %v1819 = vunpack.c.h.b16 %v1410
      %v1820 = vunpack.c.l.b16 %v1411
      %v1821 = vunpack.c.h.b16 %v1411
      %v1822 = vunpack.c.l.b16 %v1412
      %v1823 = vunpack.c.h.b16 %v1412
      %v1824 = vunpack.c.l.b16 %v1413
      %v1825 = vunpack.c.h.b16 %v1413
      %v1826 = vunpack.c.l.b16 %v1414
      %v1827 = vunpack.c.h.b16 %v1414
      %v1828 = vunpack.c.l.b16 %v1415
      %v1829 = vunpack.c.h.b16 %v1415
      %v1830 = vunpack.c.l.b16 %v1416
      %v1831 = vunpack.c.h.b16 %v1416
      %v1832 = vunpack.c.l.b16 %v1417
      %v1833 = vunpack.c.h.b16 %v1417
      %v1834 = vunpack.c.l.b16 %v1418
      %v1835 = vunpack.c.h.b16 %v1418
      %v1836 = vunpack.c.l.b16 %v1419
      %v1837 = vunpack.c.h.b16 %v1419
      %v1838 = vunpack.c.l.b16 %v1420
      %v1839 = vunpack.c.h.b16 %v1420
      %v1840 = vunpack.c.l.b16 %v1421
      %v1841 = vunpack.c.h.b16 %v1421
      %v1842 = vunpack.c.l.b16 %v1422
      %v1843 = vunpack.c.h.b16 %v1422
      %v1844 = vunpack.c.l.b16 %v1423
      %v1845 = vunpack.c.h.b16 %v1423
      %v1846 = vunpack.c.l.b16 %v1424
      %v1847 = vunpack.c.h.b16 %v1424
      %v1848 = vunpack.c.l.b16 %v1425
      %v1849 = vunpack.c.h.b16 %v1425
      %v1850 = vunpack.c.l.b16 %v1426
      %v1851 = vunpack.c.h.b16 %v1426
      %v1852 = vunpack.c.l.b16 %v1427
      %v1853 = vunpack.c.h.b16 %v1427
      %v1854 = vunpack.c.l.b16 %v1428
      %v1855 = vunpack.c.h.b16 %v1428
      %v1856 = vunpack.c.l.b16 %v1429
      %v1857 = vunpack.c.h.b16 %v1429
      %v1858 = vunpack.c.l.b16 %v1430
      %v1859 = vunpack.c.h.b16 %v1430
      %v1860 = vunpack.c.l.b16 %v1431
      %v1861 = vunpack.c.h.b16 %v1431
      %v1862 = vunpack.c.l.b16 %v1432
      %v1863 = vunpack.c.h.b16 %v1432
      %v1864 = vunpack.c.l.b16 %v1433
      %v1865 = vunpack.c.h.b16 %v1433
      %v1866 = vunpack.c.l.b16 %v1434
      %v1867 = vunpack.c.h.b16 %v1434
      %v1868 = vunpack.c.l.b16 %v1435
      %v1869 = vunpack.c.h.b16 %v1435
      %v1870 = vunpack.c.l.b16 %v1436
      %v1871 = vunpack.c.h.b16 %v1436
      %v1872 = vunpack.c.l.b16 %v1437
      %v1873 = vunpack.c.h.b16 %v1437
      %v1874 = vunpack.c.l.b16 %v1438
      %v1875 = vunpack.c.h.b16 %v1438
      %v1876 = vunpack.c.l.b16 %v1439
      %v1877 = vunpack.c.h.b16 %v1439
      %v1878 = vunpack.c.l.b16 %v1440
      %v1879 = vunpack.c.h.b16 %v1440
      %v1880 = vunpack.c.l.b16 %v1441
      %v1881 = vunpack.c.h.b16 %v1441
      %v1882 = vunpack.c.l.b16 %v1442
      %v1883 = vunpack.c.h.b16 %v1442
      %v1884 = vunpack.c.l.b16 %v1443
      %v1885 = vunpack.c.h.b16 %v1443
      %v1886 = vunpack.c.l.b16 %v1444
      %v1887 = vunpack.c.h.b16 %v1444
      %v1888 = vunpack.c.l.b16 %v1445
      %v1889 = vunpack.c.h.b16 %v1445
      %v1890 = vunpack.c.l.b16 %v1446
      %v1891 = vunpack.c.h.b16 %v1446
      %v1892 = vunpack.c.l.b16 %v1447
      %v1893 = vunpack.c.h.b16 %v1447
      %v1894 = vunpack.c.l.b16 %v1448
      %v1895 = vunpack.c.h.b16 %v1448
      %v1896 = vunpack.c.l.b16 %v1449
      %v1897 = vunpack.c.h.b16 %v1449
      %v1898 = vunpack.c.l.b16 %v1450
      %v1899 = vunpack.c.h.b16 %v1450
      %v1900 = vunpack.c.l.b16 %v1451
      %v1901 = vunpack.c.h.b16 %v1451
      %v1902 = vunpack.c.l.b16 %v1452
      %v1903 = vunpack.c.h.b16 %v1452
      %v1904 = vunpack.c.l.b16 %v1453
      %v1905 = vunpack.c.h.b16 %v1453
      %v1906 = vunpack.c.l.b16 %v1454
      %v1907 = vunpack.c.h.b16 %v1454
      %v1908 = vunpack.c.l.b16 %v1455
      %v1909 = vunpack.c.h.b16 %v1455
      %v1910 = vunpack.c.l.b16 %v1456
      %v1911 = vunpack.c.h.b16 %v1456
      %v1912 = vunpack.c.l.b16 %v1457
      %v1913 = vunpack.c.h.b16 %v1457
      %v1914 = vunpack.c.l.b16 %v1458
      %v1915 = vunpack.c.h.b16 %v1458
      %v1916 = vunpack.c.l.b16 %v1459
      %v1917 = vunpack.c.h.b16 %v1459
      %v1918 = vunpack.c.l.b16 %v1460
      %v1919 = vunpack.c.h.b16 %v1460
      %v1920 = vunpack.c.l.b16 %v1461
      %v1921 = vunpack.c.h.b16 %v1461
      %v1922 = vunpack.c.l.b16 %v1462
      %v1923 = vunpack.c.h.b16 %v1462
      %v1924 = vunpack.c.l.b16 %v1463
      %v1925 = vunpack.c.h.b16 %v1463
      %v1926 = vunpack.c.l.b16 %v1464
      %v1927 = vunpack.c.h.b16 %v1464
      %v1928 = vunpack.c.l.b16 %v1465
      %v1929 = vunpack.c.h.b16 %v1465
      %v1930 = vunpack.c.l.b16 %v1466
      %v1931 = vunpack.c.h.b16 %v1466
      %v1932 = vunpack.c.l.b16 %v1467
      %v1933 = vunpack.c.h.b16 %v1467
      %v1934 = vunpack.c.l.b16 %v1468
      %v1935 = vunpack.c.h.b16 %v1468
      %v1936 = vunpack.c.l.b16 %v1469
      %v1937 = vunpack.c.h.b16 %v1469
      %v1938 = vunpack.c.l.b16 %v1470
      %v1939 = vunpack.c.h.b16 %v1470
      %v1940 = vunpack.c.l.b16 %v1471
      %v1941 = vunpack.c.h.b16 %v1471
      %v1942 = vunpack.c.l.b16 %v1472
      %v1943 = vunpack.c.h.b16 %v1472
      %v1944 = vunpack.c.l.b16 %v1473
      %v1945 = vunpack.c.h.b16 %v1473
      %v1946 = vunpack.c.l.b16 %v1474
      %v1947 = vunpack.c.h.b16 %v1474
      %v1948 = vunpack.c.l.b16 %v1475
      %v1949 = vunpack.c.h.b16 %v1475
      %v1950 = vunpack.c.l.b16 %v1476
      %v1951 = vunpack.c.h.b16 %v1476
      %v1952 = vunpack.c.l.b16 %v1477
      %v1953 = vunpack.c.h.b16 %v1477
      %v1954 = vunpack.c.l.b16 %v1478
      %v1955 = vunpack.c.h.b16 %v1478
      %v1956 = vunpack.c.l.b16 %v1479
      %v1957 = vunpack.c.h.b16 %v1479
      %v1958 = vunpack.c.l.b16 %v1480
      %v1959 = vunpack.c.h.b16 %v1480
      %v1960 = vunpack.c.l.b16 %v1481
      %v1961 = vunpack.c.h.b16 %v1481
      %v1962 = vunpack.c.l.b16 %v1482
      %v1963 = vunpack.c.h.b16 %v1482
      %v1964 = vunpack.c.l.b16 %v1483
      %v1965 = vunpack.c.h.b16 %v1483
      %v1966 = vunpack.c.l.b16 %v1484
      %v1967 = vunpack.c.h.b16 %v1484
      %v1968 = vunpack.c.l.b16 %v1485
      %v1969 = vunpack.c.h.b16 %v1485
      %v1970 = vunpack.c.l.b16 %v1486
      %v1971 = vunpack.c.h.b16 %v1486
      %v1972 = vunpack.c.l.b16 %v1487
      %v1973 = vunpack.c.h.b16 %v1487
      %v1974 = vunpack.c.l.b16 %v1488
      %v1975 = vunpack.c.h.b16 %v1488
      %v1976 = vunpack.c.l.b16 %v1489
      %v1977 = vunpack.c.h.b16 %v1489
      %v1978 = vunpack.c.l.b16 %v1490
      %v1979 = vunpack.c.h.b16 %v1490
      %v1980 = vunpack.c.l.b16 %v1491
      %v1981 = vunpack.c.h.b16 %v1491
      %v1982 = vunpack.c.l.b16 %v1492
      %v1983 = vunpack.c.h.b16 %v1492
      %v1984 = vunpack.c.l.b16 %v1493
      %v1985 = vunpack.c.h.b16 %v1493
      %v1986 = vunpack.c.l.b16 %v1494
      %v1987 = vunpack.c.h.b16 %v1494
      %v1988 = vunpack.c.l.b16 %v1495
      %v1989 = vunpack.c.h.b16 %v1495
      %v1990 = vunpack.c.l.b16 %v1496
      %v1991 = vunpack.c.h.b16 %v1496
      %v1992 = vunpack.c.l.b16 %v1497
      %v1993 = vunpack.c.h.b16 %v1497
      %v1994 = vunpack.c.l.b16 %v1498
      %v1995 = vunpack.c.h.b16 %v1498
      %v1996 = vunpack.c.l.b16 %v1499
      %v1997 = vunpack.c.h.b16 %v1499
      %v1998 = vunpack.c.l.b16 %v1500
      %v1999 = vunpack.c.h.b16 %v1500
      %v2000 = vunpack.c.l.b16 %v1501
      %v2001 = vunpack.c.h.b16 %v1501
      %v2002 = vunpack.c.l.b16 %v1502
      %v2003 = vunpack.c.h.b16 %v1502
      %v2004 = vunpack.c.l.b16 %v1503
      %v2005 = vunpack.c.h.b16 %v1503
      %v2006 = vunpack.c.l.b16 %v1504
      %v2007 = vunpack.c.h.b16 %v1504
      %v2008 = vunpack.c.l.b16 %v1505
      %v2009 = vunpack.c.h.b16 %v1505
      %v2010 = vunpack.c.l.b16 %v1506
      %v2011 = vunpack.c.h.b16 %v1506
      %v2012 = vunpack.c.l.b16 %v1507
      %v2013 = vunpack.c.h.b16 %v1507
      %v2014 = vunpack.c.l.b16 %v1508
      %v2015 = vunpack.c.h.b16 %v1508
      %v2016 = vpack.c.b16 %v1688, %v1686
      %v2017 = vpack.c.b16 %v1689, %v1687
      %v2018 = vpack.c.b16 %v1692, %v1690
      %v2019 = vpack.c.b16 %v1693, %v1691
      %v2020 = vpack.c.b16 %v1696, %v1694
      %v2021 = vpack.c.b16 %v1697, %v1695
      %v2022 = vpack.c.b16 %v1700, %v1698
      %v2023 = vpack.c.b16 %v1701, %v1699
      %v2024 = vpack.c.b16 %v1704, %v1702
      %v2025 = vpack.c.b16 %v1705, %v1703
      %v2026 = vpack.c.b16 %v1708, %v1706
      %v2027 = vpack.c.b16 %v1709, %v1707
      %v2028 = vpack.c.b16 %v1712, %v1710
      %v2029 = vpack.c.b16 %v1713, %v1711
      %v2030 = vpack.c.b16 %v1716, %v1714
      %v2031 = vpack.c.b16 %v1717, %v1715
      %v2032 = vpack.c.b16 %v1720, %v1718
      %v2033 = vpack.c.b16 %v1721, %v1719
      %v2034 = vpack.c.b16 %v1724, %v1722
      %v2035 = vpack.c.b16 %v1725, %v1723
      %v2036 = vpack.c.b16 %v1728, %v1726
      %v2037 = vpack.c.b16 %v1729, %v1727
      %v2038 = vpack.c.b16 %v1732, %v1730
      %v2039 = vpack.c.b16 %v1733, %v1731
      %v2040 = vpack.c.b16 %v1736, %v1734
      %v2041 = vpack.c.b16 %v1737, %v1735
      %v2042 = vpack.c.b16 %v1740, %v1738
      %v2043 = vpack.c.b16 %v1741, %v1739
      %v2044 = vpack.c.b16 %v1744, %v1742
      %v2045 = vpack.c.b16 %v1745, %v1743
      %v2046 = vpack.c.b16 %v1748, %v1746
      %v2047 = vpack.c.b16 %v1749, %v1747
      %v2048 = vpack.c.b16 %v1752, %v1750
      %v2049 = vpack.c.b16 %v1753, %v1751
      %v2050 = vpack.c.b16 %v1756, %v1754
      %v2051 = vpack.c.b16 %v1757, %v1755
      %v2052 = vpack.c.b16 %v1760, %v1758
      %v2053 = vpack.c.b16 %v1761, %v1759
      %v2054 = vpack.c.b16 %v1764, %v1762
      %v2055 = vpack.c.b16 %v1765, %v1763
      %v2056 = vpack.c.b16 %v1768, %v1766
      %v2057 = vpack.c.b16 %v1769, %v1767
      %v2058 = vpack.c.b16 %v1772, %v1770
      %v2059 = vpack.c.b16 %v1773, %v1771
      %v2060 = vpack.c.b16 %v1776, %v1774
      %v2061 = vpack.c.b16 %v1777, %v1775
      %v2062 = vpack.c.b16 %v1780, %v1778
      %v2063 = vpack.c.b16 %v1781, %v1779
      %v2064 = vpack.c.b16 %v1784, %v1782
      %v2065 = vpack.c.b16 %v1785, %v1783
      %v2066 = vpack.c.b16 %v1788, %v1786
      %v2067 = vpack.c.b16 %v1789, %v1787
      %v2068 = vpack.c.b16 %v1792, %v1790
      %v2069 = vpack.c.b16 %v1793, %v1791
      %v2070 = vpack.c.b16 %v1796, %v1794
      %v2071 = vpack.c.b16 %v1797, %v1795
      %v2072 = vpack.c.b16 %v1800, %v1798
      %v2073 = vpack.c.b16 %v1801, %v1799
      %v2074 = vpack.c.b16 %v1804, %v1802
      %v2075 = vpack.c.b16 %v1805, %v1803
      %v2076 = vpack.c.b16 %v1808, %v1806
      %v2077 = vpack.c.b16 %v1809, %v1807
      %v2078 = vpack.c.b16 %v1812, %v1810
      %v2079 = vpack.c.b16 %v1813, %v1811
      %v2080 = vpack.c.b16 %v1816, %v1814
      %v2081 = vpack.c.b16 %v1817, %v1815
      %v2082 = vpack.c.b16 %v1820, %v1818
      %v2083 = vpack.c.b16 %v1821, %v1819
      %v2084 = vpack.c.b16 %v1824, %v1822
      %v2085 = vpack.c.b16 %v1825, %v1823
      %v2086 = vpack.c.b16 %v1828, %v1826
      %v2087 = vpack.c.b16 %v1829, %v1827
      %v2088 = vpack.c.b16 %v1832, %v1830
      %v2089 = vpack.c.b16 %v1833, %v1831
      %v2090 = vpack.c.b16 %v1836, %v1834
      %v2091 = vpack.c.b16 %v1837, %v1835
      %v2092 = vpack.c.b16 %v1840, %v1838
      %v2093 = vpack.c.b16 %v1841, %v1839
      %v2094 = vpack.c.b16 %v1844, %v1842
      %v2095 = vpack.c.b16 %v1845, %v1843
      %v2096 = vpack.c.b16 %v1848, %v1846
      %v2097 = vpack.c.b16 %v1849, %v1847
      %v2098 = vpack.c.b16 %v1852, %v1850
      %v2099 = vpack.c.b16 %v1853, %v1851
      %v2100 = vpack.c.b16 %v1856, %v1854
      %v2101 = vpack.c.b16 %v1857, %v1855
      %v2102 = vpack.c.b16 %v1860, %v1858
      %v2103 = vpack.c.b16 %v1861, %v1859
      %v2104 = vpack.c.b16 %v1864, %v1862
      %v2105 = vpack.c.b16 %v1865, %v1863
      %v2106 = vpack.c.b16 %v1868, %v1866
      %v2107 = vpack.c.b16 %v1869, %v1867
      %v2108 = vpack.c.b16 %v1872, %v1870
      %v2109 = vpack.c.b16 %v1873, %v1871
      %v2110 = vpack.c.b16 %v1876, %v1874
      %v2111 = vpack.c.b16 %v1877, %v1875
      %v2112 = vpack.c.b16 %v1880, %v1878
      %v2113 = vpack.c.b16 %v1881, %v1879
      %v2114 = vpack.c.b16 %v1884, %v1882
      %v2115 = vpack.c.b16 %v1885, %v1883
      %v2116 = vpack.c.b16 %v1888, %v1886
      %v2117 = vpack.c.b16 %v1889, %v1887
      %v2118 = vpack.c.b16 %v1892, %v1890
      %v2119 = vpack.c.b16 %v1893, %v1891
      %v2120 = vpack.c.b16 %v1896, %v1894
      %v2121 = vpack.c.b16 %v1897, %v1895
      %v2122 = vpack.c.b16 %v1900, %v1898
      %v2123 = vpack.c.b16 %v1901, %v1899
      %v2124 = vpack.c.b16 %v1904, %v1902
      %v2125 = vpack.c.b16 %v1905, %v1903
      %v2126 = vpack.c.b16 %v1908, %v1906
      %v2127 = vpack.c.b16 %v1909, %v1907
      %v2128 = vpack.c.b16 %v1912, %v1910
      %v2129 = vpack.c.b16 %v1913, %v1911
      %v2130 = vpack.c.b16 %v1916, %v1914
      %v2131 = vpack.c.b16 %v1917, %v1915
      %v2132 = vpack.c.b16 %v1920, %v1918
      %v2133 = vpack.c.b16 %v1921, %v1919
      %v2134 = vpack.c.b16 %v1924, %v1922
      %v2135 = vpack.c.b16 %v1925, %v1923
      %v2136 = vpack.c.b16 %v1928, %v1926
      %v2137 = vpack.c.b16 %v1929, %v1927
      %v2138 = vpack.c.b16 %v1932, %v1930
      %v2139 = vpack.c.b16 %v1933, %v1931
      %v2140 = vpack.c.b16 %v1936, %v1934
      %v2141 = vpack.c.b16 %v1937, %v1935
      %v2142 = vpack.c.b16 %v1940, %v1938
      %v2143 = vpack.c.b16 %v1941, %v1939
      %v2144 = vpack.c.b16 %v1944, %v1942
      %v2145 = vpack.c.b16 %v1945, %v1943
      %v2146 = vpack.c.b16 %v1948, %v1946
      %v2147 = vpack.c.b16 %v1949, %v1947
      %v2148 = vpack.c.b16 %v1952, %v1950
      %v2149 = vpack.c.b16 %v1953, %v1951
      %v2150 = vpack.c.b16 %v1956, %v1954
      %v2151 = vpack.c.b16 %v1957, %v1955
      %v2152 = vpack.c.b16 %v1960, %v1958
      %v2153 = vpack.c.b16 %v1961, %v1959
      %v2154 = vpack.c.b16 %v1964, %v1962
      %v2155 = vpack.c.b16 %v1965, %v1963
      %v2156 = vpack.c.b16 %v1968, %v1966
      %v2157 = vpack.c.b16 %v1969, %v1967
      %v2158 = vpack.c.b16 %v1972, %v1970
      %v2159 = vpack.c.b16 %v1973, %v1971
      %v2160 = vpack.c.b16 %v1976, %v1974
      %v2161 = vpack.c.b16 %v1977, %v1975
      %v2162 = vpack.c.b16 %v1980, %v1978
      %v2163 = vpack.c.b16 %v1981, %v1979
      %v2164 = vpack.c.b16 %v1984, %v1982
      %v2165 = vpack.c.b16 %v1985, %v1983
      %v2166 = vpack.c.b16 %v1988, %v1986
      %v2167 = vpack.c.b16 %v1989, %v1987
      %v2168 = vpack.c.b16 %v1992, %v1990
      %v2169 = vpack.c.b16 %v1993, %v1991
      %v2170 = vpack.c.b16 %v1996, %v1994
      %v2171 = vpack.c.b16 %v1997, %v1995
      %v2172 = vpack.c.b16 %v2000, %v1998
      %v2173 = vpack.c.b16 %v2001, %v1999
      %v2174 = vpack.c.b16 %v2004, %v2002
      %v2175 = vpack.c.b16 %v2005, %v2003
      %v2176 = vpack.c.b16 %v2008, %v2006
      %v2177 = vpack.c.b16 %v2009, %v2007
      %v2178 = vpack.c.b16 %v2012, %v2010
      %v2179 = vpack.c.b16 %v2013, %v2011
      %v2180 = vpack.c.b16 %v2014, %v2014
      %v2181 = vpack.c.b16 %v2015, %v2015
      %vm2346 = vcmask 326656
      %v2348 = vsel %vm2346, %v1002, 0
      %v2351 = vsel %vm2346, %v1013, 0
      %v2354 = vsel %vm2346, %v1024, 0
      %v2357 = vsel %vm2346, %v1035, 0
      %v2360 = vsel %vm2346, %v1046, 0
      %v2363 = vsel %vm2346, %v1057, 0
      %v2366 = vsel %vm2346, %v1068, 0
      %v2369 = vsel %vm2346, %v1079, 0
      %v2372 = vsel %vm2346, %v1090, 0
      %v2375 = vsel %vm2346, %v1101, 0
      %v2378 = vsel %vm2346, %v1112, 0
      %v2381 = vsel %vm2346, %v1123, 0
      %v2384 = vsel %vm2346, %v1134, 0
      %v2387 = vsel %vm2346, %v1145, 0
      %v2390 = vsel %vm2346, %v1156, 0
      %v2393 = vsel %vm2346, %v1167, 0
      %v2396 = vsel %vm2346, %v1178, 0
      %v2399 = vsel %vm2346, %v1189, 0
      %v2402 = vsel %vm2346, %v1200, 0
      %v2405 = vsel %vm2346, %v1211, 0
      %v2408 = vsel %vm2346, %v1222, 0
      %v2411 = vsel %vm2346, %v1233, 0
      %v2414 = vsel %vm2346, %v1244, 0
      %v2417 = vsel %vm2346, %v1255, 0
      %v2420 = vsel %vm2346, %v1266, 0
      %v2423 = vsel %vm2346, %v1277, 0
      %v2426 = vsel %vm2346, %v1288, 0
      %v2429 = vsel %vm2346, %v1299, 0
      %v2432 = vsel %vm2346, %v1310, 0
      %v2435 = vsel %vm2346, %v1321, 0
      %v2438 = vsel %vm2346, %v1332, 0
      %v2441 = vsel %vm2346, %v1343, 0
      %vm2443 = vcmask 1043456
      %v2445 = vsel %vm2443, %v2180, 0
      %v2448 = vsel %vm2443, %v2181, 0
      %2450 = vmatprep.subr.bf16.mxu0 %v2031
      %2451 = vmatpush1.bf16.msra.mxu0 %v2030
      %2452 = vmatprep.subr.bf16.mxu0 %v2029
      %2453 = vmatpush1.bf16.msra.mxu0 %v2028
      %2454 = vmatprep.subr.bf16.mxu0 %v2027
      %2455 = vmatpush1.bf16.msra.mxu0 %v2026
      %2456 = vmatprep.subr.bf16.mxu0 %v2025
      %2457 = vmatpush1.bf16.msra.mxu0 %v2024
      %2458 = vmatprep.subr.bf16.mxu0 %v2023
      %2459 = vmatpush1.bf16.msra.mxu0 %v2022
      %2460 = vmatprep.subr.bf16.mxu0 %v2021
      %2461 = vmatpush1.bf16.msra.mxu0 %v2020
      %2462 = vmatprep.subr.bf16.mxu0 %v2019
      %2463 = vmatpush1.bf16.msra.mxu0 %v2018
      %2464 = vmatprep.subr.bf16.mxu0 %v2017
      %2465 = vmatpush1.bf16.msra.mxu0 %v2016
      %2466 = vmatprep.subr.bf16.mxu0 %v2047
      %2467 = vmatpush2.bf16.msra.mxu0 %v2046
      %2468 = vmatprep.subr.bf16.mxu0 %v2045
      %2469 = vmatpush2.bf16.msra.mxu0 %v2044
      %2470 = vmatprep.subr.bf16.mxu0 %v2043
      %2471 = vmatpush2.bf16.msra.mxu0 %v2042
      %2472 = vmatprep.subr.bf16.mxu0 %v2041
      %2473 = vmatpush2.bf16.msra.mxu0 %v2040
      %2474 = vmatprep.subr.bf16.mxu0 %v2039
      %2475 = vmatpush2.bf16.msra.mxu0 %v2038
      %2476 = vmatprep.subr.bf16.mxu0 %v2037
      %2477 = vmatpush2.bf16.msra.mxu0 %v2036
      %2478 = vmatprep.subr.bf16.mxu0 %v2035
      %2479 = vmatpush2.bf16.msra.mxu0 %v2034
      %2480 = vmatprep.subr.bf16.mxu0 %v2033
      %2481 = vmatpush2.bf16.msra.mxu0 %v2032
      %2482 = vmatprep.mubr.bf16.mxu0 %v993
      %2483 = vmatmul.mubr.bf16.gmra.mxu0 %v992
      %v2484 = vpop.f32.mrf.mxu0
      %v2485 = vadd.f32 %v1514, %v2484
      %v2486 = vpop.f32.mrf.mxu0
      %v2487 = vadd.f32 %v1518, %v2486
      %v2488 = vpop.f32.mrf.mxu0
      %v2489 = vadd.f32 %v1514, %v2488
      %v2490 = vpop.f32.mrf.mxu0
      %v2491 = vadd.f32 %v1518, %v2490
      %2492 = vmatprep.mubr.bf16.mxu0 %v1004
      %2493 = vmatmul.mubr.bf16.gmra.mxu0 %v1003
      %v2494 = vpop.f32.mrf.mxu0
      %v2495 = vadd.f32 %v1514, %v2494
      %v2496 = vpop.f32.mrf.mxu0
      %v2497 = vadd.f32 %v1518, %v2496
      %v2498 = vpop.f32.mrf.mxu0
      %v2499 = vadd.f32 %v1514, %v2498
      %v2500 = vpop.f32.mrf.mxu0
      %v2501 = vadd.f32 %v1518, %v2500
      %2502 = vmatprep.mubr.bf16.mxu0 %v1015
      %2503 = vmatmul.mubr.bf16.gmra.mxu0 %v1014
      %v2504 = vpop.f32.mrf.mxu0
      %v2505 = vadd.f32 %v1514, %v2504
      %v2506 = vpop.f32.mrf.mxu0
      %v2507 = vadd.f32 %v1518, %v2506
      %v2508 = vpop.f32.mrf.mxu0
      %v2509 = vadd.f32 %v1514, %v2508
      %v2510 = vpop.f32.mrf.mxu0
      %v2511 = vadd.f32 %v1518, %v2510
      %2512 = vmatprep.mubr.bf16.mxu0 %v1026
      %2513 = vmatmul.mubr.bf16.gmra.mxu0 %v1025
      %v2514 = vpop.f32.mrf.mxu0
      %v2515 = vadd.f32 %v1514, %v2514
      %v2516 = vpop.f32.mrf.mxu0
      %v2517 = vadd.f32 %v1518, %v2516
      %v2518 = vpop.f32.mrf.mxu0
      %v2519 = vadd.f32 %v1514, %v2518
      %v2520 = vpop.f32.mrf.mxu0
      %v2521 = vadd.f32 %v1518, %v2520
      %2522 = vmatprep.mubr.bf16.mxu0 %v1037
      %2523 = vmatmul.mubr.bf16.gmra.mxu0 %v1036
      %v2524 = vpop.f32.mrf.mxu0
      %v2525 = vadd.f32 %v1514, %v2524
      %v2526 = vpop.f32.mrf.mxu0
      %v2527 = vadd.f32 %v1518, %v2526
      %v2528 = vpop.f32.mrf.mxu0
      %v2529 = vadd.f32 %v1514, %v2528
      %v2530 = vpop.f32.mrf.mxu0
      %v2531 = vadd.f32 %v1518, %v2530
      %2532 = vmatprep.mubr.bf16.mxu0 %v1048
      %2533 = vmatmul.mubr.bf16.gmra.mxu0 %v1047
      %v2534 = vpop.f32.mrf.mxu0
      %v2535 = vadd.f32 %v1514, %v2534
      %v2536 = vpop.f32.mrf.mxu0
      %v2537 = vadd.f32 %v1518, %v2536
      %v2538 = vpop.f32.mrf.mxu0
      %v2539 = vadd.f32 %v1514, %v2538
      %v2540 = vpop.f32.mrf.mxu0
      %v2541 = vadd.f32 %v1518, %v2540
      %2542 = vmatprep.mubr.bf16.mxu0 %v1059
      %2543 = vmatmul.mubr.bf16.gmra.mxu0 %v1058
      %v2544 = vpop.f32.mrf.mxu0
      %v2545 = vadd.f32 %v1514, %v2544
      %v2546 = vpop.f32.mrf.mxu0
      %v2547 = vadd.f32 %v1518, %v2546
      %v2548 = vpop.f32.mrf.mxu0
      %v2549 = vadd.f32 %v1514, %v2548
      %v2550 = vpop.f32.mrf.mxu0
      %v2551 = vadd.f32 %v1518, %v2550
      %2552 = vmatprep.mubr.bf16.mxu0 %v1070
      %2553 = vmatmul.mubr.bf16.gmra.mxu0 %v1069
      %v2554 = vpop.f32.mrf.mxu0
      %v2555 = vadd.f32 %v1514, %v2554
      %v2556 = vpop.f32.mrf.mxu0
      %v2557 = vadd.f32 %v1518, %v2556
      %v2558 = vpop.f32.mrf.mxu0
      %v2559 = vadd.f32 %v1514, %v2558
      %v2560 = vpop.f32.mrf.mxu0
      %v2561 = vadd.f32 %v1518, %v2560
      %2562 = vmatprep.mubr.bf16.mxu0 %v1081
      %2563 = vmatmul.mubr.bf16.gmra.mxu0 %v1080
      %v2564 = vpop.f32.mrf.mxu0
      %v2565 = vadd.f32 %v1514, %v2564
      %v2566 = vpop.f32.mrf.mxu0
      %v2567 = vadd.f32 %v1518, %v2566
      %v2568 = vpop.f32.mrf.mxu0
      %v2569 = vadd.f32 %v1514, %v2568
      %v2570 = vpop.f32.mrf.mxu0
      %v2571 = vadd.f32 %v1518, %v2570
      %2572 = vmatprep.mubr.bf16.mxu0 %v1092
      %2573 = vmatmul.mubr.bf16.gmra.mxu0 %v1091
      %v2574 = vpop.f32.mrf.mxu0
      %v2575 = vadd.f32 %v1514, %v2574
      %v2576 = vpop.f32.mrf.mxu0
      %v2577 = vadd.f32 %v1518, %v2576
      %v2578 = vpop.f32.mrf.mxu0
      %v2579 = vadd.f32 %v1514, %v2578
      %v2580 = vpop.f32.mrf.mxu0
      %v2581 = vadd.f32 %v1518, %v2580
      %2582 = vmatprep.mubr.bf16.mxu0 %v1103
      %2583 = vmatmul.mubr.bf16.gmra.mxu0 %v1102
      %v2584 = vpop.f32.mrf.mxu0
      %v2585 = vadd.f32 %v1514, %v2584
      %v2586 = vpop.f32.mrf.mxu0
      %v2587 = vadd.f32 %v1518, %v2586
      %v2588 = vpop.f32.mrf.mxu0
      %v2589 = vadd.f32 %v1514, %v2588
      %v2590 = vpop.f32.mrf.mxu0
      %v2591 = vadd.f32 %v1518, %v2590
      %2592 = vmatprep.mubr.bf16.mxu0 %v1114
      %2593 = vmatmul.mubr.bf16.gmra.mxu0 %v1113
      %v2594 = vpop.f32.mrf.mxu0
      %v2595 = vadd.f32 %v1514, %v2594
      %v2596 = vpop.f32.mrf.mxu0
      %v2597 = vadd.f32 %v1518, %v2596
      %v2598 = vpop.f32.mrf.mxu0
      %v2599 = vadd.f32 %v1514, %v2598
      %v2600 = vpop.f32.mrf.mxu0
      %v2601 = vadd.f32 %v1518, %v2600
      %2602 = vmatprep.mubr.bf16.mxu0 %v1125
      %2603 = vmatmul.mubr.bf16.gmra.mxu0 %v1124
      %v2604 = vpop.f32.mrf.mxu0
      %v2605 = vadd.f32 %v1514, %v2604
      %v2606 = vpop.f32.mrf.mxu0
      %v2607 = vadd.f32 %v1518, %v2606
      %v2608 = vpop.f32.mrf.mxu0
      %v2609 = vadd.f32 %v1514, %v2608
      %v2610 = vpop.f32.mrf.mxu0
      %v2611 = vadd.f32 %v1518, %v2610
      %2612 = vmatprep.mubr.bf16.mxu0 %v1136
      %2613 = vmatmul.mubr.bf16.gmra.mxu0 %v1135
      %v2614 = vpop.f32.mrf.mxu0
      %v2615 = vadd.f32 %v1514, %v2614
      %v2616 = vpop.f32.mrf.mxu0
      %v2617 = vadd.f32 %v1518, %v2616
      %v2618 = vpop.f32.mrf.mxu0
      %v2619 = vadd.f32 %v1514, %v2618
      %v2620 = vpop.f32.mrf.mxu0
      %v2621 = vadd.f32 %v1518, %v2620
      %2622 = vmatprep.mubr.bf16.mxu0 %v1147
      %2623 = vmatmul.mubr.bf16.gmra.mxu0 %v1146
      %v2624 = vpop.f32.mrf.mxu0
      %v2625 = vadd.f32 %v1514, %v2624
      %v2626 = vpop.f32.mrf.mxu0
      %v2627 = vadd.f32 %v1518, %v2626
      %v2628 = vpop.f32.mrf.mxu0
      %v2629 = vadd.f32 %v1514, %v2628
      %v2630 = vpop.f32.mrf.mxu0
      %v2631 = vadd.f32 %v1518, %v2630
      %2632 = vmatprep.mubr.bf16.mxu0 %v1158
      %2633 = vmatmul.mubr.bf16.gmra.mxu0 %v1157
      %v2634 = vpop.f32.mrf.mxu0
      %v2635 = vadd.f32 %v1514, %v2634
      %v2636 = vpop.f32.mrf.mxu0
      %v2637 = vadd.f32 %v1518, %v2636
      %v2638 = vpop.f32.mrf.mxu0
      %v2639 = vadd.f32 %v1514, %v2638
      %v2640 = vpop.f32.mrf.mxu0
      %v2641 = vadd.f32 %v1518, %v2640
      %2642 = vmatprep.mubr.bf16.mxu0 %v1169
      %2643 = vmatmul.mubr.bf16.gmra.mxu0 %v1168
      %v2644 = vpop.f32.mrf.mxu0
      %v2645 = vadd.f32 %v1514, %v2644
      %v2646 = vpop.f32.mrf.mxu0
      %v2647 = vadd.f32 %v1518, %v2646
      %v2648 = vpop.f32.mrf.mxu0
      %v2649 = vadd.f32 %v1514, %v2648
      %v2650 = vpop.f32.mrf.mxu0
      %v2651 = vadd.f32 %v1518, %v2650
      %2652 = vmatprep.mubr.bf16.mxu0 %v1180
      %2653 = vmatmul.mubr.bf16.gmra.mxu0 %v1179
      %v2654 = vpop.f32.mrf.mxu0
      %v2655 = vadd.f32 %v1514, %v2654
      %v2656 = vpop.f32.mrf.mxu0
      %v2657 = vadd.f32 %v1518, %v2656
      %v2658 = vpop.f32.mrf.mxu0
      %v2659 = vadd.f32 %v1514, %v2658
      %v2660 = vpop.f32.mrf.mxu0
      %v2661 = vadd.f32 %v1518, %v2660
      %2662 = vmatprep.mubr.bf16.mxu0 %v1191
      %2663 = vmatmul.mubr.bf16.gmra.mxu0 %v1190
      %v2664 = vpop.f32.mrf.mxu0
      %v2665 = vadd.f32 %v1514, %v2664
      %v2666 = vpop.f32.mrf.mxu0
      %v2667 = vadd.f32 %v1518, %v2666
      %v2668 = vpop.f32.mrf.mxu0
      %v2669 = vadd.f32 %v1514, %v2668
      %v2670 = vpop.f32.mrf.mxu0
      %v2671 = vadd.f32 %v1518, %v2670
      %2672 = vmatprep.mubr.bf16.mxu0 %v1202
      %2673 = vmatmul.mubr.bf16.gmra.mxu0 %v1201
      %v2674 = vpop.f32.mrf.mxu0
      %v2675 = vadd.f32 %v1514, %v2674
      %v2676 = vpop.f32.mrf.mxu0
      %v2677 = vadd.f32 %v1518, %v2676
      %v2678 = vpop.f32.mrf.mxu0
      %v2679 = vadd.f32 %v1514, %v2678
      %v2680 = vpop.f32.mrf.mxu0
      %v2681 = vadd.f32 %v1518, %v2680
      %2682 = vmatprep.mubr.bf16.mxu0 %v1213
      %2683 = vmatmul.mubr.bf16.gmra.mxu0 %v1212
      %v2684 = vpop.f32.mrf.mxu0
      %v2685 = vadd.f32 %v1514, %v2684
      %v2686 = vpop.f32.mrf.mxu0
      %v2687 = vadd.f32 %v1518, %v2686
      %v2688 = vpop.f32.mrf.mxu0
      %v2689 = vadd.f32 %v1514, %v2688
      %v2690 = vpop.f32.mrf.mxu0
      %v2691 = vadd.f32 %v1518, %v2690
      %2692 = vmatprep.mubr.bf16.mxu0 %v1224
      %2693 = vmatmul.mubr.bf16.gmra.mxu0 %v1223
      %v2694 = vpop.f32.mrf.mxu0
      %v2695 = vadd.f32 %v1514, %v2694
      %v2696 = vpop.f32.mrf.mxu0
      %v2697 = vadd.f32 %v1518, %v2696
      %v2698 = vpop.f32.mrf.mxu0
      %v2699 = vadd.f32 %v1514, %v2698
      %v2700 = vpop.f32.mrf.mxu0
      %v2701 = vadd.f32 %v1518, %v2700
      %2702 = vmatprep.mubr.bf16.mxu0 %v1235
      %2703 = vmatmul.mubr.bf16.gmra.mxu0 %v1234
      %v2704 = vpop.f32.mrf.mxu0
      %v2705 = vadd.f32 %v1514, %v2704
      %v2706 = vpop.f32.mrf.mxu0
      %v2707 = vadd.f32 %v1518, %v2706
      %v2708 = vpop.f32.mrf.mxu0
      %v2709 = vadd.f32 %v1514, %v2708
      %v2710 = vpop.f32.mrf.mxu0
      %v2711 = vadd.f32 %v1518, %v2710
      %2712 = vmatprep.mubr.bf16.mxu0 %v1246
      %2713 = vmatmul.mubr.bf16.gmra.mxu0 %v1245
      %v2714 = vpop.f32.mrf.mxu0
      %v2715 = vadd.f32 %v1514, %v2714
      %v2716 = vpop.f32.mrf.mxu0
      %v2717 = vadd.f32 %v1518, %v2716
      %v2718 = vpop.f32.mrf.mxu0
      %v2719 = vadd.f32 %v1514, %v2718
      %v2720 = vpop.f32.mrf.mxu0
      %v2721 = vadd.f32 %v1518, %v2720
      %2722 = vmatprep.mubr.bf16.mxu0 %v1257
      %2723 = vmatmul.mubr.bf16.gmra.mxu0 %v1256
      %v2724 = vpop.f32.mrf.mxu0
      %v2725 = vadd.f32 %v1514, %v2724
      %v2726 = vpop.f32.mrf.mxu0
      %v2727 = vadd.f32 %v1518, %v2726
      %v2728 = vpop.f32.mrf.mxu0
      %v2729 = vadd.f32 %v1514, %v2728
      %v2730 = vpop.f32.mrf.mxu0
      %v2731 = vadd.f32 %v1518, %v2730
      %2732 = vmatprep.mubr.bf16.mxu0 %v1268
      %2733 = vmatmul.mubr.bf16.gmra.mxu0 %v1267
      %v2734 = vpop.f32.mrf.mxu0
      %v2735 = vadd.f32 %v1514, %v2734
      %v2736 = vpop.f32.mrf.mxu0
      %v2737 = vadd.f32 %v1518, %v2736
      %v2738 = vpop.f32.mrf.mxu0
      %v2739 = vadd.f32 %v1514, %v2738
      %v2740 = vpop.f32.mrf.mxu0
      %v2741 = vadd.f32 %v1518, %v2740
      %2742 = vmatprep.mubr.bf16.mxu0 %v1279
      %2743 = vmatmul.mubr.bf16.gmra.mxu0 %v1278
      %v2744 = vpop.f32.mrf.mxu0
      %v2745 = vadd.f32 %v1514, %v2744
      %v2746 = vpop.f32.mrf.mxu0
      %v2747 = vadd.f32 %v1518, %v2746
      %v2748 = vpop.f32.mrf.mxu0
      %v2749 = vadd.f32 %v1514, %v2748
      %v2750 = vpop.f32.mrf.mxu0
      %v2751 = vadd.f32 %v1518, %v2750
      %2752 = vmatprep.mubr.bf16.mxu0 %v1290
      %2753 = vmatmul.mubr.bf16.gmra.mxu0 %v1289
      %v2754 = vpop.f32.mrf.mxu0
      %v2755 = vadd.f32 %v1514, %v2754
      %v2756 = vpop.f32.mrf.mxu0
      %v2757 = vadd.f32 %v1518, %v2756
      %v2758 = vpop.f32.mrf.mxu0
      %v2759 = vadd.f32 %v1514, %v2758
      %v2760 = vpop.f32.mrf.mxu0
      %v2761 = vadd.f32 %v1518, %v2760
      %2762 = vmatprep.mubr.bf16.mxu0 %v1301
      %2763 = vmatmul.mubr.bf16.gmra.mxu0 %v1300
      %v2764 = vpop.f32.mrf.mxu0
      %v2765 = vadd.f32 %v1514, %v2764
      %v2766 = vpop.f32.mrf.mxu0
      %v2767 = vadd.f32 %v1518, %v2766
      %v2768 = vpop.f32.mrf.mxu0
      %v2769 = vadd.f32 %v1514, %v2768
      %v2770 = vpop.f32.mrf.mxu0
      %v2771 = vadd.f32 %v1518, %v2770
      %2772 = vmatprep.mubr.bf16.mxu0 %v1312
      %2773 = vmatmul.mubr.bf16.gmra.mxu0 %v1311
      %v2774 = vpop.f32.mrf.mxu0
      %v2775 = vadd.f32 %v1514, %v2774
      %v2776 = vpop.f32.mrf.mxu0
      %v2777 = vadd.f32 %v1518, %v2776
      %v2778 = vpop.f32.mrf.mxu0
      %v2779 = vadd.f32 %v1514, %v2778
      %v2780 = vpop.f32.mrf.mxu0
      %v2781 = vadd.f32 %v1518, %v2780
      %2782 = vmatprep.mubr.bf16.mxu0 %v1323
      %2783 = vmatmul.mubr.bf16.gmra.mxu0 %v1322
      %v2784 = vpop.f32.mrf.mxu0
      %v2785 = vadd.f32 %v1514, %v2784
      %v2786 = vpop.f32.mrf.mxu0
      %v2787 = vadd.f32 %v1518, %v2786
      %v2788 = vpop.f32.mrf.mxu0
      %v2789 = vadd.f32 %v1514, %v2788
      %v2790 = vpop.f32.mrf.mxu0
      %v2791 = vadd.f32 %v1518, %v2790
      %2792 = vmatprep.mubr.bf16.mxu0 %v1334
      %2793 = vmatmul.mubr.bf16.gmra.mxu0 %v1333
      %v2794 = vpop.f32.mrf.mxu0
      %v2795 = vadd.f32 %v1514, %v2794
      %v2796 = vpop.f32.mrf.mxu0
      %v2797 = vadd.f32 %v1518, %v2796
      %v2798 = vpop.f32.mrf.mxu0
      %v2799 = vadd.f32 %v1514, %v2798
      %v2800 = vpop.f32.mrf.mxu0
      %v2801 = vadd.f32 %v1518, %v2800
      %2802 = vdwg.mxu0
      %2803 = vmatprep.subr.bf16.mxu0 %v2063
      %2804 = vmatpush1.bf16.msra.mxu0 %v2062
      %2805 = vmatprep.subr.bf16.mxu0 %v2061
      %2806 = vmatpush1.bf16.msra.mxu0 %v2060
      %2807 = vmatprep.subr.bf16.mxu0 %v2059
      %2808 = vmatpush1.bf16.msra.mxu0 %v2058
      %2809 = vmatprep.subr.bf16.mxu0 %v2057
      %2810 = vmatpush1.bf16.msra.mxu0 %v2056
      %2811 = vmatprep.subr.bf16.mxu0 %v2055
      %2812 = vmatpush1.bf16.msra.mxu0 %v2054
      %2813 = vmatprep.subr.bf16.mxu0 %v2053
      %2814 = vmatpush1.bf16.msra.mxu0 %v2052
      %2815 = vmatprep.subr.bf16.mxu0 %v2051
      %2816 = vmatpush1.bf16.msra.mxu0 %v2050
      %2817 = vmatprep.subr.bf16.mxu0 %v2049
      %2818 = vmatpush1.bf16.msra.mxu0 %v2048
      %2819 = vmatprep.subr.bf16.mxu0 %v2079
      %2820 = vmatpush2.bf16.msra.mxu0 %v2078
      %2821 = vmatprep.subr.bf16.mxu0 %v2077
      %2822 = vmatpush2.bf16.msra.mxu0 %v2076
      %2823 = vmatprep.subr.bf16.mxu0 %v2075
      %2824 = vmatpush2.bf16.msra.mxu0 %v2074
      %2825 = vmatprep.subr.bf16.mxu0 %v2073
      %2826 = vmatpush2.bf16.msra.mxu0 %v2072
      %2827 = vmatprep.subr.bf16.mxu0 %v2071
      %2828 = vmatpush2.bf16.msra.mxu0 %v2070
      %2829 = vmatprep.subr.bf16.mxu0 %v2069
      %2830 = vmatpush2.bf16.msra.mxu0 %v2068
      %2831 = vmatprep.subr.bf16.mxu0 %v2067
      %2832 = vmatpush2.bf16.msra.mxu0 %v2066
      %2833 = vmatprep.subr.bf16.mxu0 %v2065
      %2834 = vmatpush2.bf16.msra.mxu0 %v2064
      %2835 = vmatprep.mubr.bf16.mxu0 %v995
      %2836 = vmatmul.mubr.bf16.gmra.mxu0 %v994
      %v2837 = vpop.f32.mrf.mxu0
      %v2838 = vadd.f32 %v2485, %v2837
      %v2839 = vpop.f32.mrf.mxu0
      %v2840 = vadd.f32 %v2487, %v2839
      %v2841 = vpop.f32.mrf.mxu0
      %v2842 = vadd.f32 %v2489, %v2841
      %v2843 = vpop.f32.mrf.mxu0
      %v2844 = vadd.f32 %v2491, %v2843
      %2845 = vmatprep.mubr.bf16.mxu0 %v1006
      %2846 = vmatmul.mubr.bf16.gmra.mxu0 %v1005
      %v2847 = vpop.f32.mrf.mxu0
      %v2848 = vadd.f32 %v2495, %v2847
      %v2849 = vpop.f32.mrf.mxu0
      %v2850 = vadd.f32 %v2497, %v2849
      %v2851 = vpop.f32.mrf.mxu0
      %v2852 = vadd.f32 %v2499, %v2851
      %v2853 = vpop.f32.mrf.mxu0
      %v2854 = vadd.f32 %v2501, %v2853
      %2855 = vmatprep.mubr.bf16.mxu0 %v1017
      %2856 = vmatmul.mubr.bf16.gmra.mxu0 %v1016
      %v2857 = vpop.f32.mrf.mxu0
      %v2858 = vadd.f32 %v2505, %v2857
      %v2859 = vpop.f32.mrf.mxu0
      %v2860 = vadd.f32 %v2507, %v2859
      %v2861 = vpop.f32.mrf.mxu0
      %v2862 = vadd.f32 %v2509, %v2861
      %v2863 = vpop.f32.mrf.mxu0
      %v2864 = vadd.f32 %v2511, %v2863
      %2865 = vmatprep.mubr.bf16.mxu0 %v1028
      %2866 = vmatmul.mubr.bf16.gmra.mxu0 %v1027
      %v2867 = vpop.f32.mrf.mxu0
      %v2868 = vadd.f32 %v2515, %v2867
      %v2869 = vpop.f32.mrf.mxu0
      %v2870 = vadd.f32 %v2517, %v2869
      %v2871 = vpop.f32.mrf.mxu0
      %v2872 = vadd.f32 %v2519, %v2871
      %v2873 = vpop.f32.mrf.mxu0
      %v2874 = vadd.f32 %v2521, %v2873
      %2875 = vmatprep.mubr.bf16.mxu0 %v1039
      %2876 = vmatmul.mubr.bf16.gmra.mxu0 %v1038
      %v2877 = vpop.f32.mrf.mxu0
      %v2878 = vadd.f32 %v2525, %v2877
      %v2879 = vpop.f32.mrf.mxu0
      %v2880 = vadd.f32 %v2527, %v2879
      %v2881 = vpop.f32.mrf.mxu0
      %v2882 = vadd.f32 %v2529, %v2881
      %v2883 = vpop.f32.mrf.mxu0
      %v2884 = vadd.f32 %v2531, %v2883
      %2885 = vmatprep.mubr.bf16.mxu0 %v1050
      %2886 = vmatmul.mubr.bf16.gmra.mxu0 %v1049
      %v2887 = vpop.f32.mrf.mxu0
      %v2888 = vadd.f32 %v2535, %v2887
      %v2889 = vpop.f32.mrf.mxu0
      %v2890 = vadd.f32 %v2537, %v2889
      %v2891 = vpop.f32.mrf.mxu0
      %v2892 = vadd.f32 %v2539, %v2891
      %v2893 = vpop.f32.mrf.mxu0
      %v2894 = vadd.f32 %v2541, %v2893
      %2895 = vmatprep.mubr.bf16.mxu0 %v1061
      %2896 = vmatmul.mubr.bf16.gmra.mxu0 %v1060
      %v2897 = vpop.f32.mrf.mxu0
      %v2898 = vadd.f32 %v2545, %v2897
      %v2899 = vpop.f32.mrf.mxu0
      %v2900 = vadd.f32 %v2547, %v2899
      %v2901 = vpop.f32.mrf.mxu0
      %v2902 = vadd.f32 %v2549, %v2901
      %v2903 = vpop.f32.mrf.mxu0
      %v2904 = vadd.f32 %v2551, %v2903
      %2905 = vmatprep.mubr.bf16.mxu0 %v1072
      %2906 = vmatmul.mubr.bf16.gmra.mxu0 %v1071
      %v2907 = vpop.f32.mrf.mxu0
      %v2908 = vadd.f32 %v2555, %v2907
      %v2909 = vpop.f32.mrf.mxu0
      %v2910 = vadd.f32 %v2557, %v2909
      %v2911 = vpop.f32.mrf.mxu0
      %v2912 = vadd.f32 %v2559, %v2911
      %v2913 = vpop.f32.mrf.mxu0
      %v2914 = vadd.f32 %v2561, %v2913
      %2915 = vmatprep.mubr.bf16.mxu0 %v1083
      %2916 = vmatmul.mubr.bf16.gmra.mxu0 %v1082
      %v2917 = vpop.f32.mrf.mxu0
      %v2918 = vadd.f32 %v2565, %v2917
      %v2919 = vpop.f32.mrf.mxu0
      %v2920 = vadd.f32 %v2567, %v2919
      %v2921 = vpop.f32.mrf.mxu0
      %v2922 = vadd.f32 %v2569, %v2921
      %v2923 = vpop.f32.mrf.mxu0
      %v2924 = vadd.f32 %v2571, %v2923
      %2925 = vmatprep.mubr.bf16.mxu0 %v1094
      %2926 = vmatmul.mubr.bf16.gmra.mxu0 %v1093
      %v2927 = vpop.f32.mrf.mxu0
      %v2928 = vadd.f32 %v2575, %v2927
      %v2929 = vpop.f32.mrf.mxu0
      %v2930 = vadd.f32 %v2577, %v2929
      %v2931 = vpop.f32.mrf.mxu0
      %v2932 = vadd.f32 %v2579, %v2931
      %v2933 = vpop.f32.mrf.mxu0
      %v2934 = vadd.f32 %v2581, %v2933
      %2935 = vmatprep.mubr.bf16.mxu0 %v1105
      %2936 = vmatmul.mubr.bf16.gmra.mxu0 %v1104
      %v2937 = vpop.f32.mrf.mxu0
      %v2938 = vadd.f32 %v2585, %v2937
      %v2939 = vpop.f32.mrf.mxu0
      %v2940 = vadd.f32 %v2587, %v2939
      %v2941 = vpop.f32.mrf.mxu0
      %v2942 = vadd.f32 %v2589, %v2941
      %v2943 = vpop.f32.mrf.mxu0
      %v2944 = vadd.f32 %v2591, %v2943
      %2945 = vmatprep.mubr.bf16.mxu0 %v1116
      %2946 = vmatmul.mubr.bf16.gmra.mxu0 %v1115
      %v2947 = vpop.f32.mrf.mxu0
      %v2948 = vadd.f32 %v2595, %v2947
      %v2949 = vpop.f32.mrf.mxu0
      %v2950 = vadd.f32 %v2597, %v2949
      %v2951 = vpop.f32.mrf.mxu0
      %v2952 = vadd.f32 %v2599, %v2951
      %v2953 = vpop.f32.mrf.mxu0
      %v2954 = vadd.f32 %v2601, %v2953
      %2955 = vmatprep.mubr.bf16.mxu0 %v1127
      %2956 = vmatmul.mubr.bf16.gmra.mxu0 %v1126
      %v2957 = vpop.f32.mrf.mxu0
      %v2958 = vadd.f32 %v2605, %v2957
      %v2959 = vpop.f32.mrf.mxu0
      %v2960 = vadd.f32 %v2607, %v2959
      %v2961 = vpop.f32.mrf.mxu0
      %v2962 = vadd.f32 %v2609, %v2961
      %v2963 = vpop.f32.mrf.mxu0
      %v2964 = vadd.f32 %v2611, %v2963
      %2965 = vmatprep.mubr.bf16.mxu0 %v1138
      %2966 = vmatmul.mubr.bf16.gmra.mxu0 %v1137
      %v2967 = vpop.f32.mrf.mxu0
      %v2968 = vadd.f32 %v2615, %v2967
      %v2969 = vpop.f32.mrf.mxu0
      %v2970 = vadd.f32 %v2617, %v2969
      %v2971 = vpop.f32.mrf.mxu0
      %v2972 = vadd.f32 %v2619, %v2971
      %v2973 = vpop.f32.mrf.mxu0
      %v2974 = vadd.f32 %v2621, %v2973
      %2975 = vmatprep.mubr.bf16.mxu0 %v1149
      %2976 = vmatmul.mubr.bf16.gmra.mxu0 %v1148
      %v2977 = vpop.f32.mrf.mxu0
      %v2978 = vadd.f32 %v2625, %v2977
      %v2979 = vpop.f32.mrf.mxu0
      %v2980 = vadd.f32 %v2627, %v2979
      %v2981 = vpop.f32.mrf.mxu0
      %v2982 = vadd.f32 %v2629, %v2981
      %v2983 = vpop.f32.mrf.mxu0
      %v2984 = vadd.f32 %v2631, %v2983
      %2985 = vmatprep.mubr.bf16.mxu0 %v1160
      %2986 = vmatmul.mubr.bf16.gmra.mxu0 %v1159
      %v2987 = vpop.f32.mrf.mxu0
      %v2988 = vadd.f32 %v2635, %v2987
      %v2989 = vpop.f32.mrf.mxu0
      %v2990 = vadd.f32 %v2637, %v2989
      %v2991 = vpop.f32.mrf.mxu0
      %v2992 = vadd.f32 %v2639, %v2991
      %v2993 = vpop.f32.mrf.mxu0
      %v2994 = vadd.f32 %v2641, %v2993
      %2995 = vmatprep.mubr.bf16.mxu0 %v1171
      %2996 = vmatmul.mubr.bf16.gmra.mxu0 %v1170
      %v2997 = vpop.f32.mrf.mxu0
      %v2998 = vadd.f32 %v2645, %v2997
      %v2999 = vpop.f32.mrf.mxu0
      %v3000 = vadd.f32 %v2647, %v2999
      %v3001 = vpop.f32.mrf.mxu0
      %v3002 = vadd.f32 %v2649, %v3001
      %v3003 = vpop.f32.mrf.mxu0
      %v3004 = vadd.f32 %v2651, %v3003
      %3005 = vmatprep.mubr.bf16.mxu0 %v1182
      %3006 = vmatmul.mubr.bf16.gmra.mxu0 %v1181
      %v3007 = vpop.f32.mrf.mxu0
      %v3008 = vadd.f32 %v2655, %v3007
      %v3009 = vpop.f32.mrf.mxu0
      %v3010 = vadd.f32 %v2657, %v3009
      %v3011 = vpop.f32.mrf.mxu0
      %v3012 = vadd.f32 %v2659, %v3011
      %v3013 = vpop.f32.mrf.mxu0
      %v3014 = vadd.f32 %v2661, %v3013
      %3015 = vmatprep.mubr.bf16.mxu0 %v1193
      %3016 = vmatmul.mubr.bf16.gmra.mxu0 %v1192
      %v3017 = vpop.f32.mrf.mxu0
      %v3018 = vadd.f32 %v2665, %v3017
      %v3019 = vpop.f32.mrf.mxu0
      %v3020 = vadd.f32 %v2667, %v3019
      %v3021 = vpop.f32.mrf.mxu0
      %v3022 = vadd.f32 %v2669, %v3021
      %v3023 = vpop.f32.mrf.mxu0
      %v3024 = vadd.f32 %v2671, %v3023
      %3025 = vmatprep.mubr.bf16.mxu0 %v1204
      %3026 = vmatmul.mubr.bf16.gmra.mxu0 %v1203
      %v3027 = vpop.f32.mrf.mxu0
      %v3028 = vadd.f32 %v2675, %v3027
      %v3029 = vpop.f32.mrf.mxu0
      %v3030 = vadd.f32 %v2677, %v3029
      %v3031 = vpop.f32.mrf.mxu0
      %v3032 = vadd.f32 %v2679, %v3031
      %v3033 = vpop.f32.mrf.mxu0
      %v3034 = vadd.f32 %v2681, %v3033
      %3035 = vmatprep.mubr.bf16.mxu0 %v1215
      %3036 = vmatmul.mubr.bf16.gmra.mxu0 %v1214
      %v3037 = vpop.f32.mrf.mxu0
      %v3038 = vadd.f32 %v2685, %v3037
      %v3039 = vpop.f32.mrf.mxu0
      %v3040 = vadd.f32 %v2687, %v3039
      %v3041 = vpop.f32.mrf.mxu0
      %v3042 = vadd.f32 %v2689, %v3041
      %v3043 = vpop.f32.mrf.mxu0
      %v3044 = vadd.f32 %v2691, %v3043
      %3045 = vmatprep.mubr.bf16.mxu0 %v1226
      %3046 = vmatmul.mubr.bf16.gmra.mxu0 %v1225
      %v3047 = vpop.f32.mrf.mxu0
      %v3048 = vadd.f32 %v2695, %v3047
      %v3049 = vpop.f32.mrf.mxu0
      %v3050 = vadd.f32 %v2697, %v3049
      %v3051 = vpop.f32.mrf.mxu0
      %v3052 = vadd.f32 %v2699, %v3051
      %v3053 = vpop.f32.mrf.mxu0
      %v3054 = vadd.f32 %v2701, %v3053
      %3055 = vmatprep.mubr.bf16.mxu0 %v1237
      %3056 = vmatmul.mubr.bf16.gmra.mxu0 %v1236
      %v3057 = vpop.f32.mrf.mxu0
      %v3058 = vadd.f32 %v2705, %v3057
      %v3059 = vpop.f32.mrf.mxu0
      %v3060 = vadd.f32 %v2707, %v3059
      %v3061 = vpop.f32.mrf.mxu0
      %v3062 = vadd.f32 %v2709, %v3061
      %v3063 = vpop.f32.mrf.mxu0
      %v3064 = vadd.f32 %v2711, %v3063
      %3065 = vmatprep.mubr.bf16.mxu0 %v1248
      %3066 = vmatmul.mubr.bf16.gmra.mxu0 %v1247
      %v3067 = vpop.f32.mrf.mxu0
      %v3068 = vadd.f32 %v2715, %v3067
      %v3069 = vpop.f32.mrf.mxu0
      %v3070 = vadd.f32 %v2717, %v3069
      %v3071 = vpop.f32.mrf.mxu0
      %v3072 = vadd.f32 %v2719, %v3071
      %v3073 = vpop.f32.mrf.mxu0
      %v3074 = vadd.f32 %v2721, %v3073
      %3075 = vmatprep.mubr.bf16.mxu0 %v1259
      %3076 = vmatmul.mubr.bf16.gmra.mxu0 %v1258
      %v3077 = vpop.f32.mrf.mxu0
      %v3078 = vadd.f32 %v2725, %v3077
      %v3079 = vpop.f32.mrf.mxu0
      %v3080 = vadd.f32 %v2727, %v3079
      %v3081 = vpop.f32.mrf.mxu0
      %v3082 = vadd.f32 %v2729, %v3081
      %v3083 = vpop.f32.mrf.mxu0
      %v3084 = vadd.f32 %v2731, %v3083
      %3085 = vmatprep.mubr.bf16.mxu0 %v1270
      %3086 = vmatmul.mubr.bf16.gmra.mxu0 %v1269
      %v3087 = vpop.f32.mrf.mxu0
      %v3088 = vadd.f32 %v2735, %v3087
      %v3089 = vpop.f32.mrf.mxu0
      %v3090 = vadd.f32 %v2737, %v3089
      %v3091 = vpop.f32.mrf.mxu0
      %v3092 = vadd.f32 %v2739, %v3091
      %v3093 = vpop.f32.mrf.mxu0
      %v3094 = vadd.f32 %v2741, %v3093
      %3095 = vmatprep.mubr.bf16.mxu0 %v1281
      %3096 = vmatmul.mubr.bf16.gmra.mxu0 %v1280
      %v3097 = vpop.f32.mrf.mxu0
      %v3098 = vadd.f32 %v2745, %v3097
      %v3099 = vpop.f32.mrf.mxu0
      %v3100 = vadd.f32 %v2747, %v3099
      %v3101 = vpop.f32.mrf.mxu0
      %v3102 = vadd.f32 %v2749, %v3101
      %v3103 = vpop.f32.mrf.mxu0
      %v3104 = vadd.f32 %v2751, %v3103
      %3105 = vmatprep.mubr.bf16.mxu0 %v1292
      %3106 = vmatmul.mubr.bf16.gmra.mxu0 %v1291
      %v3107 = vpop.f32.mrf.mxu0
      %v3108 = vadd.f32 %v2755, %v3107
      %v3109 = vpop.f32.mrf.mxu0
      %v3110 = vadd.f32 %v2757, %v3109
      %v3111 = vpop.f32.mrf.mxu0
      %v3112 = vadd.f32 %v2759, %v3111
      %v3113 = vpop.f32.mrf.mxu0
      %v3114 = vadd.f32 %v2761, %v3113
      %3115 = vmatprep.mubr.bf16.mxu0 %v1303
      %3116 = vmatmul.mubr.bf16.gmra.mxu0 %v1302
      %v3117 = vpop.f32.mrf.mxu0
      %v3118 = vadd.f32 %v2765, %v3117
      %v3119 = vpop.f32.mrf.mxu0
      %v3120 = vadd.f32 %v2767, %v3119
      %v3121 = vpop.f32.mrf.mxu0
      %v3122 = vadd.f32 %v2769, %v3121
      %v3123 = vpop.f32.mrf.mxu0
      %v3124 = vadd.f32 %v2771, %v3123
      %3125 = vmatprep.mubr.bf16.mxu0 %v1314
      %3126 = vmatmul.mubr.bf16.gmra.mxu0 %v1313
      %v3127 = vpop.f32.mrf.mxu0
      %v3128 = vadd.f32 %v2775, %v3127
      %v3129 = vpop.f32.mrf.mxu0
      %v3130 = vadd.f32 %v2777, %v3129
      %v3131 = vpop.f32.mrf.mxu0
      %v3132 = vadd.f32 %v2779, %v3131
      %v3133 = vpop.f32.mrf.mxu0
      %v3134 = vadd.f32 %v2781, %v3133
      %3135 = vmatprep.mubr.bf16.mxu0 %v1325
      %3136 = vmatmul.mubr.bf16.gmra.mxu0 %v1324
      %v3137 = vpop.f32.mrf.mxu0
      %v3138 = vadd.f32 %v2785, %v3137
      %v3139 = vpop.f32.mrf.mxu0
      %v3140 = vadd.f32 %v2787, %v3139
      %v3141 = vpop.f32.mrf.mxu0
      %v3142 = vadd.f32 %v2789, %v3141
      %v3143 = vpop.f32.mrf.mxu0
      %v3144 = vadd.f32 %v2791, %v3143
      %3145 = vmatprep.mubr.bf16.mxu0 %v1336
      %3146 = vmatmul.mubr.bf16.gmra.mxu0 %v1335
      %v3147 = vpop.f32.mrf.mxu0
      %v3148 = vadd.f32 %v2795, %v3147
      %v3149 = vpop.f32.mrf.mxu0
      %v3150 = vadd.f32 %v2797, %v3149
      %v3151 = vpop.f32.mrf.mxu0
      %v3152 = vadd.f32 %v2799, %v3151
      %v3153 = vpop.f32.mrf.mxu0
      %v3154 = vadd.f32 %v2801, %v3153
      %3155 = vdwg.mxu0
      %3156 = vmatprep.subr.bf16.mxu0 %v2095
      %3157 = vmatpush1.bf16.msra.mxu0 %v2094
      %3158 = vmatprep.subr.bf16.mxu0 %v2093
      %3159 = vmatpush1.bf16.msra.mxu0 %v2092
      %3160 = vmatprep.subr.bf16.mxu0 %v2091
      %3161 = vmatpush1.bf16.msra.mxu0 %v2090
      %3162 = vmatprep.subr.bf16.mxu0 %v2089
      %3163 = vmatpush1.bf16.msra.mxu0 %v2088
      %3164 = vmatprep.subr.bf16.mxu0 %v2087
      %3165 = vmatpush1.bf16.msra.mxu0 %v2086
      %3166 = vmatprep.subr.bf16.mxu0 %v2085
      %3167 = vmatpush1.bf16.msra.mxu0 %v2084
      %3168 = vmatprep.subr.bf16.mxu0 %v2083
      %3169 = vmatpush1.bf16.msra.mxu0 %v2082
      %3170 = vmatprep.subr.bf16.mxu0 %v2081
      %3171 = vmatpush1.bf16.msra.mxu0 %v2080
      %3172 = vmatprep.subr.bf16.mxu0 %v2111
      %3173 = vmatpush2.bf16.msra.mxu0 %v2110
      %3174 = vmatprep.subr.bf16.mxu0 %v2109
      %3175 = vmatpush2.bf16.msra.mxu0 %v2108
      %3176 = vmatprep.subr.bf16.mxu0 %v2107
      %3177 = vmatpush2.bf16.msra.mxu0 %v2106
      %3178 = vmatprep.subr.bf16.mxu0 %v2105
      %3179 = vmatpush2.bf16.msra.mxu0 %v2104
      %3180 = vmatprep.subr.bf16.mxu0 %v2103
      %3181 = vmatpush2.bf16.msra.mxu0 %v2102
      %3182 = vmatprep.subr.bf16.mxu0 %v2101
      %3183 = vmatpush2.bf16.msra.mxu0 %v2100
      %3184 = vmatprep.subr.bf16.mxu0 %v2099
      %3185 = vmatpush2.bf16.msra.mxu0 %v2098
      %3186 = vmatprep.subr.bf16.mxu0 %v2097
      %3187 = vmatpush2.bf16.msra.mxu0 %v2096
      %3188 = vmatprep.mubr.bf16.mxu0 %v997
      %3189 = vmatmul.mubr.bf16.gmra.mxu0 %v996
      %v3190 = vpop.f32.mrf.mxu0
      %v3191 = vadd.f32 %v2838, %v3190
      %v3192 = vpop.f32.mrf.mxu0
      %v3193 = vadd.f32 %v2840, %v3192
      %v3194 = vpop.f32.mrf.mxu0
      %v3195 = vadd.f32 %v2842, %v3194
      %v3196 = vpop.f32.mrf.mxu0
      %v3197 = vadd.f32 %v2844, %v3196
      %3198 = vmatprep.mubr.bf16.mxu0 %v1008
      %3199 = vmatmul.mubr.bf16.gmra.mxu0 %v1007
      %v3200 = vpop.f32.mrf.mxu0
      %v3201 = vadd.f32 %v2848, %v3200
      %v3202 = vpop.f32.mrf.mxu0
      %v3203 = vadd.f32 %v2850, %v3202
      %v3204 = vpop.f32.mrf.mxu0
      %v3205 = vadd.f32 %v2852, %v3204
      %v3206 = vpop.f32.mrf.mxu0
      %v3207 = vadd.f32 %v2854, %v3206
      %3208 = vmatprep.mubr.bf16.mxu0 %v1019
      %3209 = vmatmul.mubr.bf16.gmra.mxu0 %v1018
      %v3210 = vpop.f32.mrf.mxu0
      %v3211 = vadd.f32 %v2858, %v3210
      %v3212 = vpop.f32.mrf.mxu0
      %v3213 = vadd.f32 %v2860, %v3212
      %v3214 = vpop.f32.mrf.mxu0
      %v3215 = vadd.f32 %v2862, %v3214
      %v3216 = vpop.f32.mrf.mxu0
      %v3217 = vadd.f32 %v2864, %v3216
      %3218 = vmatprep.mubr.bf16.mxu0 %v1030
      %3219 = vmatmul.mubr.bf16.gmra.mxu0 %v1029
      %v3220 = vpop.f32.mrf.mxu0
      %v3221 = vadd.f32 %v2868, %v3220
      %v3222 = vpop.f32.mrf.mxu0
      %v3223 = vadd.f32 %v2870, %v3222
      %v3224 = vpop.f32.mrf.mxu0
      %v3225 = vadd.f32 %v2872, %v3224
      %v3226 = vpop.f32.mrf.mxu0
      %v3227 = vadd.f32 %v2874, %v3226
      %3228 = vmatprep.mubr.bf16.mxu0 %v1041
      %3229 = vmatmul.mubr.bf16.gmra.mxu0 %v1040
      %v3230 = vpop.f32.mrf.mxu0
      %v3231 = vadd.f32 %v2878, %v3230
      %v3232 = vpop.f32.mrf.mxu0
      %v3233 = vadd.f32 %v2880, %v3232
      %v3234 = vpop.f32.mrf.mxu0
      %v3235 = vadd.f32 %v2882, %v3234
      %v3236 = vpop.f32.mrf.mxu0
      %v3237 = vadd.f32 %v2884, %v3236
      %3238 = vmatprep.mubr.bf16.mxu0 %v1052
      %3239 = vmatmul.mubr.bf16.gmra.mxu0 %v1051
      %v3240 = vpop.f32.mrf.mxu0
      %v3241 = vadd.f32 %v2888, %v3240
      %v3242 = vpop.f32.mrf.mxu0
      %v3243 = vadd.f32 %v2890, %v3242
      %v3244 = vpop.f32.mrf.mxu0
      %v3245 = vadd.f32 %v2892, %v3244
      %v3246 = vpop.f32.mrf.mxu0
      %v3247 = vadd.f32 %v2894, %v3246
      %3248 = vmatprep.mubr.bf16.mxu0 %v1063
      %3249 = vmatmul.mubr.bf16.gmra.mxu0 %v1062
      %v3250 = vpop.f32.mrf.mxu0
      %v3251 = vadd.f32 %v2898, %v3250
      %v3252 = vpop.f32.mrf.mxu0
      %v3253 = vadd.f32 %v2900, %v3252
      %v3254 = vpop.f32.mrf.mxu0
      %v3255 = vadd.f32 %v2902, %v3254
      %v3256 = vpop.f32.mrf.mxu0
      %v3257 = vadd.f32 %v2904, %v3256
      %3258 = vmatprep.mubr.bf16.mxu0 %v1074
      %3259 = vmatmul.mubr.bf16.gmra.mxu0 %v1073
      %v3260 = vpop.f32.mrf.mxu0
      %v3261 = vadd.f32 %v2908, %v3260
      %v3262 = vpop.f32.mrf.mxu0
      %v3263 = vadd.f32 %v2910, %v3262
      %v3264 = vpop.f32.mrf.mxu0
      %v3265 = vadd.f32 %v2912, %v3264
      %v3266 = vpop.f32.mrf.mxu0
      %v3267 = vadd.f32 %v2914, %v3266
      %3268 = vmatprep.mubr.bf16.mxu0 %v1085
      %3269 = vmatmul.mubr.bf16.gmra.mxu0 %v1084
      %v3270 = vpop.f32.mrf.mxu0
      %v3271 = vadd.f32 %v2918, %v3270
      %v3272 = vpop.f32.mrf.mxu0
      %v3273 = vadd.f32 %v2920, %v3272
      %v3274 = vpop.f32.mrf.mxu0
      %v3275 = vadd.f32 %v2922, %v3274
      %v3276 = vpop.f32.mrf.mxu0
      %v3277 = vadd.f32 %v2924, %v3276
      %3278 = vmatprep.mubr.bf16.mxu0 %v1096
      %3279 = vmatmul.mubr.bf16.gmra.mxu0 %v1095
      %v3280 = vpop.f32.mrf.mxu0
      %v3281 = vadd.f32 %v2928, %v3280
      %v3282 = vpop.f32.mrf.mxu0
      %v3283 = vadd.f32 %v2930, %v3282
      %v3284 = vpop.f32.mrf.mxu0
      %v3285 = vadd.f32 %v2932, %v3284
      %v3286 = vpop.f32.mrf.mxu0
      %v3287 = vadd.f32 %v2934, %v3286
      %3288 = vmatprep.mubr.bf16.mxu0 %v1107
      %3289 = vmatmul.mubr.bf16.gmra.mxu0 %v1106
      %v3290 = vpop.f32.mrf.mxu0
      %v3291 = vadd.f32 %v2938, %v3290
      %v3292 = vpop.f32.mrf.mxu0
      %v3293 = vadd.f32 %v2940, %v3292
      %v3294 = vpop.f32.mrf.mxu0
      %v3295 = vadd.f32 %v2942, %v3294
      %v3296 = vpop.f32.mrf.mxu0
      %v3297 = vadd.f32 %v2944, %v3296
      %3298 = vmatprep.mubr.bf16.mxu0 %v1118
      %3299 = vmatmul.mubr.bf16.gmra.mxu0 %v1117
      %v3300 = vpop.f32.mrf.mxu0
      %v3301 = vadd.f32 %v2948, %v3300
      %v3302 = vpop.f32.mrf.mxu0
      %v3303 = vadd.f32 %v2950, %v3302
      %v3304 = vpop.f32.mrf.mxu0
      %v3305 = vadd.f32 %v2952, %v3304
      %v3306 = vpop.f32.mrf.mxu0
      %v3307 = vadd.f32 %v2954, %v3306
      %3308 = vmatprep.mubr.bf16.mxu0 %v1129
      %3309 = vmatmul.mubr.bf16.gmra.mxu0 %v1128
      %v3310 = vpop.f32.mrf.mxu0
      %v3311 = vadd.f32 %v2958, %v3310
      %v3312 = vpop.f32.mrf.mxu0
      %v3313 = vadd.f32 %v2960, %v3312
      %v3314 = vpop.f32.mrf.mxu0
      %v3315 = vadd.f32 %v2962, %v3314
      %v3316 = vpop.f32.mrf.mxu0
      %v3317 = vadd.f32 %v2964, %v3316
      %3318 = vmatprep.mubr.bf16.mxu0 %v1140
      %3319 = vmatmul.mubr.bf16.gmra.mxu0 %v1139
      %v3320 = vpop.f32.mrf.mxu0
      %v3321 = vadd.f32 %v2968, %v3320
      %v3322 = vpop.f32.mrf.mxu0
      %v3323 = vadd.f32 %v2970, %v3322
      %v3324 = vpop.f32.mrf.mxu0
      %v3325 = vadd.f32 %v2972, %v3324
      %v3326 = vpop.f32.mrf.mxu0
      %v3327 = vadd.f32 %v2974, %v3326
      %3328 = vmatprep.mubr.bf16.mxu0 %v1151
      %3329 = vmatmul.mubr.bf16.gmra.mxu0 %v1150
      %v3330 = vpop.f32.mrf.mxu0
      %v3331 = vadd.f32 %v2978, %v3330
      %v3332 = vpop.f32.mrf.mxu0
      %v3333 = vadd.f32 %v2980, %v3332
      %v3334 = vpop.f32.mrf.mxu0
      %v3335 = vadd.f32 %v2982, %v3334
      %v3336 = vpop.f32.mrf.mxu0
      %v3337 = vadd.f32 %v2984, %v3336
      %3338 = vmatprep.mubr.bf16.mxu0 %v1162
      %3339 = vmatmul.mubr.bf16.gmra.mxu0 %v1161
      %v3340 = vpop.f32.mrf.mxu0
      %v3341 = vadd.f32 %v2988, %v3340
      %v3342 = vpop.f32.mrf.mxu0
      %v3343 = vadd.f32 %v2990, %v3342
      %v3344 = vpop.f32.mrf.mxu0
      %v3345 = vadd.f32 %v2992, %v3344
      %v3346 = vpop.f32.mrf.mxu0
      %v3347 = vadd.f32 %v2994, %v3346
      %3348 = vmatprep.mubr.bf16.mxu0 %v1173
      %3349 = vmatmul.mubr.bf16.gmra.mxu0 %v1172
      %v3350 = vpop.f32.mrf.mxu0
      %v3351 = vadd.f32 %v2998, %v3350
      %v3352 = vpop.f32.mrf.mxu0
      %v3353 = vadd.f32 %v3000, %v3352
      %v3354 = vpop.f32.mrf.mxu0
      %v3355 = vadd.f32 %v3002, %v3354
      %v3356 = vpop.f32.mrf.mxu0
      %v3357 = vadd.f32 %v3004, %v3356
      %3358 = vmatprep.mubr.bf16.mxu0 %v1184
      %3359 = vmatmul.mubr.bf16.gmra.mxu0 %v1183
      %v3360 = vpop.f32.mrf.mxu0
      %v3361 = vadd.f32 %v3008, %v3360
      %v3362 = vpop.f32.mrf.mxu0
      %v3363 = vadd.f32 %v3010, %v3362
      %v3364 = vpop.f32.mrf.mxu0
      %v3365 = vadd.f32 %v3012, %v3364
      %v3366 = vpop.f32.mrf.mxu0
      %v3367 = vadd.f32 %v3014, %v3366
      %3368 = vmatprep.mubr.bf16.mxu0 %v1195
      %3369 = vmatmul.mubr.bf16.gmra.mxu0 %v1194
      %v3370 = vpop.f32.mrf.mxu0
      %v3371 = vadd.f32 %v3018, %v3370
      %v3372 = vpop.f32.mrf.mxu0
      %v3373 = vadd.f32 %v3020, %v3372
      %v3374 = vpop.f32.mrf.mxu0
      %v3375 = vadd.f32 %v3022, %v3374
      %v3376 = vpop.f32.mrf.mxu0
      %v3377 = vadd.f32 %v3024, %v3376
      %3378 = vmatprep.mubr.bf16.mxu0 %v1206
      %3379 = vmatmul.mubr.bf16.gmra.mxu0 %v1205
      %v3380 = vpop.f32.mrf.mxu0
      %v3381 = vadd.f32 %v3028, %v3380
      %v3382 = vpop.f32.mrf.mxu0
      %v3383 = vadd.f32 %v3030, %v3382
      %v3384 = vpop.f32.mrf.mxu0
      %v3385 = vadd.f32 %v3032, %v3384
      %v3386 = vpop.f32.mrf.mxu0
      %v3387 = vadd.f32 %v3034, %v3386
      %3388 = vmatprep.mubr.bf16.mxu0 %v1217
      %3389 = vmatmul.mubr.bf16.gmra.mxu0 %v1216
      %v3390 = vpop.f32.mrf.mxu0
      %v3391 = vadd.f32 %v3038, %v3390
      %v3392 = vpop.f32.mrf.mxu0
      %v3393 = vadd.f32 %v3040, %v3392
      %v3394 = vpop.f32.mrf.mxu0
      %v3395 = vadd.f32 %v3042, %v3394
      %v3396 = vpop.f32.mrf.mxu0
      %v3397 = vadd.f32 %v3044, %v3396
      %3398 = vmatprep.mubr.bf16.mxu0 %v1228
      %3399 = vmatmul.mubr.bf16.gmra.mxu0 %v1227
      %v3400 = vpop.f32.mrf.mxu0
      %v3401 = vadd.f32 %v3048, %v3400
      %v3402 = vpop.f32.mrf.mxu0
      %v3403 = vadd.f32 %v3050, %v3402
      %v3404 = vpop.f32.mrf.mxu0
      %v3405 = vadd.f32 %v3052, %v3404
      %v3406 = vpop.f32.mrf.mxu0
      %v3407 = vadd.f32 %v3054, %v3406
      %3408 = vmatprep.mubr.bf16.mxu0 %v1239
      %3409 = vmatmul.mubr.bf16.gmra.mxu0 %v1238
      %v3410 = vpop.f32.mrf.mxu0
      %v3411 = vadd.f32 %v3058, %v3410
      %v3412 = vpop.f32.mrf.mxu0
      %v3413 = vadd.f32 %v3060, %v3412
      %v3414 = vpop.f32.mrf.mxu0
      %v3415 = vadd.f32 %v3062, %v3414
      %v3416 = vpop.f32.mrf.mxu0
      %v3417 = vadd.f32 %v3064, %v3416
      %3418 = vmatprep.mubr.bf16.mxu0 %v1250
      %3419 = vmatmul.mubr.bf16.gmra.mxu0 %v1249
      %v3420 = vpop.f32.mrf.mxu0
      %v3421 = vadd.f32 %v3068, %v3420
      %v3422 = vpop.f32.mrf.mxu0
      %v3423 = vadd.f32 %v3070, %v3422
      %v3424 = vpop.f32.mrf.mxu0
      %v3425 = vadd.f32 %v3072, %v3424
      %v3426 = vpop.f32.mrf.mxu0
      %v3427 = vadd.f32 %v3074, %v3426
      %3428 = vmatprep.mubr.bf16.mxu0 %v1261
      %3429 = vmatmul.mubr.bf16.gmra.mxu0 %v1260
      %v3430 = vpop.f32.mrf.mxu0
      %v3431 = vadd.f32 %v3078, %v3430
      %v3432 = vpop.f32.mrf.mxu0
      %v3433 = vadd.f32 %v3080, %v3432
      %v3434 = vpop.f32.mrf.mxu0
      %v3435 = vadd.f32 %v3082, %v3434
      %v3436 = vpop.f32.mrf.mxu0
      %v3437 = vadd.f32 %v3084, %v3436
      %3438 = vmatprep.mubr.bf16.mxu0 %v1272
      %3439 = vmatmul.mubr.bf16.gmra.mxu0 %v1271
      %v3440 = vpop.f32.mrf.mxu0
      %v3441 = vadd.f32 %v3088, %v3440
      %v3442 = vpop.f32.mrf.mxu0
      %v3443 = vadd.f32 %v3090, %v3442
      %v3444 = vpop.f32.mrf.mxu0
      %v3445 = vadd.f32 %v3092, %v3444
      %v3446 = vpop.f32.mrf.mxu0
      %v3447 = vadd.f32 %v3094, %v3446
      %3448 = vmatprep.mubr.bf16.mxu0 %v1283
      %3449 = vmatmul.mubr.bf16.gmra.mxu0 %v1282
      %v3450 = vpop.f32.mrf.mxu0
      %v3451 = vadd.f32 %v3098, %v3450
      %v3452 = vpop.f32.mrf.mxu0
      %v3453 = vadd.f32 %v3100, %v3452
      %v3454 = vpop.f32.mrf.mxu0
      %v3455 = vadd.f32 %v3102, %v3454
      %v3456 = vpop.f32.mrf.mxu0
      %v3457 = vadd.f32 %v3104, %v3456
      %3458 = vmatprep.mubr.bf16.mxu0 %v1294
      %3459 = vmatmul.mubr.bf16.gmra.mxu0 %v1293
      %v3460 = vpop.f32.mrf.mxu0
      %v3461 = vadd.f32 %v3108, %v3460
      %v3462 = vpop.f32.mrf.mxu0
      %v3463 = vadd.f32 %v3110, %v3462
      %v3464 = vpop.f32.mrf.mxu0
      %v3465 = vadd.f32 %v3112, %v3464
      %v3466 = vpop.f32.mrf.mxu0
      %v3467 = vadd.f32 %v3114, %v3466
      %3468 = vmatprep.mubr.bf16.mxu0 %v1305
      %3469 = vmatmul.mubr.bf16.gmra.mxu0 %v1304
      %v3470 = vpop.f32.mrf.mxu0
      %v3471 = vadd.f32 %v3118, %v3470
      %v3472 = vpop.f32.mrf.mxu0
      %v3473 = vadd.f32 %v3120, %v3472
      %v3474 = vpop.f32.mrf.mxu0
      %v3475 = vadd.f32 %v3122, %v3474
      %v3476 = vpop.f32.mrf.mxu0
      %v3477 = vadd.f32 %v3124, %v3476
      %3478 = vmatprep.mubr.bf16.mxu0 %v1316
      %3479 = vmatmul.mubr.bf16.gmra.mxu0 %v1315
      %v3480 = vpop.f32.mrf.mxu0
      %v3481 = vadd.f32 %v3128, %v3480
      %v3482 = vpop.f32.mrf.mxu0
      %v3483 = vadd.f32 %v3130, %v3482
      %v3484 = vpop.f32.mrf.mxu0
      %v3485 = vadd.f32 %v3132, %v3484
      %v3486 = vpop.f32.mrf.mxu0
      %v3487 = vadd.f32 %v3134, %v3486
      %3488 = vmatprep.mubr.bf16.mxu0 %v1327
      %3489 = vmatmul.mubr.bf16.gmra.mxu0 %v1326
      %v3490 = vpop.f32.mrf.mxu0
      %v3491 = vadd.f32 %v3138, %v3490
      %v3492 = vpop.f32.mrf.mxu0
      %v3493 = vadd.f32 %v3140, %v3492
      %v3494 = vpop.f32.mrf.mxu0
      %v3495 = vadd.f32 %v3142, %v3494
      %v3496 = vpop.f32.mrf.mxu0
      %v3497 = vadd.f32 %v3144, %v3496
      %3498 = vmatprep.mubr.bf16.mxu0 %v1338
      %3499 = vmatmul.mubr.bf16.gmra.mxu0 %v1337
      %v3500 = vpop.f32.mrf.mxu0
      %v3501 = vadd.f32 %v3148, %v3500
      %v3502 = vpop.f32.mrf.mxu0
      %v3503 = vadd.f32 %v3150, %v3502
      %v3504 = vpop.f32.mrf.mxu0
      %v3505 = vadd.f32 %v3152, %v3504
      %v3506 = vpop.f32.mrf.mxu0
      %v3507 = vadd.f32 %v3154, %v3506
      %3508 = vdwg.mxu0
      %3509 = vmatprep.subr.bf16.mxu0 %v2127
      %3510 = vmatpush1.bf16.msra.mxu0 %v2126
      %3511 = vmatprep.subr.bf16.mxu0 %v2125
      %3512 = vmatpush1.bf16.msra.mxu0 %v2124
      %3513 = vmatprep.subr.bf16.mxu0 %v2123
      %3514 = vmatpush1.bf16.msra.mxu0 %v2122
      %3515 = vmatprep.subr.bf16.mxu0 %v2121
      %3516 = vmatpush1.bf16.msra.mxu0 %v2120
      %3517 = vmatprep.subr.bf16.mxu0 %v2119
      %3518 = vmatpush1.bf16.msra.mxu0 %v2118
      %3519 = vmatprep.subr.bf16.mxu0 %v2117
      %3520 = vmatpush1.bf16.msra.mxu0 %v2116
      %3521 = vmatprep.subr.bf16.mxu0 %v2115
      %3522 = vmatpush1.bf16.msra.mxu0 %v2114
      %3523 = vmatprep.subr.bf16.mxu0 %v2113
      %3524 = vmatpush1.bf16.msra.mxu0 %v2112
      %3525 = vmatprep.subr.bf16.mxu0 %v2143
      %3526 = vmatpush2.bf16.msra.mxu0 %v2142
      %3527 = vmatprep.subr.bf16.mxu0 %v2141
      %3528 = vmatpush2.bf16.msra.mxu0 %v2140
      %3529 = vmatprep.subr.bf16.mxu0 %v2139
      %3530 = vmatpush2.bf16.msra.mxu0 %v2138
      %3531 = vmatprep.subr.bf16.mxu0 %v2137
      %3532 = vmatpush2.bf16.msra.mxu0 %v2136
      %3533 = vmatprep.subr.bf16.mxu0 %v2135
      %3534 = vmatpush2.bf16.msra.mxu0 %v2134
      %3535 = vmatprep.subr.bf16.mxu0 %v2133
      %3536 = vmatpush2.bf16.msra.mxu0 %v2132
      %3537 = vmatprep.subr.bf16.mxu0 %v2131
      %3538 = vmatpush2.bf16.msra.mxu0 %v2130
      %3539 = vmatprep.subr.bf16.mxu0 %v2129
      %3540 = vmatpush2.bf16.msra.mxu0 %v2128
      %3541 = vmatprep.mubr.bf16.mxu0 %v999
      %3542 = vmatmul.mubr.bf16.gmra.mxu0 %v998
      %v3543 = vpop.f32.mrf.mxu0
      %v3544 = vadd.f32 %v3191, %v3543
      %v3545 = vpop.f32.mrf.mxu0
      %v3546 = vadd.f32 %v3193, %v3545
      %v3547 = vpop.f32.mrf.mxu0
      %v3548 = vadd.f32 %v3195, %v3547
      %v3549 = vpop.f32.mrf.mxu0
      %v3550 = vadd.f32 %v3197, %v3549
      %3551 = vmatprep.mubr.bf16.mxu0 %v1010
      %3552 = vmatmul.mubr.bf16.gmra.mxu0 %v1009
      %v3553 = vpop.f32.mrf.mxu0
      %v3554 = vadd.f32 %v3201, %v3553
      %v3555 = vpop.f32.mrf.mxu0
      %v3556 = vadd.f32 %v3203, %v3555
      %v3557 = vpop.f32.mrf.mxu0
      %v3558 = vadd.f32 %v3205, %v3557
      %v3559 = vpop.f32.mrf.mxu0
      %v3560 = vadd.f32 %v3207, %v3559
      %3561 = vmatprep.mubr.bf16.mxu0 %v1021
      %3562 = vmatmul.mubr.bf16.gmra.mxu0 %v1020
      %v3563 = vpop.f32.mrf.mxu0
      %v3564 = vadd.f32 %v3211, %v3563
      %v3565 = vpop.f32.mrf.mxu0
      %v3566 = vadd.f32 %v3213, %v3565
      %v3567 = vpop.f32.mrf.mxu0
      %v3568 = vadd.f32 %v3215, %v3567
      %v3569 = vpop.f32.mrf.mxu0
      %v3570 = vadd.f32 %v3217, %v3569
      %3571 = vmatprep.mubr.bf16.mxu0 %v1032
      %3572 = vmatmul.mubr.bf16.gmra.mxu0 %v1031
      %v3573 = vpop.f32.mrf.mxu0
      %v3574 = vadd.f32 %v3221, %v3573
      %v3575 = vpop.f32.mrf.mxu0
      %v3576 = vadd.f32 %v3223, %v3575
      %v3577 = vpop.f32.mrf.mxu0
      %v3578 = vadd.f32 %v3225, %v3577
      %v3579 = vpop.f32.mrf.mxu0
      %v3580 = vadd.f32 %v3227, %v3579
      %3581 = vmatprep.mubr.bf16.mxu0 %v1043
      %3582 = vmatmul.mubr.bf16.gmra.mxu0 %v1042
      %v3583 = vpop.f32.mrf.mxu0
      %v3584 = vadd.f32 %v3231, %v3583
      %v3585 = vpop.f32.mrf.mxu0
      %v3586 = vadd.f32 %v3233, %v3585
      %v3587 = vpop.f32.mrf.mxu0
      %v3588 = vadd.f32 %v3235, %v3587
      %v3589 = vpop.f32.mrf.mxu0
      %v3590 = vadd.f32 %v3237, %v3589
      %3591 = vmatprep.mubr.bf16.mxu0 %v1054
      %3592 = vmatmul.mubr.bf16.gmra.mxu0 %v1053
      %v3593 = vpop.f32.mrf.mxu0
      %v3594 = vadd.f32 %v3241, %v3593
      %v3595 = vpop.f32.mrf.mxu0
      %v3596 = vadd.f32 %v3243, %v3595
      %v3597 = vpop.f32.mrf.mxu0
      %v3598 = vadd.f32 %v3245, %v3597
      %v3599 = vpop.f32.mrf.mxu0
      %v3600 = vadd.f32 %v3247, %v3599
      %3601 = vmatprep.mubr.bf16.mxu0 %v1065
      %3602 = vmatmul.mubr.bf16.gmra.mxu0 %v1064
      %v3603 = vpop.f32.mrf.mxu0
      %v3604 = vadd.f32 %v3251, %v3603
      %v3605 = vpop.f32.mrf.mxu0
      %v3606 = vadd.f32 %v3253, %v3605
      %v3607 = vpop.f32.mrf.mxu0
      %v3608 = vadd.f32 %v3255, %v3607
      %v3609 = vpop.f32.mrf.mxu0
      %v3610 = vadd.f32 %v3257, %v3609
      %3611 = vmatprep.mubr.bf16.mxu0 %v1076
      %3612 = vmatmul.mubr.bf16.gmra.mxu0 %v1075
      %v3613 = vpop.f32.mrf.mxu0
      %v3614 = vadd.f32 %v3261, %v3613
      %v3615 = vpop.f32.mrf.mxu0
      %v3616 = vadd.f32 %v3263, %v3615
      %v3617 = vpop.f32.mrf.mxu0
      %v3618 = vadd.f32 %v3265, %v3617
      %v3619 = vpop.f32.mrf.mxu0
      %v3620 = vadd.f32 %v3267, %v3619
      %3621 = vmatprep.mubr.bf16.mxu0 %v1087
      %3622 = vmatmul.mubr.bf16.gmra.mxu0 %v1086
      %v3623 = vpop.f32.mrf.mxu0
      %v3624 = vadd.f32 %v3271, %v3623
      %v3625 = vpop.f32.mrf.mxu0
      %v3626 = vadd.f32 %v3273, %v3625
      %v3627 = vpop.f32.mrf.mxu0
      %v3628 = vadd.f32 %v3275, %v3627
      %v3629 = vpop.f32.mrf.mxu0
      %v3630 = vadd.f32 %v3277, %v3629
      %3631 = vmatprep.mubr.bf16.mxu0 %v1098
      %3632 = vmatmul.mubr.bf16.gmra.mxu0 %v1097
      %v3633 = vpop.f32.mrf.mxu0
      %v3634 = vadd.f32 %v3281, %v3633
      %v3635 = vpop.f32.mrf.mxu0
      %v3636 = vadd.f32 %v3283, %v3635
      %v3637 = vpop.f32.mrf.mxu0
      %v3638 = vadd.f32 %v3285, %v3637
      %v3639 = vpop.f32.mrf.mxu0
      %v3640 = vadd.f32 %v3287, %v3639
      %3641 = vmatprep.mubr.bf16.mxu0 %v1109
      %3642 = vmatmul.mubr.bf16.gmra.mxu0 %v1108
      %v3643 = vpop.f32.mrf.mxu0
      %v3644 = vadd.f32 %v3291, %v3643
      %v3645 = vpop.f32.mrf.mxu0
      %v3646 = vadd.f32 %v3293, %v3645
      %v3647 = vpop.f32.mrf.mxu0
      %v3648 = vadd.f32 %v3295, %v3647
      %v3649 = vpop.f32.mrf.mxu0
      %v3650 = vadd.f32 %v3297, %v3649
      %3651 = vmatprep.mubr.bf16.mxu0 %v1120
      %3652 = vmatmul.mubr.bf16.gmra.mxu0 %v1119
      %v3653 = vpop.f32.mrf.mxu0
      %v3654 = vadd.f32 %v3301, %v3653
      %v3655 = vpop.f32.mrf.mxu0
      %v3656 = vadd.f32 %v3303, %v3655
      %v3657 = vpop.f32.mrf.mxu0
      %v3658 = vadd.f32 %v3305, %v3657
      %v3659 = vpop.f32.mrf.mxu0
      %v3660 = vadd.f32 %v3307, %v3659
      %3661 = vmatprep.mubr.bf16.mxu0 %v1131
      %3662 = vmatmul.mubr.bf16.gmra.mxu0 %v1130
      %v3663 = vpop.f32.mrf.mxu0
      %v3664 = vadd.f32 %v3311, %v3663
      %v3665 = vpop.f32.mrf.mxu0
      %v3666 = vadd.f32 %v3313, %v3665
      %v3667 = vpop.f32.mrf.mxu0
      %v3668 = vadd.f32 %v3315, %v3667
      %v3669 = vpop.f32.mrf.mxu0
      %v3670 = vadd.f32 %v3317, %v3669
      %3671 = vmatprep.mubr.bf16.mxu0 %v1142
      %3672 = vmatmul.mubr.bf16.gmra.mxu0 %v1141
      %v3673 = vpop.f32.mrf.mxu0
      %v3674 = vadd.f32 %v3321, %v3673
      %v3675 = vpop.f32.mrf.mxu0
      %v3676 = vadd.f32 %v3323, %v3675
      %v3677 = vpop.f32.mrf.mxu0
      %v3678 = vadd.f32 %v3325, %v3677
      %v3679 = vpop.f32.mrf.mxu0
      %v3680 = vadd.f32 %v3327, %v3679
      %3681 = vmatprep.mubr.bf16.mxu0 %v1153
      %3682 = vmatmul.mubr.bf16.gmra.mxu0 %v1152
      %v3683 = vpop.f32.mrf.mxu0
      %v3684 = vadd.f32 %v3331, %v3683
      %v3685 = vpop.f32.mrf.mxu0
      %v3686 = vadd.f32 %v3333, %v3685
      %v3687 = vpop.f32.mrf.mxu0
      %v3688 = vadd.f32 %v3335, %v3687
      %v3689 = vpop.f32.mrf.mxu0
      %v3690 = vadd.f32 %v3337, %v3689
      %3691 = vmatprep.mubr.bf16.mxu0 %v1164
      %3692 = vmatmul.mubr.bf16.gmra.mxu0 %v1163
      %v3693 = vpop.f32.mrf.mxu0
      %v3694 = vadd.f32 %v3341, %v3693
      %v3695 = vpop.f32.mrf.mxu0
      %v3696 = vadd.f32 %v3343, %v3695
      %v3697 = vpop.f32.mrf.mxu0
      %v3698 = vadd.f32 %v3345, %v3697
      %v3699 = vpop.f32.mrf.mxu0
      %v3700 = vadd.f32 %v3347, %v3699
      %3701 = vmatprep.mubr.bf16.mxu0 %v1175
      %3702 = vmatmul.mubr.bf16.gmra.mxu0 %v1174
      %v3703 = vpop.f32.mrf.mxu0
      %v3704 = vadd.f32 %v3351, %v3703
      %v3705 = vpop.f32.mrf.mxu0
      %v3706 = vadd.f32 %v3353, %v3705
      %v3707 = vpop.f32.mrf.mxu0
      %v3708 = vadd.f32 %v3355, %v3707
      %v3709 = vpop.f32.mrf.mxu0
      %v3710 = vadd.f32 %v3357, %v3709
      %3711 = vmatprep.mubr.bf16.mxu0 %v1186
      %3712 = vmatmul.mubr.bf16.gmra.mxu0 %v1185
      %v3713 = vpop.f32.mrf.mxu0
      %v3714 = vadd.f32 %v3361, %v3713
      %v3715 = vpop.f32.mrf.mxu0
      %v3716 = vadd.f32 %v3363, %v3715
      %v3717 = vpop.f32.mrf.mxu0
      %v3718 = vadd.f32 %v3365, %v3717
      %v3719 = vpop.f32.mrf.mxu0
      %v3720 = vadd.f32 %v3367, %v3719
      %3721 = vmatprep.mubr.bf16.mxu0 %v1197
      %3722 = vmatmul.mubr.bf16.gmra.mxu0 %v1196
      %v3723 = vpop.f32.mrf.mxu0
      %v3724 = vadd.f32 %v3371, %v3723
      %v3725 = vpop.f32.mrf.mxu0
      %v3726 = vadd.f32 %v3373, %v3725
      %v3727 = vpop.f32.mrf.mxu0
      %v3728 = vadd.f32 %v3375, %v3727
      %v3729 = vpop.f32.mrf.mxu0
      %v3730 = vadd.f32 %v3377, %v3729
      %3731 = vmatprep.mubr.bf16.mxu0 %v1208
      %3732 = vmatmul.mubr.bf16.gmra.mxu0 %v1207
      %v3733 = vpop.f32.mrf.mxu0
      %v3734 = vadd.f32 %v3381, %v3733
      %v3735 = vpop.f32.mrf.mxu0
      %v3736 = vadd.f32 %v3383, %v3735
      %v3737 = vpop.f32.mrf.mxu0
      %v3738 = vadd.f32 %v3385, %v3737
      %v3739 = vpop.f32.mrf.mxu0
      %v3740 = vadd.f32 %v3387, %v3739
      %3741 = vmatprep.mubr.bf16.mxu0 %v1219
      %3742 = vmatmul.mubr.bf16.gmra.mxu0 %v1218
      %v3743 = vpop.f32.mrf.mxu0
      %v3744 = vadd.f32 %v3391, %v3743
      %v3745 = vpop.f32.mrf.mxu0
      %v3746 = vadd.f32 %v3393, %v3745
      %v3747 = vpop.f32.mrf.mxu0
      %v3748 = vadd.f32 %v3395, %v3747
      %v3749 = vpop.f32.mrf.mxu0
      %v3750 = vadd.f32 %v3397, %v3749
      %3751 = vmatprep.mubr.bf16.mxu0 %v1230
      %3752 = vmatmul.mubr.bf16.gmra.mxu0 %v1229
      %v3753 = vpop.f32.mrf.mxu0
      %v3754 = vadd.f32 %v3401, %v3753
      %v3755 = vpop.f32.mrf.mxu0
      %v3756 = vadd.f32 %v3403, %v3755
      %v3757 = vpop.f32.mrf.mxu0
      %v3758 = vadd.f32 %v3405, %v3757
      %v3759 = vpop.f32.mrf.mxu0
      %v3760 = vadd.f32 %v3407, %v3759
      %3761 = vmatprep.mubr.bf16.mxu0 %v1241
      %3762 = vmatmul.mubr.bf16.gmra.mxu0 %v1240
      %v3763 = vpop.f32.mrf.mxu0
      %v3764 = vadd.f32 %v3411, %v3763
      %v3765 = vpop.f32.mrf.mxu0
      %v3766 = vadd.f32 %v3413, %v3765
      %v3767 = vpop.f32.mrf.mxu0
      %v3768 = vadd.f32 %v3415, %v3767
      %v3769 = vpop.f32.mrf.mxu0
      %v3770 = vadd.f32 %v3417, %v3769
      %3771 = vmatprep.mubr.bf16.mxu0 %v1252
      %3772 = vmatmul.mubr.bf16.gmra.mxu0 %v1251
      %v3773 = vpop.f32.mrf.mxu0
      %v3774 = vadd.f32 %v3421, %v3773
      %v3775 = vpop.f32.mrf.mxu0
      %v3776 = vadd.f32 %v3423, %v3775
      %v3777 = vpop.f32.mrf.mxu0
      %v3778 = vadd.f32 %v3425, %v3777
      %v3779 = vpop.f32.mrf.mxu0
      %v3780 = vadd.f32 %v3427, %v3779
      %3781 = vmatprep.mubr.bf16.mxu0 %v1263
      %3782 = vmatmul.mubr.bf16.gmra.mxu0 %v1262
      %v3783 = vpop.f32.mrf.mxu0
      %v3784 = vadd.f32 %v3431, %v3783
      %v3785 = vpop.f32.mrf.mxu0
      %v3786 = vadd.f32 %v3433, %v3785
      %v3787 = vpop.f32.mrf.mxu0
      %v3788 = vadd.f32 %v3435, %v3787
      %v3789 = vpop.f32.mrf.mxu0
      %v3790 = vadd.f32 %v3437, %v3789
      %3791 = vmatprep.mubr.bf16.mxu0 %v1274
      %3792 = vmatmul.mubr.bf16.gmra.mxu0 %v1273
      %v3793 = vpop.f32.mrf.mxu0
      %v3794 = vadd.f32 %v3441, %v3793
      %v3795 = vpop.f32.mrf.mxu0
      %v3796 = vadd.f32 %v3443, %v3795
      %v3797 = vpop.f32.mrf.mxu0
      %v3798 = vadd.f32 %v3445, %v3797
      %v3799 = vpop.f32.mrf.mxu0
      %v3800 = vadd.f32 %v3447, %v3799
      %3801 = vmatprep.mubr.bf16.mxu0 %v1285
      %3802 = vmatmul.mubr.bf16.gmra.mxu0 %v1284
      %v3803 = vpop.f32.mrf.mxu0
      %v3804 = vadd.f32 %v3451, %v3803
      %v3805 = vpop.f32.mrf.mxu0
      %v3806 = vadd.f32 %v3453, %v3805
      %v3807 = vpop.f32.mrf.mxu0
      %v3808 = vadd.f32 %v3455, %v3807
      %v3809 = vpop.f32.mrf.mxu0
      %v3810 = vadd.f32 %v3457, %v3809
      %3811 = vmatprep.mubr.bf16.mxu0 %v1296
      %3812 = vmatmul.mubr.bf16.gmra.mxu0 %v1295
      %v3813 = vpop.f32.mrf.mxu0
      %v3814 = vadd.f32 %v3461, %v3813
      %v3815 = vpop.f32.mrf.mxu0
      %v3816 = vadd.f32 %v3463, %v3815
      %v3817 = vpop.f32.mrf.mxu0
      %v3818 = vadd.f32 %v3465, %v3817
      %v3819 = vpop.f32.mrf.mxu0
      %v3820 = vadd.f32 %v3467, %v3819
      %3821 = vmatprep.mubr.bf16.mxu0 %v1307
      %3822 = vmatmul.mubr.bf16.gmra.mxu0 %v1306
      %v3823 = vpop.f32.mrf.mxu0
      %v3824 = vadd.f32 %v3471, %v3823
      %v3825 = vpop.f32.mrf.mxu0
      %v3826 = vadd.f32 %v3473, %v3825
      %v3827 = vpop.f32.mrf.mxu0
      %v3828 = vadd.f32 %v3475, %v3827
      %v3829 = vpop.f32.mrf.mxu0
      %v3830 = vadd.f32 %v3477, %v3829
      %3831 = vmatprep.mubr.bf16.mxu0 %v1318
      %3832 = vmatmul.mubr.bf16.gmra.mxu0 %v1317
      %v3833 = vpop.f32.mrf.mxu0
      %v3834 = vadd.f32 %v3481, %v3833
      %v3835 = vpop.f32.mrf.mxu0
      %v3836 = vadd.f32 %v3483, %v3835
      %v3837 = vpop.f32.mrf.mxu0
      %v3838 = vadd.f32 %v3485, %v3837
      %v3839 = vpop.f32.mrf.mxu0
      %v3840 = vadd.f32 %v3487, %v3839
      %3841 = vmatprep.mubr.bf16.mxu0 %v1329
      %3842 = vmatmul.mubr.bf16.gmra.mxu0 %v1328
      %v3843 = vpop.f32.mrf.mxu0
      %v3844 = vadd.f32 %v3491, %v3843
      %v3845 = vpop.f32.mrf.mxu0
      %v3846 = vadd.f32 %v3493, %v3845
      %v3847 = vpop.f32.mrf.mxu0
      %v3848 = vadd.f32 %v3495, %v3847
      %v3849 = vpop.f32.mrf.mxu0
      %v3850 = vadd.f32 %v3497, %v3849
      %3851 = vmatprep.mubr.bf16.mxu0 %v1340
      %3852 = vmatmul.mubr.bf16.gmra.mxu0 %v1339
      %v3853 = vpop.f32.mrf.mxu0
      %v3854 = vadd.f32 %v3501, %v3853
      %v3855 = vpop.f32.mrf.mxu0
      %v3856 = vadd.f32 %v3503, %v3855
      %v3857 = vpop.f32.mrf.mxu0
      %v3858 = vadd.f32 %v3505, %v3857
      %v3859 = vpop.f32.mrf.mxu0
      %v3860 = vadd.f32 %v3507, %v3859
      %3861 = vdwg.mxu0
      %3862 = vmatprep.subr.bf16.mxu0 %v2159
      %3863 = vmatpush1.bf16.msra.mxu0 %v2158
      %3864 = vmatprep.subr.bf16.mxu0 %v2157
      %3865 = vmatpush1.bf16.msra.mxu0 %v2156
      %3866 = vmatprep.subr.bf16.mxu0 %v2155
      %3867 = vmatpush1.bf16.msra.mxu0 %v2154
      %3868 = vmatprep.subr.bf16.mxu0 %v2153
      %3869 = vmatpush1.bf16.msra.mxu0 %v2152
      %3870 = vmatprep.subr.bf16.mxu0 %v2151
      %3871 = vmatpush1.bf16.msra.mxu0 %v2150
      %3872 = vmatprep.subr.bf16.mxu0 %v2149
      %3873 = vmatpush1.bf16.msra.mxu0 %v2148
      %3874 = vmatprep.subr.bf16.mxu0 %v2147
      %3875 = vmatpush1.bf16.msra.mxu0 %v2146
      %3876 = vmatprep.subr.bf16.mxu0 %v2145
      %3877 = vmatpush1.bf16.msra.mxu0 %v2144
      %3878 = vmatprep.subr.bf16.mxu0 %v2175
      %3879 = vmatpush2.bf16.msra.mxu0 %v2174
      %3880 = vmatprep.subr.bf16.mxu0 %v2173
      %3881 = vmatpush2.bf16.msra.mxu0 %v2172
      %3882 = vmatprep.subr.bf16.mxu0 %v2171
      %3883 = vmatpush2.bf16.msra.mxu0 %v2170
      %3884 = vmatprep.subr.bf16.mxu0 %v2169
      %3885 = vmatpush2.bf16.msra.mxu0 %v2168
      %3886 = vmatprep.subr.bf16.mxu0 %v2167
      %3887 = vmatpush2.bf16.msra.mxu0 %v2166
      %3888 = vmatprep.subr.bf16.mxu0 %v2165
      %3889 = vmatpush2.bf16.msra.mxu0 %v2164
      %3890 = vmatprep.subr.bf16.mxu0 %v2163
      %3891 = vmatpush2.bf16.msra.mxu0 %v2162
      %3892 = vmatprep.subr.bf16.mxu0 %v2161
      %3893 = vmatpush2.bf16.msra.mxu0 %v2160
      %3894 = vmatprep.mubr.bf16.mxu0 %v1001
      %3895 = vmatmul.mubr.bf16.gmra.mxu0 %v1000
      %v3896 = vpop.f32.mrf.mxu0
      %v3897 = vadd.f32 %v3544, %v3896
      %v3898 = vpop.f32.mrf.mxu0
      %v3899 = vadd.f32 %v3546, %v3898
      %v3900 = vpop.f32.mrf.mxu0
      %v3901 = vadd.f32 %v3548, %v3900
      %v3902 = vpop.f32.mrf.mxu0
      %v3903 = vadd.f32 %v3550, %v3902
      %3904 = vmatprep.mubr.bf16.mxu0 %v1012
      %3905 = vmatmul.mubr.bf16.gmra.mxu0 %v1011
      %v3906 = vpop.f32.mrf.mxu0
      %v3907 = vadd.f32 %v3554, %v3906
      %v3908 = vpop.f32.mrf.mxu0
      %v3909 = vadd.f32 %v3556, %v3908
      %v3910 = vpop.f32.mrf.mxu0
      %v3911 = vadd.f32 %v3558, %v3910
      %v3912 = vpop.f32.mrf.mxu0
      %v3913 = vadd.f32 %v3560, %v3912
      %3914 = vmatprep.mubr.bf16.mxu0 %v1023
      %3915 = vmatmul.mubr.bf16.gmra.mxu0 %v1022
      %v3916 = vpop.f32.mrf.mxu0
      %v3917 = vadd.f32 %v3564, %v3916
      %v3918 = vpop.f32.mrf.mxu0
      %v3919 = vadd.f32 %v3566, %v3918
      %v3920 = vpop.f32.mrf.mxu0
      %v3921 = vadd.f32 %v3568, %v3920
      %v3922 = vpop.f32.mrf.mxu0
      %v3923 = vadd.f32 %v3570, %v3922
      %3924 = vmatprep.mubr.bf16.mxu0 %v1034
      %3925 = vmatmul.mubr.bf16.gmra.mxu0 %v1033
      %v3926 = vpop.f32.mrf.mxu0
      %v3927 = vadd.f32 %v3574, %v3926
      %v3928 = vpop.f32.mrf.mxu0
      %v3929 = vadd.f32 %v3576, %v3928
      %v3930 = vpop.f32.mrf.mxu0
      %v3931 = vadd.f32 %v3578, %v3930
      %v3932 = vpop.f32.mrf.mxu0
      %v3933 = vadd.f32 %v3580, %v3932
      %3934 = vmatprep.mubr.bf16.mxu0 %v1045
      %3935 = vmatmul.mubr.bf16.gmra.mxu0 %v1044
      %v3936 = vpop.f32.mrf.mxu0
      %v3937 = vadd.f32 %v3584, %v3936
      %v3938 = vpop.f32.mrf.mxu0
      %v3939 = vadd.f32 %v3586, %v3938
      %v3940 = vpop.f32.mrf.mxu0
      %v3941 = vadd.f32 %v3588, %v3940
      %v3942 = vpop.f32.mrf.mxu0
      %v3943 = vadd.f32 %v3590, %v3942
      %3944 = vmatprep.mubr.bf16.mxu0 %v1056
      %3945 = vmatmul.mubr.bf16.gmra.mxu0 %v1055
      %v3946 = vpop.f32.mrf.mxu0
      %v3947 = vadd.f32 %v3594, %v3946
      %v3948 = vpop.f32.mrf.mxu0
      %v3949 = vadd.f32 %v3596, %v3948
      %v3950 = vpop.f32.mrf.mxu0
      %v3951 = vadd.f32 %v3598, %v3950
      %v3952 = vpop.f32.mrf.mxu0
      %v3953 = vadd.f32 %v3600, %v3952
      %3954 = vmatprep.mubr.bf16.mxu0 %v1067
      %3955 = vmatmul.mubr.bf16.gmra.mxu0 %v1066
      %v3956 = vpop.f32.mrf.mxu0
      %v3957 = vadd.f32 %v3604, %v3956
      %v3958 = vpop.f32.mrf.mxu0
      %v3959 = vadd.f32 %v3606, %v3958
      %v3960 = vpop.f32.mrf.mxu0
      %v3961 = vadd.f32 %v3608, %v3960
      %v3962 = vpop.f32.mrf.mxu0
      %v3963 = vadd.f32 %v3610, %v3962
      %3964 = vmatprep.mubr.bf16.mxu0 %v1078
      %3965 = vmatmul.mubr.bf16.gmra.mxu0 %v1077
      %v3966 = vpop.f32.mrf.mxu0
      %v3967 = vadd.f32 %v3614, %v3966
      %v3968 = vpop.f32.mrf.mxu0
      %v3969 = vadd.f32 %v3616, %v3968
      %v3970 = vpop.f32.mrf.mxu0
      %v3971 = vadd.f32 %v3618, %v3970
      %v3972 = vpop.f32.mrf.mxu0
      %v3973 = vadd.f32 %v3620, %v3972
      %3974 = vmatprep.mubr.bf16.mxu0 %v1089
      %3975 = vmatmul.mubr.bf16.gmra.mxu0 %v1088
      %v3976 = vpop.f32.mrf.mxu0
      %v3977 = vadd.f32 %v3624, %v3976
      %v3978 = vpop.f32.mrf.mxu0
      %v3979 = vadd.f32 %v3626, %v3978
      %v3980 = vpop.f32.mrf.mxu0
      %v3981 = vadd.f32 %v3628, %v3980
      %v3982 = vpop.f32.mrf.mxu0
      %v3983 = vadd.f32 %v3630, %v3982
      %3984 = vmatprep.mubr.bf16.mxu0 %v1100
      %3985 = vmatmul.mubr.bf16.gmra.mxu0 %v1099
      %v3986 = vpop.f32.mrf.mxu0
      %v3987 = vadd.f32 %v3634, %v3986
      %v3988 = vpop.f32.mrf.mxu0
      %v3989 = vadd.f32 %v3636, %v3988
      %v3990 = vpop.f32.mrf.mxu0
      %v3991 = vadd.f32 %v3638, %v3990
      %v3992 = vpop.f32.mrf.mxu0
      %v3993 = vadd.f32 %v3640, %v3992
      %3994 = vmatprep.mubr.bf16.mxu0 %v1111
      %3995 = vmatmul.mubr.bf16.gmra.mxu0 %v1110
      %v3996 = vpop.f32.mrf.mxu0
      %v3997 = vadd.f32 %v3644, %v3996
      %v3998 = vpop.f32.mrf.mxu0
      %v3999 = vadd.f32 %v3646, %v3998
      %v4000 = vpop.f32.mrf.mxu0
      %v4001 = vadd.f32 %v3648, %v4000
      %v4002 = vpop.f32.mrf.mxu0
      %v4003 = vadd.f32 %v3650, %v4002
      %4004 = vmatprep.mubr.bf16.mxu0 %v1122
      %4005 = vmatmul.mubr.bf16.gmra.mxu0 %v1121
      %v4006 = vpop.f32.mrf.mxu0
      %v4007 = vadd.f32 %v3654, %v4006
      %v4008 = vpop.f32.mrf.mxu0
      %v4009 = vadd.f32 %v3656, %v4008
      %v4010 = vpop.f32.mrf.mxu0
      %v4011 = vadd.f32 %v3658, %v4010
      %v4012 = vpop.f32.mrf.mxu0
      %v4013 = vadd.f32 %v3660, %v4012
      %4014 = vmatprep.mubr.bf16.mxu0 %v1133
      %4015 = vmatmul.mubr.bf16.gmra.mxu0 %v1132
      %v4016 = vpop.f32.mrf.mxu0
      %v4017 = vadd.f32 %v3664, %v4016
      %v4018 = vpop.f32.mrf.mxu0
      %v4019 = vadd.f32 %v3666, %v4018
      %v4020 = vpop.f32.mrf.mxu0
      %v4021 = vadd.f32 %v3668, %v4020
      %v4022 = vpop.f32.mrf.mxu0
      %v4023 = vadd.f32 %v3670, %v4022
      %4024 = vmatprep.mubr.bf16.mxu0 %v1144
      %4025 = vmatmul.mubr.bf16.gmra.mxu0 %v1143
      %v4026 = vpop.f32.mrf.mxu0
      %v4027 = vadd.f32 %v3674, %v4026
      %v4028 = vpop.f32.mrf.mxu0
      %v4029 = vadd.f32 %v3676, %v4028
      %v4030 = vpop.f32.mrf.mxu0
      %v4031 = vadd.f32 %v3678, %v4030
      %v4032 = vpop.f32.mrf.mxu0
      %v4033 = vadd.f32 %v3680, %v4032
      %4034 = vmatprep.mubr.bf16.mxu0 %v1155
      %4035 = vmatmul.mubr.bf16.gmra.mxu0 %v1154
      %v4036 = vpop.f32.mrf.mxu0
      %v4037 = vadd.f32 %v3684, %v4036
      %v4038 = vpop.f32.mrf.mxu0
      %v4039 = vadd.f32 %v3686, %v4038
      %v4040 = vpop.f32.mrf.mxu0
      %v4041 = vadd.f32 %v3688, %v4040
      %v4042 = vpop.f32.mrf.mxu0
      %v4043 = vadd.f32 %v3690, %v4042
      %4044 = vmatprep.mubr.bf16.mxu0 %v1166
      %4045 = vmatmul.mubr.bf16.gmra.mxu0 %v1165
      %v4046 = vpop.f32.mrf.mxu0
      %v4047 = vadd.f32 %v3694, %v4046
      %v4048 = vpop.f32.mrf.mxu0
      %v4049 = vadd.f32 %v3696, %v4048
      %v4050 = vpop.f32.mrf.mxu0
      %v4051 = vadd.f32 %v3698, %v4050
      %v4052 = vpop.f32.mrf.mxu0
      %v4053 = vadd.f32 %v3700, %v4052
      %4054 = vmatprep.mubr.bf16.mxu0 %v1177
      %4055 = vmatmul.mubr.bf16.gmra.mxu0 %v1176
      %v4056 = vpop.f32.mrf.mxu0
      %v4057 = vadd.f32 %v3704, %v4056
      %v4058 = vpop.f32.mrf.mxu0
      %v4059 = vadd.f32 %v3706, %v4058
      %v4060 = vpop.f32.mrf.mxu0
      %v4061 = vadd.f32 %v3708, %v4060
      %v4062 = vpop.f32.mrf.mxu0
      %v4063 = vadd.f32 %v3710, %v4062
      %4064 = vmatprep.mubr.bf16.mxu0 %v1188
      %4065 = vmatmul.mubr.bf16.gmra.mxu0 %v1187
      %v4066 = vpop.f32.mrf.mxu0
      %v4067 = vadd.f32 %v3714, %v4066
      %v4068 = vpop.f32.mrf.mxu0
      %v4069 = vadd.f32 %v3716, %v4068
      %v4070 = vpop.f32.mrf.mxu0
      %v4071 = vadd.f32 %v3718, %v4070
      %v4072 = vpop.f32.mrf.mxu0
      %v4073 = vadd.f32 %v3720, %v4072
      %4074 = vmatprep.mubr.bf16.mxu0 %v1199
      %4075 = vmatmul.mubr.bf16.gmra.mxu0 %v1198
      %v4076 = vpop.f32.mrf.mxu0
      %v4077 = vadd.f32 %v3724, %v4076
      %v4078 = vpop.f32.mrf.mxu0
      %v4079 = vadd.f32 %v3726, %v4078
      %v4080 = vpop.f32.mrf.mxu0
      %v4081 = vadd.f32 %v3728, %v4080
      %v4082 = vpop.f32.mrf.mxu0
      %v4083 = vadd.f32 %v3730, %v4082
      %4084 = vmatprep.mubr.bf16.mxu0 %v1210
      %4085 = vmatmul.mubr.bf16.gmra.mxu0 %v1209
      %v4086 = vpop.f32.mrf.mxu0
      %v4087 = vadd.f32 %v3734, %v4086
      %v4088 = vpop.f32.mrf.mxu0
      %v4089 = vadd.f32 %v3736, %v4088
      %v4090 = vpop.f32.mrf.mxu0
      %v4091 = vadd.f32 %v3738, %v4090
      %v4092 = vpop.f32.mrf.mxu0
      %v4093 = vadd.f32 %v3740, %v4092
      %4094 = vmatprep.mubr.bf16.mxu0 %v1221
      %4095 = vmatmul.mubr.bf16.gmra.mxu0 %v1220
      %v4096 = vpop.f32.mrf.mxu0
      %v4097 = vadd.f32 %v3744, %v4096
      %v4098 = vpop.f32.mrf.mxu0
      %v4099 = vadd.f32 %v3746, %v4098
      %v4100 = vpop.f32.mrf.mxu0
      %v4101 = vadd.f32 %v3748, %v4100
      %v4102 = vpop.f32.mrf.mxu0
      %v4103 = vadd.f32 %v3750, %v4102
      %4104 = vmatprep.mubr.bf16.mxu0 %v1232
      %4105 = vmatmul.mubr.bf16.gmra.mxu0 %v1231
      %v4106 = vpop.f32.mrf.mxu0
      %v4107 = vadd.f32 %v3754, %v4106
      %v4108 = vpop.f32.mrf.mxu0
      %v4109 = vadd.f32 %v3756, %v4108
      %v4110 = vpop.f32.mrf.mxu0
      %v4111 = vadd.f32 %v3758, %v4110
      %v4112 = vpop.f32.mrf.mxu0
      %v4113 = vadd.f32 %v3760, %v4112
      %4114 = vmatprep.mubr.bf16.mxu0 %v1243
      %4115 = vmatmul.mubr.bf16.gmra.mxu0 %v1242
      %v4116 = vpop.f32.mrf.mxu0
      %v4117 = vadd.f32 %v3764, %v4116
      %v4118 = vpop.f32.mrf.mxu0
      %v4119 = vadd.f32 %v3766, %v4118
      %v4120 = vpop.f32.mrf.mxu0
      %v4121 = vadd.f32 %v3768, %v4120
      %v4122 = vpop.f32.mrf.mxu0
      %v4123 = vadd.f32 %v3770, %v4122
      %4124 = vmatprep.mubr.bf16.mxu0 %v1254
      %4125 = vmatmul.mubr.bf16.gmra.mxu0 %v1253
      %v4126 = vpop.f32.mrf.mxu0
      %v4127 = vadd.f32 %v3774, %v4126
      %v4128 = vpop.f32.mrf.mxu0
      %v4129 = vadd.f32 %v3776, %v4128
      %v4130 = vpop.f32.mrf.mxu0
      %v4131 = vadd.f32 %v3778, %v4130
      %v4132 = vpop.f32.mrf.mxu0
      %v4133 = vadd.f32 %v3780, %v4132
      %4134 = vmatprep.mubr.bf16.mxu0 %v1265
      %4135 = vmatmul.mubr.bf16.gmra.mxu0 %v1264
      %v4136 = vpop.f32.mrf.mxu0
      %v4137 = vadd.f32 %v3784, %v4136
      %v4138 = vpop.f32.mrf.mxu0
      %v4139 = vadd.f32 %v3786, %v4138
      %v4140 = vpop.f32.mrf.mxu0
      %v4141 = vadd.f32 %v3788, %v4140
      %v4142 = vpop.f32.mrf.mxu0
      %v4143 = vadd.f32 %v3790, %v4142
      %4144 = vmatprep.mubr.bf16.mxu0 %v1276
      %4145 = vmatmul.mubr.bf16.gmra.mxu0 %v1275
      %v4146 = vpop.f32.mrf.mxu0
      %v4147 = vadd.f32 %v3794, %v4146
      %v4148 = vpop.f32.mrf.mxu0
      %v4149 = vadd.f32 %v3796, %v4148
      %v4150 = vpop.f32.mrf.mxu0
      %v4151 = vadd.f32 %v3798, %v4150
      %v4152 = vpop.f32.mrf.mxu0
      %v4153 = vadd.f32 %v3800, %v4152
      %4154 = vmatprep.mubr.bf16.mxu0 %v1287
      %4155 = vmatmul.mubr.bf16.gmra.mxu0 %v1286
      %v4156 = vpop.f32.mrf.mxu0
      %v4157 = vadd.f32 %v3804, %v4156
      %v4158 = vpop.f32.mrf.mxu0
      %v4159 = vadd.f32 %v3806, %v4158
      %v4160 = vpop.f32.mrf.mxu0
      %v4161 = vadd.f32 %v3808, %v4160
      %v4162 = vpop.f32.mrf.mxu0
      %v4163 = vadd.f32 %v3810, %v4162
      %4164 = vmatprep.mubr.bf16.mxu0 %v1298
      %4165 = vmatmul.mubr.bf16.gmra.mxu0 %v1297
      %v4166 = vpop.f32.mrf.mxu0
      %v4167 = vadd.f32 %v3814, %v4166
      %v4168 = vpop.f32.mrf.mxu0
      %v4169 = vadd.f32 %v3816, %v4168
      %v4170 = vpop.f32.mrf.mxu0
      %v4171 = vadd.f32 %v3818, %v4170
      %v4172 = vpop.f32.mrf.mxu0
      %v4173 = vadd.f32 %v3820, %v4172
      %4174 = vmatprep.mubr.bf16.mxu0 %v1309
      %4175 = vmatmul.mubr.bf16.gmra.mxu0 %v1308
      %v4176 = vpop.f32.mrf.mxu0
      %v4177 = vadd.f32 %v3824, %v4176
      %v4178 = vpop.f32.mrf.mxu0
      %v4179 = vadd.f32 %v3826, %v4178
      %v4180 = vpop.f32.mrf.mxu0
      %v4181 = vadd.f32 %v3828, %v4180
      %v4182 = vpop.f32.mrf.mxu0
      %v4183 = vadd.f32 %v3830, %v4182
      %4184 = vmatprep.mubr.bf16.mxu0 %v1320
      %4185 = vmatmul.mubr.bf16.gmra.mxu0 %v1319
      %v4186 = vpop.f32.mrf.mxu0
      %v4187 = vadd.f32 %v3834, %v4186
      %v4188 = vpop.f32.mrf.mxu0
      %v4189 = vadd.f32 %v3836, %v4188
      %v4190 = vpop.f32.mrf.mxu0
      %v4191 = vadd.f32 %v3838, %v4190
      %v4192 = vpop.f32.mrf.mxu0
      %v4193 = vadd.f32 %v3840, %v4192
      %4194 = vmatprep.mubr.bf16.mxu0 %v1331
      %4195 = vmatmul.mubr.bf16.gmra.mxu0 %v1330
      %v4196 = vpop.f32.mrf.mxu0
      %v4197 = vadd.f32 %v3844, %v4196
      %v4198 = vpop.f32.mrf.mxu0
      %v4199 = vadd.f32 %v3846, %v4198
      %v4200 = vpop.f32.mrf.mxu0
      %v4201 = vadd.f32 %v3848, %v4200
      %v4202 = vpop.f32.mrf.mxu0
      %v4203 = vadd.f32 %v3850, %v4202
      %4204 = vmatprep.mubr.bf16.mxu0 %v1342
      %4205 = vmatmul.mubr.bf16.gmra.mxu0 %v1341
      %v4206 = vpop.f32.mrf.mxu0
      %v4207 = vadd.f32 %v3854, %v4206
      %v4208 = vpop.f32.mrf.mxu0
      %v4209 = vadd.f32 %v3856, %v4208
      %v4210 = vpop.f32.mrf.mxu0
      %v4211 = vadd.f32 %v3858, %v4210
      %v4212 = vpop.f32.mrf.mxu0
      %v4213 = vadd.f32 %v3860, %v4212
      %4214 = vdwg.mxu0
      %4215 = vmatprep.subr.bf16.mxu0 0
      %4216 = vmatpush1.bf16.msra.mxu0 0
      %4217 = vmatprep.subr.bf16.mxu0 0
      %4218 = vmatpush1.bf16.msra.mxu0 0
      %4219 = vmatprep.subr.bf16.mxu0 0
      %4220 = vmatpush1.bf16.msra.mxu0 0
      %4221 = vmatprep.subr.bf16.mxu0 0
      %4222 = vmatpush1.bf16.msra.mxu0 0
      %4223 = vmatprep.subr.bf16.mxu0 0
      %4224 = vmatpush1.bf16.msra.mxu0 0
      %4225 = vmatprep.subr.bf16.mxu0 %v2448
      %4226 = vmatpush1.bf16.msra.mxu0 %v2445
      %4227 = vmatprep.subr.bf16.mxu0 %v2179
      %4228 = vmatpush1.bf16.msra.mxu0 %v2178
      %4229 = vmatprep.subr.bf16.mxu0 %v2177
      %4230 = vmatpush1.bf16.msra.mxu0 %v2176
      %4231 = vmatprep.subr.bf16.mxu0 0
      %4232 = vmatpush2.bf16.msra.mxu0 0
      %4233 = vmatprep.subr.bf16.mxu0 0
      %4234 = vmatpush2.bf16.msra.mxu0 0
      %4235 = vmatprep.subr.bf16.mxu0 0
      %4236 = vmatpush2.bf16.msra.mxu0 0
      %4237 = vmatprep.subr.bf16.mxu0 0
      %4238 = vmatpush2.bf16.msra.mxu0 0
      %4239 = vmatprep.subr.bf16.mxu0 0
      %4240 = vmatpush2.bf16.msra.mxu0 0
      %4241 = vmatprep.subr.bf16.mxu0 0
      %4242 = vmatpush2.bf16.msra.mxu0 0
      %4243 = vmatprep.subr.bf16.mxu0 0
      %4244 = vmatpush2.bf16.msra.mxu0 0
      %4245 = vmatprep.subr.bf16.mxu0 0
      %4246 = vmatpush2.bf16.msra.mxu0 0
      %4247 = vmatprep.mubr.bf16.mxu0 0
      %4248 = vmatmul.mubr.bf16.gmra.mxu0 %v2348
      %v4249 = vpop.f32.mrf.mxu0
      %v4250 = vadd.f32 %v3897, %v4249
      %v4251 = vpop.f32.mrf.mxu0
      %v4252 = vadd.f32 %v3899, %v4251
      %v4253 = vpop.f32.mrf.mxu0
      %v4254 = vadd.f32 %v3901, %v4253
      %v4255 = vpop.f32.mrf.mxu0
      %v4256 = vadd.f32 %v3903, %v4255
      %4257 = vmatprep.mubr.bf16.mxu0 0
      %4258 = vmatmul.mubr.bf16.gmra.mxu0 %v2351
      %v4259 = vpop.f32.mrf.mxu0
      %v4260 = vadd.f32 %v3907, %v4259
      %v4261 = vpop.f32.mrf.mxu0
      %v4262 = vadd.f32 %v3909, %v4261
      %v4263 = vpop.f32.mrf.mxu0
      %v4264 = vadd.f32 %v3911, %v4263
      %v4265 = vpop.f32.mrf.mxu0
      %v4266 = vadd.f32 %v3913, %v4265
      %4267 = vmatprep.mubr.bf16.mxu0 0
      %4268 = vmatmul.mubr.bf16.gmra.mxu0 %v2354
      %v4269 = vpop.f32.mrf.mxu0
      %v4270 = vadd.f32 %v3917, %v4269
      %v4271 = vpop.f32.mrf.mxu0
      %v4272 = vadd.f32 %v3919, %v4271
      %v4273 = vpop.f32.mrf.mxu0
      %v4274 = vadd.f32 %v3921, %v4273
      %v4275 = vpop.f32.mrf.mxu0
      %v4276 = vadd.f32 %v3923, %v4275
      %4277 = vmatprep.mubr.bf16.mxu0 0
      %4278 = vmatmul.mubr.bf16.gmra.mxu0 %v2357
      %v4279 = vpop.f32.mrf.mxu0
      %v4280 = vadd.f32 %v3927, %v4279
      %v4281 = vpop.f32.mrf.mxu0
      %v4282 = vadd.f32 %v3929, %v4281
      %v4283 = vpop.f32.mrf.mxu0
      %v4284 = vadd.f32 %v3931, %v4283
      %v4285 = vpop.f32.mrf.mxu0
      %v4286 = vadd.f32 %v3933, %v4285
      %4287 = vmatprep.mubr.bf16.mxu0 0
      %4288 = vmatmul.mubr.bf16.gmra.mxu0 %v2360
      %v4289 = vpop.f32.mrf.mxu0
      %v4290 = vadd.f32 %v3937, %v4289
      %v4291 = vpop.f32.mrf.mxu0
      %v4292 = vadd.f32 %v3939, %v4291
      %v4293 = vpop.f32.mrf.mxu0
      %v4294 = vadd.f32 %v3941, %v4293
      %v4295 = vpop.f32.mrf.mxu0
      %v4296 = vadd.f32 %v3943, %v4295
      %4297 = vmatprep.mubr.bf16.mxu0 0
      %4298 = vmatmul.mubr.bf16.gmra.mxu0 %v2363
      %v4299 = vpop.f32.mrf.mxu0
      %v4300 = vadd.f32 %v3947, %v4299
      %v4301 = vpop.f32.mrf.mxu0
      %v4302 = vadd.f32 %v3949, %v4301
      %v4303 = vpop.f32.mrf.mxu0
      %v4304 = vadd.f32 %v3951, %v4303
      %v4305 = vpop.f32.mrf.mxu0
      %v4306 = vadd.f32 %v3953, %v4305
      %4307 = vmatprep.mubr.bf16.mxu0 0
      %4308 = vmatmul.mubr.bf16.gmra.mxu0 %v2366
      %v4309 = vpop.f32.mrf.mxu0
      %v4310 = vadd.f32 %v3957, %v4309
      %v4311 = vpop.f32.mrf.mxu0
      %v4312 = vadd.f32 %v3959, %v4311
      %v4313 = vpop.f32.mrf.mxu0
      %v4314 = vadd.f32 %v3961, %v4313
      %v4315 = vpop.f32.mrf.mxu0
      %v4316 = vadd.f32 %v3963, %v4315
      %4317 = vmatprep.mubr.bf16.mxu0 0
      %4318 = vmatmul.mubr.bf16.gmra.mxu0 %v2369
      %v4319 = vpop.f32.mrf.mxu0
      %v4320 = vadd.f32 %v3967, %v4319
      %v4321 = vpop.f32.mrf.mxu0
      %v4322 = vadd.f32 %v3969, %v4321
      %v4323 = vpop.f32.mrf.mxu0
      %v4324 = vadd.f32 %v3971, %v4323
      %v4325 = vpop.f32.mrf.mxu0
      %v4326 = vadd.f32 %v3973, %v4325
      %4327 = vmatprep.mubr.bf16.mxu0 0
      %4328 = vmatmul.mubr.bf16.gmra.mxu0 %v2372
      %v4329 = vpop.f32.mrf.mxu0
      %v4330 = vadd.f32 %v3977, %v4329
      %v4331 = vpop.f32.mrf.mxu0
      %v4332 = vadd.f32 %v3979, %v4331
      %v4333 = vpop.f32.mrf.mxu0
      %v4334 = vadd.f32 %v3981, %v4333
      %v4335 = vpop.f32.mrf.mxu0
      %v4336 = vadd.f32 %v3983, %v4335
      %4337 = vmatprep.mubr.bf16.mxu0 0
      %4338 = vmatmul.mubr.bf16.gmra.mxu0 %v2375
      %v4339 = vpop.f32.mrf.mxu0
      %v4340 = vadd.f32 %v3987, %v4339
      %v4341 = vpop.f32.mrf.mxu0
      %v4342 = vadd.f32 %v3989, %v4341
      %v4343 = vpop.f32.mrf.mxu0
      %v4344 = vadd.f32 %v3991, %v4343
      %v4345 = vpop.f32.mrf.mxu0
      %v4346 = vadd.f32 %v3993, %v4345
      %4347 = vmatprep.mubr.bf16.mxu0 0
      %4348 = vmatmul.mubr.bf16.gmra.mxu0 %v2378
      %v4349 = vpop.f32.mrf.mxu0
      %v4350 = vadd.f32 %v3997, %v4349
      %v4351 = vpop.f32.mrf.mxu0
      %v4352 = vadd.f32 %v3999, %v4351
      %v4353 = vpop.f32.mrf.mxu0
      %v4354 = vadd.f32 %v4001, %v4353
      %v4355 = vpop.f32.mrf.mxu0
      %v4356 = vadd.f32 %v4003, %v4355
      %4357 = vmatprep.mubr.bf16.mxu0 0
      %4358 = vmatmul.mubr.bf16.gmra.mxu0 %v2381
      %v4359 = vpop.f32.mrf.mxu0
      %v4360 = vadd.f32 %v4007, %v4359
      %v4361 = vpop.f32.mrf.mxu0
      %v4362 = vadd.f32 %v4009, %v4361
      %v4363 = vpop.f32.mrf.mxu0
      %v4364 = vadd.f32 %v4011, %v4363
      %v4365 = vpop.f32.mrf.mxu0
      %v4366 = vadd.f32 %v4013, %v4365
      %4367 = vmatprep.mubr.bf16.mxu0 0
      %4368 = vmatmul.mubr.bf16.gmra.mxu0 %v2384
      %v4369 = vpop.f32.mrf.mxu0
      %v4370 = vadd.f32 %v4017, %v4369
      %v4371 = vpop.f32.mrf.mxu0
      %v4372 = vadd.f32 %v4019, %v4371
      %v4373 = vpop.f32.mrf.mxu0
      %v4374 = vadd.f32 %v4021, %v4373
      %v4375 = vpop.f32.mrf.mxu0
      %v4376 = vadd.f32 %v4023, %v4375
      %4377 = vmatprep.mubr.bf16.mxu0 0
      %4378 = vmatmul.mubr.bf16.gmra.mxu0 %v2387
      %v4379 = vpop.f32.mrf.mxu0
      %v4380 = vadd.f32 %v4027, %v4379
      %v4381 = vpop.f32.mrf.mxu0
      %v4382 = vadd.f32 %v4029, %v4381
      %v4383 = vpop.f32.mrf.mxu0
      %v4384 = vadd.f32 %v4031, %v4383
      %v4385 = vpop.f32.mrf.mxu0
      %v4386 = vadd.f32 %v4033, %v4385
      %4387 = vmatprep.mubr.bf16.mxu0 0
      %4388 = vmatmul.mubr.bf16.gmra.mxu0 %v2390
      %v4389 = vpop.f32.mrf.mxu0
      %v4390 = vadd.f32 %v4037, %v4389
      %v4391 = vpop.f32.mrf.mxu0
      %v4392 = vadd.f32 %v4039, %v4391
      %v4393 = vpop.f32.mrf.mxu0
      %v4394 = vadd.f32 %v4041, %v4393
      %v4395 = vpop.f32.mrf.mxu0
      %v4396 = vadd.f32 %v4043, %v4395
      %4397 = vmatprep.mubr.bf16.mxu0 0
      %4398 = vmatmul.mubr.bf16.gmra.mxu0 %v2393
      %v4399 = vpop.f32.mrf.mxu0
      %v4400 = vadd.f32 %v4047, %v4399
      %v4401 = vpop.f32.mrf.mxu0
      %v4402 = vadd.f32 %v4049, %v4401
      %v4403 = vpop.f32.mrf.mxu0
      %v4404 = vadd.f32 %v4051, %v4403
      %v4405 = vpop.f32.mrf.mxu0
      %v4406 = vadd.f32 %v4053, %v4405
      %4407 = vmatprep.mubr.bf16.mxu0 0
      %4408 = vmatmul.mubr.bf16.gmra.mxu0 %v2396
      %v4409 = vpop.f32.mrf.mxu0
      %v4410 = vadd.f32 %v4057, %v4409
      %v4411 = vpop.f32.mrf.mxu0
      %v4412 = vadd.f32 %v4059, %v4411
      %v4413 = vpop.f32.mrf.mxu0
      %v4414 = vadd.f32 %v4061, %v4413
      %v4415 = vpop.f32.mrf.mxu0
      %v4416 = vadd.f32 %v4063, %v4415
      %4417 = vmatprep.mubr.bf16.mxu0 0
      %4418 = vmatmul.mubr.bf16.gmra.mxu0 %v2399
      %v4419 = vpop.f32.mrf.mxu0
      %v4420 = vadd.f32 %v4067, %v4419
      %v4421 = vpop.f32.mrf.mxu0
      %v4422 = vadd.f32 %v4069, %v4421
      %v4423 = vpop.f32.mrf.mxu0
      %v4424 = vadd.f32 %v4071, %v4423
      %v4425 = vpop.f32.mrf.mxu0
      %v4426 = vadd.f32 %v4073, %v4425
      %4427 = vmatprep.mubr.bf16.mxu0 0
      %4428 = vmatmul.mubr.bf16.gmra.mxu0 %v2402
      %v4429 = vpop.f32.mrf.mxu0
      %v4430 = vadd.f32 %v4077, %v4429
      %v4431 = vpop.f32.mrf.mxu0
      %v4432 = vadd.f32 %v4079, %v4431
      %v4433 = vpop.f32.mrf.mxu0
      %v4434 = vadd.f32 %v4081, %v4433
      %v4435 = vpop.f32.mrf.mxu0
      %v4436 = vadd.f32 %v4083, %v4435
      %4437 = vmatprep.mubr.bf16.mxu0 0
      %4438 = vmatmul.mubr.bf16.gmra.mxu0 %v2405
      %v4439 = vpop.f32.mrf.mxu0
      %v4440 = vadd.f32 %v4087, %v4439
      %v4441 = vpop.f32.mrf.mxu0
      %v4442 = vadd.f32 %v4089, %v4441
      %v4443 = vpop.f32.mrf.mxu0
      %v4444 = vadd.f32 %v4091, %v4443
      %v4445 = vpop.f32.mrf.mxu0
      %v4446 = vadd.f32 %v4093, %v4445
      %4447 = vmatprep.mubr.bf16.mxu0 0
      %4448 = vmatmul.mubr.bf16.gmra.mxu0 %v2408
      %v4449 = vpop.f32.mrf.mxu0
      %v4450 = vadd.f32 %v4097, %v4449
      %v4451 = vpop.f32.mrf.mxu0
      %v4452 = vadd.f32 %v4099, %v4451
      %v4453 = vpop.f32.mrf.mxu0
      %v4454 = vadd.f32 %v4101, %v4453
      %v4455 = vpop.f32.mrf.mxu0
      %v4456 = vadd.f32 %v4103, %v4455
      %4457 = vmatprep.mubr.bf16.mxu0 0
      %4458 = vmatmul.mubr.bf16.gmra.mxu0 %v2411
      %v4459 = vpop.f32.mrf.mxu0
      %v4460 = vadd.f32 %v4107, %v4459
      %v4461 = vpop.f32.mrf.mxu0
      %v4462 = vadd.f32 %v4109, %v4461
      %v4463 = vpop.f32.mrf.mxu0
      %v4464 = vadd.f32 %v4111, %v4463
      %v4465 = vpop.f32.mrf.mxu0
      %v4466 = vadd.f32 %v4113, %v4465
      %4467 = vmatprep.mubr.bf16.mxu0 0
      %4468 = vmatmul.mubr.bf16.gmra.mxu0 %v2414
      %v4469 = vpop.f32.mrf.mxu0
      %v4470 = vadd.f32 %v4117, %v4469
      %v4471 = vpop.f32.mrf.mxu0
      %v4472 = vadd.f32 %v4119, %v4471
      %v4473 = vpop.f32.mrf.mxu0
      %v4474 = vadd.f32 %v4121, %v4473
      %v4475 = vpop.f32.mrf.mxu0
      %v4476 = vadd.f32 %v4123, %v4475
      %4477 = vmatprep.mubr.bf16.mxu0 0
      %4478 = vmatmul.mubr.bf16.gmra.mxu0 %v2417
      %v4479 = vpop.f32.mrf.mxu0
      %v4480 = vadd.f32 %v4127, %v4479
      %v4481 = vpop.f32.mrf.mxu0
      %v4482 = vadd.f32 %v4129, %v4481
      %v4483 = vpop.f32.mrf.mxu0
      %v4484 = vadd.f32 %v4131, %v4483
      %v4485 = vpop.f32.mrf.mxu0
      %v4486 = vadd.f32 %v4133, %v4485
      %4487 = vmatprep.mubr.bf16.mxu0 0
      %4488 = vmatmul.mubr.bf16.gmra.mxu0 %v2420
      %v4489 = vpop.f32.mrf.mxu0
      %v4490 = vadd.f32 %v4137, %v4489
      %v4491 = vpop.f32.mrf.mxu0
      %v4492 = vadd.f32 %v4139, %v4491
      %v4493 = vpop.f32.mrf.mxu0
      %v4494 = vadd.f32 %v4141, %v4493
      %v4495 = vpop.f32.mrf.mxu0
      %v4496 = vadd.f32 %v4143, %v4495
      %4497 = vmatprep.mubr.bf16.mxu0 0
      %4498 = vmatmul.mubr.bf16.gmra.mxu0 %v2423
      %v4499 = vpop.f32.mrf.mxu0
      %v4500 = vadd.f32 %v4147, %v4499
      %v4501 = vpop.f32.mrf.mxu0
      %v4502 = vadd.f32 %v4149, %v4501
      %v4503 = vpop.f32.mrf.mxu0
      %v4504 = vadd.f32 %v4151, %v4503
      %v4505 = vpop.f32.mrf.mxu0
      %v4506 = vadd.f32 %v4153, %v4505
      %4507 = vmatprep.mubr.bf16.mxu0 0
      %4508 = vmatmul.mubr.bf16.gmra.mxu0 %v2426
      %v4509 = vpop.f32.mrf.mxu0
      %v4510 = vadd.f32 %v4157, %v4509
      %v4511 = vpop.f32.mrf.mxu0
      %v4512 = vadd.f32 %v4159, %v4511
      %v4513 = vpop.f32.mrf.mxu0
      %v4514 = vadd.f32 %v4161, %v4513
      %v4515 = vpop.f32.mrf.mxu0
      %v4516 = vadd.f32 %v4163, %v4515
      %4517 = vmatprep.mubr.bf16.mxu0 0
      %4518 = vmatmul.mubr.bf16.gmra.mxu0 %v2429
      %v4519 = vpop.f32.mrf.mxu0
      %v4520 = vadd.f32 %v4167, %v4519
      %v4521 = vpop.f32.mrf.mxu0
      %v4522 = vadd.f32 %v4169, %v4521
      %v4523 = vpop.f32.mrf.mxu0
      %v4524 = vadd.f32 %v4171, %v4523
      %v4525 = vpop.f32.mrf.mxu0
      %v4526 = vadd.f32 %v4173, %v4525
      %4527 = vmatprep.mubr.bf16.mxu0 0
      %4528 = vmatmul.mubr.bf16.gmra.mxu0 %v2432
      %v4529 = vpop.f32.mrf.mxu0
      %v4530 = vadd.f32 %v4177, %v4529
      %v4531 = vpop.f32.mrf.mxu0
      %v4532 = vadd.f32 %v4179, %v4531
      %v4533 = vpop.f32.mrf.mxu0
      %v4534 = vadd.f32 %v4181, %v4533
      %v4535 = vpop.f32.mrf.mxu0
      %v4536 = vadd.f32 %v4183, %v4535
      %4537 = vmatprep.mubr.bf16.mxu0 0
      %4538 = vmatmul.mubr.bf16.gmra.mxu0 %v2435
      %v4539 = vpop.f32.mrf.mxu0
      %v4540 = vadd.f32 %v4187, %v4539
      %v4541 = vpop.f32.mrf.mxu0
      %v4542 = vadd.f32 %v4189, %v4541
      %v4543 = vpop.f32.mrf.mxu0
      %v4544 = vadd.f32 %v4191, %v4543
      %v4545 = vpop.f32.mrf.mxu0
      %v4546 = vadd.f32 %v4193, %v4545
      %4547 = vmatprep.mubr.bf16.mxu0 0
      %4548 = vmatmul.mubr.bf16.gmra.mxu0 %v2438
      %v4549 = vpop.f32.mrf.mxu0
      %v4550 = vadd.f32 %v4197, %v4549
      %v4551 = vpop.f32.mrf.mxu0
      %v4552 = vadd.f32 %v4199, %v4551
      %v4553 = vpop.f32.mrf.mxu0
      %v4554 = vadd.f32 %v4201, %v4553
      %v4555 = vpop.f32.mrf.mxu0
      %v4556 = vadd.f32 %v4203, %v4555
      %4557 = vmatprep.mubr.bf16.mxu0 0
      %4558 = vmatmul.mubr.bf16.gmra.mxu0 %v2441
      %v4559 = vpop.f32.mrf.mxu0
      %v4560 = vadd.f32 %v4207, %v4559
      %v4561 = vpop.f32.mrf.mxu0
      %v4562 = vadd.f32 %v4209, %v4561
      %v4563 = vpop.f32.mrf.mxu0
      %v4564 = vadd.f32 %v4211, %v4563
      %v4565 = vpop.f32.mrf.mxu0
      %v4566 = vadd.f32 %v4213, %v4565
      %4567 = vdwg.mxu0
      %v4568 = vmax.f32 %v4250, 0.0
      %v4569 = vmax.f32 %v4252, 0.0
      %v4570 = vmax.f32 %v4254, 0.0
      %v4571 = vmax.f32 %v4256, 0.0
      %v4572 = vmax.f32 %v4260, 0.0
      %v4573 = vmax.f32 %v4262, 0.0
      %v4574 = vmax.f32 %v4264, 0.0
      %v4575 = vmax.f32 %v4266, 0.0
      %v4576 = vmax.f32 %v4270, 0.0
      %v4577 = vmax.f32 %v4272, 0.0
      %v4578 = vmax.f32 %v4274, 0.0
      %v4579 = vmax.f32 %v4276, 0.0
      %v4580 = vmax.f32 %v4280, 0.0
      %v4581 = vmax.f32 %v4282, 0.0
      %v4582 = vmax.f32 %v4284, 0.0
      %v4583 = vmax.f32 %v4286, 0.0
      %v4584 = vmax.f32 %v4290, 0.0
      %v4585 = vmax.f32 %v4292, 0.0
      %v4586 = vmax.f32 %v4294, 0.0
      %v4587 = vmax.f32 %v4296, 0.0
      %v4588 = vmax.f32 %v4300, 0.0
      %v4589 = vmax.f32 %v4302, 0.0
      %v4590 = vmax.f32 %v4304, 0.0
      %v4591 = vmax.f32 %v4306, 0.0
      %v4592 = vmax.f32 %v4310, 0.0
      %v4593 = vmax.f32 %v4312, 0.0
      %v4594 = vmax.f32 %v4314, 0.0
      %v4595 = vmax.f32 %v4316, 0.0
      %v4596 = vmax.f32 %v4320, 0.0
      %v4597 = vmax.f32 %v4322, 0.0
      %v4598 = vmax.f32 %v4324, 0.0
      %v4599 = vmax.f32 %v4326, 0.0
      %v4600 = vmax.f32 %v4330, 0.0
      %v4601 = vmax.f32 %v4332, 0.0
      %v4602 = vmax.f32 %v4334, 0.0
      %v4603 = vmax.f32 %v4336, 0.0
      %v4604 = vmax.f32 %v4340, 0.0
      %v4605 = vmax.f32 %v4342, 0.0
      %v4606 = vmax.f32 %v4344, 0.0
      %v4607 = vmax.f32 %v4346, 0.0
      %v4608 = vmax.f32 %v4350, 0.0
      %v4609 = vmax.f32 %v4352, 0.0
      %v4610 = vmax.f32 %v4354, 0.0
      %v4611 = vmax.f32 %v4356, 0.0
      %v4612 = vmax.f32 %v4360, 0.0
      %v4613 = vmax.f32 %v4362, 0.0
      %v4614 = vmax.f32 %v4364, 0.0
      %v4615 = vmax.f32 %v4366, 0.0
      %v4616 = vmax.f32 %v4370, 0.0
      %v4617 = vmax.f32 %v4372, 0.0
      %v4618 = vmax.f32 %v4374, 0.0
      %v4619 = vmax.f32 %v4376, 0.0
      %v4620 = vmax.f32 %v4380, 0.0
      %v4621 = vmax.f32 %v4382, 0.0
      %v4622 = vmax.f32 %v4384, 0.0
      %v4623 = vmax.f32 %v4386, 0.0
      %v4624 = vmax.f32 %v4390, 0.0
      %v4625 = vmax.f32 %v4392, 0.0
      %v4626 = vmax.f32 %v4394, 0.0
      %v4627 = vmax.f32 %v4396, 0.0
      %v4628 = vmax.f32 %v4400, 0.0
      %v4629 = vmax.f32 %v4402, 0.0
      %v4630 = vmax.f32 %v4404, 0.0
      %v4631 = vmax.f32 %v4406, 0.0
      %v4632 = vmax.f32 %v4410, 0.0
      %v4633 = vmax.f32 %v4412, 0.0
      %v4634 = vmax.f32 %v4414, 0.0
      %v4635 = vmax.f32 %v4416, 0.0
      %v4636 = vmax.f32 %v4420, 0.0
      %v4637 = vmax.f32 %v4422, 0.0
      %v4638 = vmax.f32 %v4424, 0.0
      %v4639 = vmax.f32 %v4426, 0.0
      %v4640 = vmax.f32 %v4430, 0.0
      %v4641 = vmax.f32 %v4432, 0.0
      %v4642 = vmax.f32 %v4434, 0.0
      %v4643 = vmax.f32 %v4436, 0.0
      %v4644 = vmax.f32 %v4440, 0.0
      %v4645 = vmax.f32 %v4442, 0.0
      %v4646 = vmax.f32 %v4444, 0.0
      %v4647 = vmax.f32 %v4446, 0.0
      %v4648 = vmax.f32 %v4450, 0.0
      %v4649 = vmax.f32 %v4452, 0.0
      %v4650 = vmax.f32 %v4454, 0.0
      %v4651 = vmax.f32 %v4456, 0.0
      %v4652 = vmax.f32 %v4460, 0.0
      %v4653 = vmax.f32 %v4462, 0.0
      %v4654 = vmax.f32 %v4464, 0.0
      %v4655 = vmax.f32 %v4466, 0.0
      %v4656 = vmax.f32 %v4470, 0.0
      %v4657 = vmax.f32 %v4472, 0.0
      %v4658 = vmax.f32 %v4474, 0.0
      %v4659 = vmax.f32 %v4476, 0.0
      %v4660 = vmax.f32 %v4480, 0.0
      %v4661 = vmax.f32 %v4482, 0.0
      %v4662 = vmax.f32 %v4484, 0.0
      %v4663 = vmax.f32 %v4486, 0.0
      %v4664 = vmax.f32 %v4490, 0.0
      %v4665 = vmax.f32 %v4492, 0.0
      %v4666 = vmax.f32 %v4494, 0.0
      %v4667 = vmax.f32 %v4496, 0.0
      %v4668 = vmax.f32 %v4500, 0.0
      %v4669 = vmax.f32 %v4502, 0.0
      %v4670 = vmax.f32 %v4504, 0.0
      %v4671 = vmax.f32 %v4506, 0.0
      %v4672 = vmax.f32 %v4510, 0.0
      %v4673 = vmax.f32 %v4512, 0.0
      %v4674 = vmax.f32 %v4514, 0.0
      %v4675 = vmax.f32 %v4516, 0.0
      %v4676 = vmax.f32 %v4520, 0.0
      %v4677 = vmax.f32 %v4522, 0.0
      %v4678 = vmax.f32 %v4524, 0.0
      %v4679 = vmax.f32 %v4526, 0.0
      %v4680 = vmax.f32 %v4530, 0.0
      %v4681 = vmax.f32 %v4532, 0.0
      %v4682 = vmax.f32 %v4534, 0.0
      %v4683 = vmax.f32 %v4536, 0.0
      %v4684 = vmax.f32 %v4540, 0.0
      %v4685 = vmax.f32 %v4542, 0.0
      %v4686 = vmax.f32 %v4544, 0.0
      %v4687 = vmax.f32 %v4546, 0.0
      %v4688 = vmax.f32 %v4550, 0.0
      %v4689 = vmax.f32 %v4552, 0.0
      %v4690 = vmax.f32 %v4554, 0.0
      %v4691 = vmax.f32 %v4556, 0.0
      %v4692 = vmax.f32 %v4560, 0.0
      %v4693 = vmax.f32 %v4562, 0.0
      %v4694 = vmax.f32 %v4564, 0.0
      %v4695 = vmax.f32 %v4566, 0.0
      %v4696 = vpack.c.bf16 %v4570, %v4568
      %v4697 = vpack.c.bf16 %v4571, %v4569
      %v4698 = vpack.c.bf16 %v4574, %v4572
      %v4699 = vpack.c.bf16 %v4575, %v4573
      %v4700 = vpack.c.bf16 %v4578, %v4576
      %v4701 = vpack.c.bf16 %v4579, %v4577
      %v4702 = vpack.c.bf16 %v4582, %v4580
      %v4703 = vpack.c.bf16 %v4583, %v4581
      %v4704 = vpack.c.bf16 %v4586, %v4584
      %v4705 = vpack.c.bf16 %v4587, %v4585
      %v4706 = vpack.c.bf16 %v4590, %v4588
      %v4707 = vpack.c.bf16 %v4591, %v4589
      %v4708 = vpack.c.bf16 %v4594, %v4592
      %v4709 = vpack.c.bf16 %v4595, %v4593
      %v4710 = vpack.c.bf16 %v4598, %v4596
      %v4711 = vpack.c.bf16 %v4599, %v4597
      %v4712 = vpack.c.bf16 %v4602, %v4600
      %v4713 = vpack.c.bf16 %v4603, %v4601
      %v4714 = vpack.c.bf16 %v4606, %v4604
      %v4715 = vpack.c.bf16 %v4607, %v4605
      %v4716 = vpack.c.bf16 %v4610, %v4608
      %v4717 = vpack.c.bf16 %v4611, %v4609
      %v4718 = vpack.c.bf16 %v4614, %v4612
      %v4719 = vpack.c.bf16 %v4615, %v4613
      %v4720 = vpack.c.bf16 %v4618, %v4616
      %v4721 = vpack.c.bf16 %v4619, %v4617
      %v4722 = vpack.c.bf16 %v4622, %v4620
      %v4723 = vpack.c.bf16 %v4623, %v4621
      %v4724 = vpack.c.bf16 %v4626, %v4624
      %v4725 = vpack.c.bf16 %v4627, %v4625
      %v4726 = vpack.c.bf16 %v4630, %v4628
      %v4727 = vpack.c.bf16 %v4631, %v4629
      %v4728 = vpack.c.bf16 %v4634, %v4632
      %v4729 = vpack.c.bf16 %v4635, %v4633
      %v4730 = vpack.c.bf16 %v4638, %v4636
      %v4731 = vpack.c.bf16 %v4639, %v4637
      %v4732 = vpack.c.bf16 %v4642, %v4640
      %v4733 = vpack.c.bf16 %v4643, %v4641
      %v4734 = vpack.c.bf16 %v4646, %v4644
      %v4735 = vpack.c.bf16 %v4647, %v4645
      %v4736 = vpack.c.bf16 %v4650, %v4648
      %v4737 = vpack.c.bf16 %v4651, %v4649
      %v4738 = vpack.c.bf16 %v4654, %v4652
      %v4739 = vpack.c.bf16 %v4655, %v4653
      %v4740 = vpack.c.bf16 %v4658, %v4656
      %v4741 = vpack.c.bf16 %v4659, %v4657
      %v4742 = vpack.c.bf16 %v4662, %v4660
      %v4743 = vpack.c.bf16 %v4663, %v4661
      %v4744 = vpack.c.bf16 %v4666, %v4664
      %v4745 = vpack.c.bf16 %v4667, %v4665
      %v4746 = vpack.c.bf16 %v4670, %v4668
      %v4747 = vpack.c.bf16 %v4671, %v4669
      %v4748 = vpack.c.bf16 %v4674, %v4672
      %v4749 = vpack.c.bf16 %v4675, %v4673
      %v4750 = vpack.c.bf16 %v4678, %v4676
      %v4751 = vpack.c.bf16 %v4679, %v4677
      %v4752 = vpack.c.bf16 %v4682, %v4680
      %v4753 = vpack.c.bf16 %v4683, %v4681
      %v4754 = vpack.c.bf16 %v4686, %v4684
      %v4755 = vpack.c.bf16 %v4687, %v4685
      %v4756 = vpack.c.bf16 %v4690, %v4688
      %v4757 = vpack.c.bf16 %v4691, %v4689
      %v4758 = vpack.c.bf16 %v4694, %v4692
      %v4759 = vpack.c.bf16 %v4695, %v4693
      %v4760 = vld [vmem:[%s3] sm:$0xff]
      %v4761 = vld [vmem:[%s3 + $0x8] sm:$0xff]
      %v4762 = vld [vmem:[%s3 + $0x10] sm:$0xff]
      %v4763 = vld [vmem:[%s3 + $0x18] sm:$0xff]
      %v4764 = vld [vmem:[%s3 + $0x20] sm:$0xff]
      %v4765 = vld [vmem:[%s3 + $0x28] sm:$0xff]
      %v4766 = vld [vmem:[%s3 + $0x30] sm:$0xff]
      %v4767 = vld [vmem:[%s3 + $0x38] sm:$0xff]
      %v4768 = vld [vmem:[%s3 + $0x40] sm:$0xff]
      %v4769 = vld [vmem:[%s3 + $0x48] sm:$0xff]
      %v4770 = vld [vmem:[%s3 + $0x50] sm:$0xff]
      %v4771 = vld [vmem:[%s3 + $0x58] sm:$0xff]
      %v4772 = vld [vmem:[%s3 + $0x60] sm:$0xff]
      %v4773 = vld [vmem:[%s3 + $0x68] sm:$0xff]
      %v4774 = vld [vmem:[%s3 + $0x70] sm:$0xff]
      %v4775 = vld [vmem:[%s3 + $0x78] sm:$0xff]
      %v4776 = vld [vmem:[%s3 + $0x80] sm:$0xff]
      %v4777 = vld [vmem:[%s3 + $0x88] sm:$0xff]
      %v4778 = vld [vmem:[%s3 + $0x90] sm:$0xff]
      %v4779 = vld [vmem:[%s3 + $0x98] sm:$0xff]
      %v4780 = vld [vmem:[%s3 + $0xa0] sm:$0xff]
      %v4781 = vld [vmem:[%s3 + $0xa8] sm:$0xff]
      %v4782 = vld [vmem:[%s3 + $0xb0] sm:$0xff]
      %v4783 = vld [vmem:[%s3 + $0xb8] sm:$0xff]
      %v4784 = vld [vmem:[%s3 + $0xc0] sm:$0xff]
      %v4785 = vld [vmem:[%s3 + $0xc8] sm:$0xff]
      %v4786 = vld [vmem:[%s3 + $0xd0] sm:$0xff]
      %v4787 = vld [vmem:[%s3 + $0xd8] sm:$0xff]
      %v4788 = vld [vmem:[%s3 + $0xe0] sm:$0xff]
      %v4789 = vld [vmem:[%s3 + $0xe8] sm:$0xff]
      %v4790 = vld [vmem:[%s3 + $0xf0] sm:$0xff]
      %v4791 = vld [vmem:[%s3 + $0xf8] sm:$0xff]
      %v4792 = vld [vmem:[%s4] sm:$0x3]
      %v4794 = vlaneseq
      %v4795 = vshrl.u32 %v4794, 7
      %v4796 = vsub.s32 0, %v4795
      %v4797 = vrot.slane %v4792, %v4796
      %v4798 = vlaneseq
      %v4799 = vshrl.u32 %v4798, 7
      %v4800 = vsub.s32 1, %v4799
      %v4801 = vrot.slane %v4792, %v4800
      %v4836 = vunpack.c.l.b16 %v4760
      %v4837 = vunpack.c.h.b16 %v4760
      %v4838 = vunpack.c.l.b16 %v4761
      %v4839 = vunpack.c.h.b16 %v4761
      %v4840 = vunpack.c.l.b16 %v4762
      %v4841 = vunpack.c.h.b16 %v4762
      %v4842 = vunpack.c.l.b16 %v4763
      %v4843 = vunpack.c.h.b16 %v4763
      %v4844 = vunpack.c.l.b16 %v4764
      %v4845 = vunpack.c.h.b16 %v4764
      %v4846 = vunpack.c.l.b16 %v4765
      %v4847 = vunpack.c.h.b16 %v4765
      %v4848 = vunpack.c.l.b16 %v4766
      %v4849 = vunpack.c.h.b16 %v4766
      %v4850 = vunpack.c.l.b16 %v4767
      %v4851 = vunpack.c.h.b16 %v4767
      %v4852 = vunpack.c.l.b16 %v4768
      %v4853 = vunpack.c.h.b16 %v4768
      %v4854 = vunpack.c.l.b16 %v4769
      %v4855 = vunpack.c.h.b16 %v4769
      %v4856 = vunpack.c.l.b16 %v4770
      %v4857 = vunpack.c.h.b16 %v4770
      %v4858 = vunpack.c.l.b16 %v4771
      %v4859 = vunpack.c.h.b16 %v4771
      %v4860 = vunpack.c.l.b16 %v4772
      %v4861 = vunpack.c.h.b16 %v4772
      %v4862 = vunpack.c.l.b16 %v4773
      %v4863 = vunpack.c.h.b16 %v4773
      %v4864 = vunpack.c.l.b16 %v4774
      %v4865 = vunpack.c.h.b16 %v4774
      %v4866 = vunpack.c.l.b16 %v4775
      %v4867 = vunpack.c.h.b16 %v4775
      %v4868 = vunpack.c.l.b16 %v4776
      %v4869 = vunpack.c.h.b16 %v4776
      %v4870 = vunpack.c.l.b16 %v4777
      %v4871 = vunpack.c.h.b16 %v4777
      %v4872 = vunpack.c.l.b16 %v4778
      %v4873 = vunpack.c.h.b16 %v4778
      %v4874 = vunpack.c.l.b16 %v4779
      %v4875 = vunpack.c.h.b16 %v4779
      %v4876 = vunpack.c.l.b16 %v4780
      %v4877 = vunpack.c.h.b16 %v4780
      %v4878 = vunpack.c.l.b16 %v4781
      %v4879 = vunpack.c.h.b16 %v4781
      %v4880 = vunpack.c.l.b16 %v4782
      %v4881 = vunpack.c.h.b16 %v4782
      %v4882 = vunpack.c.l.b16 %v4783
      %v4883 = vunpack.c.h.b16 %v4783
      %v4884 = vunpack.c.l.b16 %v4784
      %v4885 = vunpack.c.h.b16 %v4784
      %v4886 = vunpack.c.l.b16 %v4785
      %v4887 = vunpack.c.h.b16 %v4785
      %v4888 = vunpack.c.l.b16 %v4786
      %v4889 = vunpack.c.h.b16 %v4786
      %v4890 = vunpack.c.l.b16 %v4787
      %v4891 = vunpack.c.h.b16 %v4787
      %v4892 = vunpack.c.l.b16 %v4788
      %v4893 = vunpack.c.h.b16 %v4788
      %v4894 = vunpack.c.l.b16 %v4789
      %v4895 = vunpack.c.h.b16 %v4789
      %v4896 = vunpack.c.l.b16 %v4790
      %v4897 = vunpack.c.h.b16 %v4790
      %v4898 = vunpack.c.l.b16 %v4791
      %v4899 = vunpack.c.h.b16 %v4791
      %v4900 = vpack.c.b16 %v4838, %v4836
      %v4901 = vpack.c.b16 %v4839, %v4837
      %v4902 = vpack.c.b16 %v4842, %v4840
      %v4903 = vpack.c.b16 %v4843, %v4841
      %v4904 = vpack.c.b16 %v4846, %v4844
      %v4905 = vpack.c.b16 %v4847, %v4845
      %v4906 = vpack.c.b16 %v4850, %v4848
      %v4907 = vpack.c.b16 %v4851, %v4849
      %v4908 = vpack.c.b16 %v4854, %v4852
      %v4909 = vpack.c.b16 %v4855, %v4853
      %v4910 = vpack.c.b16 %v4858, %v4856
      %v4911 = vpack.c.b16 %v4859, %v4857
      %v4912 = vpack.c.b16 %v4862, %v4860
      %v4913 = vpack.c.b16 %v4863, %v4861
      %v4914 = vpack.c.b16 %v4866, %v4864
      %v4915 = vpack.c.b16 %v4867, %v4865
      %v4916 = vpack.c.b16 %v4870, %v4868
      %v4917 = vpack.c.b16 %v4871, %v4869
      %v4918 = vpack.c.b16 %v4874, %v4872
      %v4919 = vpack.c.b16 %v4875, %v4873
      %v4920 = vpack.c.b16 %v4878, %v4876
      %v4921 = vpack.c.b16 %v4879, %v4877
      %v4922 = vpack.c.b16 %v4882, %v4880
      %v4923 = vpack.c.b16 %v4883, %v4881
      %v4924 = vpack.c.b16 %v4886, %v4884
      %v4925 = vpack.c.b16 %v4887, %v4885
      %v4926 = vpack.c.b16 %v4890, %v4888
      %v4927 = vpack.c.b16 %v4891, %v4889
      %v4928 = vpack.c.b16 %v4894, %v4892
      %v4929 = vpack.c.b16 %v4895, %v4893
      %v4930 = vpack.c.b16 %v4898, %v4896
      %v4931 = vpack.c.b16 %v4899, %v4897
      %4964 = vmatprep.subr.bf16.mxu0 %v4915
      %4965 = vmatpush1.bf16.msra.mxu0 %v4914
      %4966 = vmatprep.subr.bf16.mxu0 %v4913
      %4967 = vmatpush1.bf16.msra.mxu0 %v4912
      %4968 = vmatprep.subr.bf16.mxu0 %v4911
      %4969 = vmatpush1.bf16.msra.mxu0 %v4910
      %4970 = vmatprep.subr.bf16.mxu0 %v4909
      %4971 = vmatpush1.bf16.msra.mxu0 %v4908
      %4972 = vmatprep.subr.bf16.mxu0 %v4907
      %4973 = vmatpush1.bf16.msra.mxu0 %v4906
      %4974 = vmatprep.subr.bf16.mxu0 %v4905
      %4975 = vmatpush1.bf16.msra.mxu0 %v4904
      %4976 = vmatprep.subr.bf16.mxu0 %v4903
      %4977 = vmatpush1.bf16.msra.mxu0 %v4902
      %4978 = vmatprep.subr.bf16.mxu0 %v4901
      %4979 = vmatpush1.bf16.msra.mxu0 %v4900
      %4980 = vmatprep.subr.bf16.mxu0 %v4931
      %4981 = vmatpush2.bf16.msra.mxu0 %v4930
      %4982 = vmatprep.subr.bf16.mxu0 %v4929
      %4983 = vmatpush2.bf16.msra.mxu0 %v4928
      %4984 = vmatprep.subr.bf16.mxu0 %v4927
      %4985 = vmatpush2.bf16.msra.mxu0 %v4926
      %4986 = vmatprep.subr.bf16.mxu0 %v4925
      %4987 = vmatpush2.bf16.msra.mxu0 %v4924
      %4988 = vmatprep.subr.bf16.mxu0 %v4923
      %4989 = vmatpush2.bf16.msra.mxu0 %v4922
      %4990 = vmatprep.subr.bf16.mxu0 %v4921
      %4991 = vmatpush2.bf16.msra.mxu0 %v4920
      %4992 = vmatprep.subr.bf16.mxu0 %v4919
      %4993 = vmatpush2.bf16.msra.mxu0 %v4918
      %4994 = vmatprep.subr.bf16.mxu0 %v4917
      %4995 = vmatpush2.bf16.msra.mxu0 %v4916
      %4996 = vmatprep.mubr.bf16.mxu0 %v4697
      %4997 = vmatmul.mubr.bf16.gmra.mxu0 %v4696
      %v4998 = vpop.f32.mrf.mxu0
      %v4999 = vadd.f32 %v4797, %v4998
      %v5000 = vpop.f32.mrf.mxu0
      %v5001 = vadd.f32 %v4801, %v5000
      %v5002 = vpop.f32.mrf.mxu0
      %v5003 = vadd.f32 %v4797, %v5002
      %v5004 = vpop.f32.mrf.mxu0
      %v5005 = vadd.f32 %v4801, %v5004
      %5006 = vmatprep.mubr.bf16.mxu0 %v4699
      %5007 = vmatmul.mubr.bf16.gmra.mxu0 %v4698
      %v5008 = vpop.f32.mrf.mxu0
      %v5009 = vadd.f32 %v4797, %v5008
      %v5010 = vpop.f32.mrf.mxu0
      %v5011 = vadd.f32 %v4801, %v5010
      %v5012 = vpop.f32.mrf.mxu0
      %v5013 = vadd.f32 %v4797, %v5012
      %v5014 = vpop.f32.mrf.mxu0
      %v5015 = vadd.f32 %v4801, %v5014
      %5016 = vmatprep.mubr.bf16.mxu0 %v4701
      %5017 = vmatmul.mubr.bf16.gmra.mxu0 %v4700
      %v5018 = vpop.f32.mrf.mxu0
      %v5019 = vadd.f32 %v4797, %v5018
      %v5020 = vpop.f32.mrf.mxu0
      %v5021 = vadd.f32 %v4801, %v5020
      %v5022 = vpop.f32.mrf.mxu0
      %v5023 = vadd.f32 %v4797, %v5022
      %v5024 = vpop.f32.mrf.mxu0
      %v5025 = vadd.f32 %v4801, %v5024
      %5026 = vmatprep.mubr.bf16.mxu0 %v4703
      %5027 = vmatmul.mubr.bf16.gmra.mxu0 %v4702
      %v5028 = vpop.f32.mrf.mxu0
      %v5029 = vadd.f32 %v4797, %v5028
      %v5030 = vpop.f32.mrf.mxu0
      %v5031 = vadd.f32 %v4801, %v5030
      %v5032 = vpop.f32.mrf.mxu0
      %v5033 = vadd.f32 %v4797, %v5032
      %v5034 = vpop.f32.mrf.mxu0
      %v5035 = vadd.f32 %v4801, %v5034
      %5036 = vmatprep.mubr.bf16.mxu0 %v4705
      %5037 = vmatmul.mubr.bf16.gmra.mxu0 %v4704
      %v5038 = vpop.f32.mrf.mxu0
      %v5039 = vadd.f32 %v4797, %v5038
      %v5040 = vpop.f32.mrf.mxu0
      %v5041 = vadd.f32 %v4801, %v5040
      %v5042 = vpop.f32.mrf.mxu0
      %v5043 = vadd.f32 %v4797, %v5042
      %v5044 = vpop.f32.mrf.mxu0
      %v5045 = vadd.f32 %v4801, %v5044
      %5046 = vmatprep.mubr.bf16.mxu0 %v4707
      %5047 = vmatmul.mubr.bf16.gmra.mxu0 %v4706
      %v5048 = vpop.f32.mrf.mxu0
      %v5049 = vadd.f32 %v4797, %v5048
      %v5050 = vpop.f32.mrf.mxu0
      %v5051 = vadd.f32 %v4801, %v5050
      %v5052 = vpop.f32.mrf.mxu0
      %v5053 = vadd.f32 %v4797, %v5052
      %v5054 = vpop.f32.mrf.mxu0
      %v5055 = vadd.f32 %v4801, %v5054
      %5056 = vmatprep.mubr.bf16.mxu0 %v4709
      %5057 = vmatmul.mubr.bf16.gmra.mxu0 %v4708
      %v5058 = vpop.f32.mrf.mxu0
      %v5059 = vadd.f32 %v4797, %v5058
      %v5060 = vpop.f32.mrf.mxu0
      %v5061 = vadd.f32 %v4801, %v5060
      %v5062 = vpop.f32.mrf.mxu0
      %v5063 = vadd.f32 %v4797, %v5062
      %v5064 = vpop.f32.mrf.mxu0
      %v5065 = vadd.f32 %v4801, %v5064
      %5066 = vmatprep.mubr.bf16.mxu0 %v4711
      %5067 = vmatmul.mubr.bf16.gmra.mxu0 %v4710
      %v5068 = vpop.f32.mrf.mxu0
      %v5069 = vadd.f32 %v4797, %v5068
      %v5070 = vpop.f32.mrf.mxu0
      %v5071 = vadd.f32 %v4801, %v5070
      %v5072 = vpop.f32.mrf.mxu0
      %v5073 = vadd.f32 %v4797, %v5072
      %v5074 = vpop.f32.mrf.mxu0
      %v5075 = vadd.f32 %v4801, %v5074
      %5076 = vmatprep.mubr.bf16.mxu0 %v4713
      %5077 = vmatmul.mubr.bf16.gmra.mxu0 %v4712
      %v5078 = vpop.f32.mrf.mxu0
      %v5079 = vadd.f32 %v4797, %v5078
      %v5080 = vpop.f32.mrf.mxu0
      %v5081 = vadd.f32 %v4801, %v5080
      %v5082 = vpop.f32.mrf.mxu0
      %v5083 = vadd.f32 %v4797, %v5082
      %v5084 = vpop.f32.mrf.mxu0
      %v5085 = vadd.f32 %v4801, %v5084
      %5086 = vmatprep.mubr.bf16.mxu0 %v4715
      %5087 = vmatmul.mubr.bf16.gmra.mxu0 %v4714
      %v5088 = vpop.f32.mrf.mxu0
      %v5089 = vadd.f32 %v4797, %v5088
      %v5090 = vpop.f32.mrf.mxu0
      %v5091 = vadd.f32 %v4801, %v5090
      %v5092 = vpop.f32.mrf.mxu0
      %v5093 = vadd.f32 %v4797, %v5092
      %v5094 = vpop.f32.mrf.mxu0
      %v5095 = vadd.f32 %v4801, %v5094
      %5096 = vmatprep.mubr.bf16.mxu0 %v4717
      %5097 = vmatmul.mubr.bf16.gmra.mxu0 %v4716
      %v5098 = vpop.f32.mrf.mxu0
      %v5099 = vadd.f32 %v4797, %v5098
      %v5100 = vpop.f32.mrf.mxu0
      %v5101 = vadd.f32 %v4801, %v5100
      %v5102 = vpop.f32.mrf.mxu0
      %v5103 = vadd.f32 %v4797, %v5102
      %v5104 = vpop.f32.mrf.mxu0
      %v5105 = vadd.f32 %v4801, %v5104
      %5106 = vmatprep.mubr.bf16.mxu0 %v4719
      %5107 = vmatmul.mubr.bf16.gmra.mxu0 %v4718
      %v5108 = vpop.f32.mrf.mxu0
      %v5109 = vadd.f32 %v4797, %v5108
      %v5110 = vpop.f32.mrf.mxu0
      %v5111 = vadd.f32 %v4801, %v5110
      %v5112 = vpop.f32.mrf.mxu0
      %v5113 = vadd.f32 %v4797, %v5112
      %v5114 = vpop.f32.mrf.mxu0
      %v5115 = vadd.f32 %v4801, %v5114
      %5116 = vmatprep.mubr.bf16.mxu0 %v4721
      %5117 = vmatmul.mubr.bf16.gmra.mxu0 %v4720
      %v5118 = vpop.f32.mrf.mxu0
      %v5119 = vadd.f32 %v4797, %v5118
      %v5120 = vpop.f32.mrf.mxu0
      %v5121 = vadd.f32 %v4801, %v5120
      %v5122 = vpop.f32.mrf.mxu0
      %v5123 = vadd.f32 %v4797, %v5122
      %v5124 = vpop.f32.mrf.mxu0
      %v5125 = vadd.f32 %v4801, %v5124
      %5126 = vmatprep.mubr.bf16.mxu0 %v4723
      %5127 = vmatmul.mubr.bf16.gmra.mxu0 %v4722
      %v5128 = vpop.f32.mrf.mxu0
      %v5129 = vadd.f32 %v4797, %v5128
      %v5130 = vpop.f32.mrf.mxu0
      %v5131 = vadd.f32 %v4801, %v5130
      %v5132 = vpop.f32.mrf.mxu0
      %v5133 = vadd.f32 %v4797, %v5132
      %v5134 = vpop.f32.mrf.mxu0
      %v5135 = vadd.f32 %v4801, %v5134
      %5136 = vmatprep.mubr.bf16.mxu0 %v4725
      %5137 = vmatmul.mubr.bf16.gmra.mxu0 %v4724
      %v5138 = vpop.f32.mrf.mxu0
      %v5139 = vadd.f32 %v4797, %v5138
      %v5140 = vpop.f32.mrf.mxu0
      %v5141 = vadd.f32 %v4801, %v5140
      %v5142 = vpop.f32.mrf.mxu0
      %v5143 = vadd.f32 %v4797, %v5142
      %v5144 = vpop.f32.mrf.mxu0
      %v5145 = vadd.f32 %v4801, %v5144
      %5146 = vmatprep.mubr.bf16.mxu0 %v4727
      %5147 = vmatmul.mubr.bf16.gmra.mxu0 %v4726
      %v5148 = vpop.f32.mrf.mxu0
      %v5149 = vadd.f32 %v4797, %v5148
      %v5150 = vpop.f32.mrf.mxu0
      %v5151 = vadd.f32 %v4801, %v5150
      %v5152 = vpop.f32.mrf.mxu0
      %v5153 = vadd.f32 %v4797, %v5152
      %v5154 = vpop.f32.mrf.mxu0
      %v5155 = vadd.f32 %v4801, %v5154
      %5156 = vmatprep.mubr.bf16.mxu0 %v4729
      %5157 = vmatmul.mubr.bf16.gmra.mxu0 %v4728
      %v5158 = vpop.f32.mrf.mxu0
      %v5159 = vadd.f32 %v4797, %v5158
      %v5160 = vpop.f32.mrf.mxu0
      %v5161 = vadd.f32 %v4801, %v5160
      %v5162 = vpop.f32.mrf.mxu0
      %v5163 = vadd.f32 %v4797, %v5162
      %v5164 = vpop.f32.mrf.mxu0
      %v5165 = vadd.f32 %v4801, %v5164
      %5166 = vmatprep.mubr.bf16.mxu0 %v4731
      %5167 = vmatmul.mubr.bf16.gmra.mxu0 %v4730
      %v5168 = vpop.f32.mrf.mxu0
      %v5169 = vadd.f32 %v4797, %v5168
      %v5170 = vpop.f32.mrf.mxu0
      %v5171 = vadd.f32 %v4801, %v5170
      %v5172 = vpop.f32.mrf.mxu0
      %v5173 = vadd.f32 %v4797, %v5172
      %v5174 = vpop.f32.mrf.mxu0
      %v5175 = vadd.f32 %v4801, %v5174
      %5176 = vmatprep.mubr.bf16.mxu0 %v4733
      %5177 = vmatmul.mubr.bf16.gmra.mxu0 %v4732
      %v5178 = vpop.f32.mrf.mxu0
      %v5179 = vadd.f32 %v4797, %v5178
      %v5180 = vpop.f32.mrf.mxu0
      %v5181 = vadd.f32 %v4801, %v5180
      %v5182 = vpop.f32.mrf.mxu0
      %v5183 = vadd.f32 %v4797, %v5182
      %v5184 = vpop.f32.mrf.mxu0
      %v5185 = vadd.f32 %v4801, %v5184
      %5186 = vmatprep.mubr.bf16.mxu0 %v4735
      %5187 = vmatmul.mubr.bf16.gmra.mxu0 %v4734
      %v5188 = vpop.f32.mrf.mxu0
      %v5189 = vadd.f32 %v4797, %v5188
      %v5190 = vpop.f32.mrf.mxu0
      %v5191 = vadd.f32 %v4801, %v5190
      %v5192 = vpop.f32.mrf.mxu0
      %v5193 = vadd.f32 %v4797, %v5192
      %v5194 = vpop.f32.mrf.mxu0
      %v5195 = vadd.f32 %v4801, %v5194
      %5196 = vmatprep.mubr.bf16.mxu0 %v4737
      %5197 = vmatmul.mubr.bf16.gmra.mxu0 %v4736
      %v5198 = vpop.f32.mrf.mxu0
      %v5199 = vadd.f32 %v4797, %v5198
      %v5200 = vpop.f32.mrf.mxu0
      %v5201 = vadd.f32 %v4801, %v5200
      %v5202 = vpop.f32.mrf.mxu0
      %v5203 = vadd.f32 %v4797, %v5202
      %v5204 = vpop.f32.mrf.mxu0
      %v5205 = vadd.f32 %v4801, %v5204
      %5206 = vmatprep.mubr.bf16.mxu0 %v4739
      %5207 = vmatmul.mubr.bf16.gmra.mxu0 %v4738
      %v5208 = vpop.f32.mrf.mxu0
      %v5209 = vadd.f32 %v4797, %v5208
      %v5210 = vpop.f32.mrf.mxu0
      %v5211 = vadd.f32 %v4801, %v5210
      %v5212 = vpop.f32.mrf.mxu0
      %v5213 = vadd.f32 %v4797, %v5212
      %v5214 = vpop.f32.mrf.mxu0
      %v5215 = vadd.f32 %v4801, %v5214
      %5216 = vmatprep.mubr.bf16.mxu0 %v4741
      %5217 = vmatmul.mubr.bf16.gmra.mxu0 %v4740
      %v5218 = vpop.f32.mrf.mxu0
      %v5219 = vadd.f32 %v4797, %v5218
      %v5220 = vpop.f32.mrf.mxu0
      %v5221 = vadd.f32 %v4801, %v5220
      %v5222 = vpop.f32.mrf.mxu0
      %v5223 = vadd.f32 %v4797, %v5222
      %v5224 = vpop.f32.mrf.mxu0
      %v5225 = vadd.f32 %v4801, %v5224
      %5226 = vmatprep.mubr.bf16.mxu0 %v4743
      %5227 = vmatmul.mubr.bf16.gmra.mxu0 %v4742
      %v5228 = vpop.f32.mrf.mxu0
      %v5229 = vadd.f32 %v4797, %v5228
      %v5230 = vpop.f32.mrf.mxu0
      %v5231 = vadd.f32 %v4801, %v5230
      %v5232 = vpop.f32.mrf.mxu0
      %v5233 = vadd.f32 %v4797, %v5232
      %v5234 = vpop.f32.mrf.mxu0
      %v5235 = vadd.f32 %v4801, %v5234
      %5236 = vmatprep.mubr.bf16.mxu0 %v4745
      %5237 = vmatmul.mubr.bf16.gmra.mxu0 %v4744
      %v5238 = vpop.f32.mrf.mxu0
      %v5239 = vadd.f32 %v4797, %v5238
      %v5240 = vpop.f32.mrf.mxu0
      %v5241 = vadd.f32 %v4801, %v5240
      %v5242 = vpop.f32.mrf.mxu0
      %v5243 = vadd.f32 %v4797, %v5242
      %v5244 = vpop.f32.mrf.mxu0
      %v5245 = vadd.f32 %v4801, %v5244
      %5246 = vmatprep.mubr.bf16.mxu0 %v4747
      %5247 = vmatmul.mubr.bf16.gmra.mxu0 %v4746
      %v5248 = vpop.f32.mrf.mxu0
      %v5249 = vadd.f32 %v4797, %v5248
      %v5250 = vpop.f32.mrf.mxu0
      %v5251 = vadd.f32 %v4801, %v5250
      %v5252 = vpop.f32.mrf.mxu0
      %v5253 = vadd.f32 %v4797, %v5252
      %v5254 = vpop.f32.mrf.mxu0
      %v5255 = vadd.f32 %v4801, %v5254
      %5256 = vmatprep.mubr.bf16.mxu0 %v4749
      %5257 = vmatmul.mubr.bf16.gmra.mxu0 %v4748
      %v5258 = vpop.f32.mrf.mxu0
      %v5259 = vadd.f32 %v4797, %v5258
      %v5260 = vpop.f32.mrf.mxu0
      %v5261 = vadd.f32 %v4801, %v5260
      %v5262 = vpop.f32.mrf.mxu0
      %v5263 = vadd.f32 %v4797, %v5262
      %v5264 = vpop.f32.mrf.mxu0
      %v5265 = vadd.f32 %v4801, %v5264
      %5266 = vmatprep.mubr.bf16.mxu0 %v4751
      %5267 = vmatmul.mubr.bf16.gmra.mxu0 %v4750
      %v5268 = vpop.f32.mrf.mxu0
      %v5269 = vadd.f32 %v4797, %v5268
      %v5270 = vpop.f32.mrf.mxu0
      %v5271 = vadd.f32 %v4801, %v5270
      %v5272 = vpop.f32.mrf.mxu0
      %v5273 = vadd.f32 %v4797, %v5272
      %v5274 = vpop.f32.mrf.mxu0
      %v5275 = vadd.f32 %v4801, %v5274
      %5276 = vmatprep.mubr.bf16.mxu0 %v4753
      %5277 = vmatmul.mubr.bf16.gmra.mxu0 %v4752
      %v5278 = vpop.f32.mrf.mxu0
      %v5279 = vadd.f32 %v4797, %v5278
      %v5280 = vpop.f32.mrf.mxu0
      %v5281 = vadd.f32 %v4801, %v5280
      %v5282 = vpop.f32.mrf.mxu0
      %v5283 = vadd.f32 %v4797, %v5282
      %v5284 = vpop.f32.mrf.mxu0
      %v5285 = vadd.f32 %v4801, %v5284
      %5286 = vmatprep.mubr.bf16.mxu0 %v4755
      %5287 = vmatmul.mubr.bf16.gmra.mxu0 %v4754
      %v5288 = vpop.f32.mrf.mxu0
      %v5289 = vadd.f32 %v4797, %v5288
      %v5290 = vpop.f32.mrf.mxu0
      %v5291 = vadd.f32 %v4801, %v5290
      %v5292 = vpop.f32.mrf.mxu0
      %v5293 = vadd.f32 %v4797, %v5292
      %v5294 = vpop.f32.mrf.mxu0
      %v5295 = vadd.f32 %v4801, %v5294
      %5296 = vmatprep.mubr.bf16.mxu0 %v4757
      %5297 = vmatmul.mubr.bf16.gmra.mxu0 %v4756
      %v5298 = vpop.f32.mrf.mxu0
      %v5299 = vadd.f32 %v4797, %v5298
      %v5300 = vpop.f32.mrf.mxu0
      %v5301 = vadd.f32 %v4801, %v5300
      %v5302 = vpop.f32.mrf.mxu0
      %v5303 = vadd.f32 %v4797, %v5302
      %v5304 = vpop.f32.mrf.mxu0
      %v5305 = vadd.f32 %v4801, %v5304
      %5306 = vmatprep.mubr.bf16.mxu0 %v4759
      %5307 = vmatmul.mubr.bf16.gmra.mxu0 %v4758
      %v5308 = vpop.f32.mrf.mxu0
      %v5309 = vadd.f32 %v4797, %v5308
      %v5310 = vpop.f32.mrf.mxu0
      %v5311 = vadd.f32 %v4801, %v5310
      %v5312 = vpop.f32.mrf.mxu0
      %v5313 = vadd.f32 %v4797, %v5312
      %v5314 = vpop.f32.mrf.mxu0
      %v5315 = vadd.f32 %v4801, %v5314
      %5316 = vdwg.mxu0
      %v5317 = vmax.f32 %v4999, 0.0
      %v5318 = vmax.f32 %v5001, 0.0
      %v5319 = vmax.f32 %v5003, 0.0
      %v5320 = vmax.f32 %v5005, 0.0
      %v5321 = vmax.f32 %v5009, 0.0
      %v5322 = vmax.f32 %v5011, 0.0
      %v5323 = vmax.f32 %v5013, 0.0
      %v5324 = vmax.f32 %v5015, 0.0
      %v5325 = vmax.f32 %v5019, 0.0
      %v5326 = vmax.f32 %v5021, 0.0
      %v5327 = vmax.f32 %v5023, 0.0
      %v5328 = vmax.f32 %v5025, 0.0
      %v5329 = vmax.f32 %v5029, 0.0
      %v5330 = vmax.f32 %v5031, 0.0
      %v5331 = vmax.f32 %v5033, 0.0
      %v5332 = vmax.f32 %v5035, 0.0
      %v5333 = vmax.f32 %v5039, 0.0
      %v5334 = vmax.f32 %v5041, 0.0
      %v5335 = vmax.f32 %v5043, 0.0
      %v5336 = vmax.f32 %v5045, 0.0
      %v5337 = vmax.f32 %v5049, 0.0
      %v5338 = vmax.f32 %v5051, 0.0
      %v5339 = vmax.f32 %v5053, 0.0
      %v5340 = vmax.f32 %v5055, 0.0
      %v5341 = vmax.f32 %v5059, 0.0
      %v5342 = vmax.f32 %v5061, 0.0
      %v5343 = vmax.f32 %v5063, 0.0
      %v5344 = vmax.f32 %v5065, 0.0
      %v5345 = vmax.f32 %v5069, 0.0
      %v5346 = vmax.f32 %v5071, 0.0
      %v5347 = vmax.f32 %v5073, 0.0
      %v5348 = vmax.f32 %v5075, 0.0
      %v5349 = vmax.f32 %v5079, 0.0
      %v5350 = vmax.f32 %v5081, 0.0
      %v5351 = vmax.f32 %v5083, 0.0
      %v5352 = vmax.f32 %v5085, 0.0
      %v5353 = vmax.f32 %v5089, 0.0
      %v5354 = vmax.f32 %v5091, 0.0
      %v5355 = vmax.f32 %v5093, 0.0
      %v5356 = vmax.f32 %v5095, 0.0
      %v5357 = vmax.f32 %v5099, 0.0
      %v5358 = vmax.f32 %v5101, 0.0
      %v5359 = vmax.f32 %v5103, 0.0
      %v5360 = vmax.f32 %v5105, 0.0
      %v5361 = vmax.f32 %v5109, 0.0
      %v5362 = vmax.f32 %v5111, 0.0
      %v5363 = vmax.f32 %v5113, 0.0
      %v5364 = vmax.f32 %v5115, 0.0
      %v5365 = vmax.f32 %v5119, 0.0
      %v5366 = vmax.f32 %v5121, 0.0
      %v5367 = vmax.f32 %v5123, 0.0
      %v5368 = vmax.f32 %v5125, 0.0
      %v5369 = vmax.f32 %v5129, 0.0
      %v5370 = vmax.f32 %v5131, 0.0
      %v5371 = vmax.f32 %v5133, 0.0
      %v5372 = vmax.f32 %v5135, 0.0
      %v5373 = vmax.f32 %v5139, 0.0
      %v5374 = vmax.f32 %v5141, 0.0
      %v5375 = vmax.f32 %v5143, 0.0
      %v5376 = vmax.f32 %v5145, 0.0
      %v5377 = vmax.f32 %v5149, 0.0
      %v5378 = vmax.f32 %v5151, 0.0
      %v5379 = vmax.f32 %v5153, 0.0
      %v5380 = vmax.f32 %v5155, 0.0
      %v5381 = vmax.f32 %v5159, 0.0
      %v5382 = vmax.f32 %v5161, 0.0
      %v5383 = vmax.f32 %v5163, 0.0
      %v5384 = vmax.f32 %v5165, 0.0
      %v5385 = vmax.f32 %v5169, 0.0
      %v5386 = vmax.f32 %v5171, 0.0
      %v5387 = vmax.f32 %v5173, 0.0
      %v5388 = vmax.f32 %v5175, 0.0
      %v5389 = vmax.f32 %v5179, 0.0
      %v5390 = vmax.f32 %v5181, 0.0
      %v5391 = vmax.f32 %v5183, 0.0
      %v5392 = vmax.f32 %v5185, 0.0
      %v5393 = vmax.f32 %v5189, 0.0
      %v5394 = vmax.f32 %v5191, 0.0
      %v5395 = vmax.f32 %v5193, 0.0
      %v5396 = vmax.f32 %v5195, 0.0
      %v5397 = vmax.f32 %v5199, 0.0
      %v5398 = vmax.f32 %v5201, 0.0
      %v5399 = vmax.f32 %v5203, 0.0
      %v5400 = vmax.f32 %v5205, 0.0
      %v5401 = vmax.f32 %v5209, 0.0
      %v5402 = vmax.f32 %v5211, 0.0
      %v5403 = vmax.f32 %v5213, 0.0
      %v5404 = vmax.f32 %v5215, 0.0
      %v5405 = vmax.f32 %v5219, 0.0
      %v5406 = vmax.f32 %v5221, 0.0
      %v5407 = vmax.f32 %v5223, 0.0
      %v5408 = vmax.f32 %v5225, 0.0
      %v5409 = vmax.f32 %v5229, 0.0
      %v5410 = vmax.f32 %v5231, 0.0
      %v5411 = vmax.f32 %v5233, 0.0
      %v5412 = vmax.f32 %v5235, 0.0
      %v5413 = vmax.f32 %v5239, 0.0
      %v5414 = vmax.f32 %v5241, 0.0
      %v5415 = vmax.f32 %v5243, 0.0
      %v5416 = vmax.f32 %v5245, 0.0
      %v5417 = vmax.f32 %v5249, 0.0
      %v5418 = vmax.f32 %v5251, 0.0
      %v5419 = vmax.f32 %v5253, 0.0
      %v5420 = vmax.f32 %v5255, 0.0
      %v5421 = vmax.f32 %v5259, 0.0
      %v5422 = vmax.f32 %v5261, 0.0
      %v5423 = vmax.f32 %v5263, 0.0
      %v5424 = vmax.f32 %v5265, 0.0
      %v5425 = vmax.f32 %v5269, 0.0
      %v5426 = vmax.f32 %v5271, 0.0
      %v5427 = vmax.f32 %v5273, 0.0
      %v5428 = vmax.f32 %v5275, 0.0
      %v5429 = vmax.f32 %v5279, 0.0
      %v5430 = vmax.f32 %v5281, 0.0
      %v5431 = vmax.f32 %v5283, 0.0
      %v5432 = vmax.f32 %v5285, 0.0
      %v5433 = vmax.f32 %v5289, 0.0
      %v5434 = vmax.f32 %v5291, 0.0
      %v5435 = vmax.f32 %v5293, 0.0
      %v5436 = vmax.f32 %v5295, 0.0
      %v5437 = vmax.f32 %v5299, 0.0
      %v5438 = vmax.f32 %v5301, 0.0
      %v5439 = vmax.f32 %v5303, 0.0
      %v5440 = vmax.f32 %v5305, 0.0
      %v5441 = vmax.f32 %v5309, 0.0
      %v5442 = vmax.f32 %v5311, 0.0
      %v5443 = vmax.f32 %v5313, 0.0
      %v5444 = vmax.f32 %v5315, 0.0
      %v5445 = vld [vmem:[%s5] sm:$0x3]
      %v5447 = vlaneseq
      %v5448 = vshrl.u32 %v5447, 7
      %v5449 = vsub.s32 0, %v5448
      %v5450 = vrot.slane %v5445, %v5449
      %v5451 = vlaneseq
      %v5452 = vshrl.u32 %v5451, 7
      %v5453 = vsub.s32 1, %v5452
      %v5454 = vrot.slane %v5445, %v5453
      %v5457 = vmul.f32 %v5317, %v5450
      %v5458 = vmul.f32 %v5318, %v5454
      %v5459 = vmul.f32 %v5319, %v5450
      %v5460 = vmul.f32 %v5320, %v5454
      %v5461 = vmul.f32 %v5321, %v5450
      %v5462 = vmul.f32 %v5322, %v5454
      %v5463 = vmul.f32 %v5323, %v5450
      %v5464 = vmul.f32 %v5324, %v5454
      %v5465 = vmul.f32 %v5325, %v5450
      %v5466 = vmul.f32 %v5326, %v5454
      %v5467 = vmul.f32 %v5327, %v5450
      %v5468 = vmul.f32 %v5328, %v5454
      %v5469 = vmul.f32 %v5329, %v5450
      %v5470 = vmul.f32 %v5330, %v5454
      %v5471 = vmul.f32 %v5331, %v5450
      %v5472 = vmul.f32 %v5332, %v5454
      %v5473 = vmul.f32 %v5333, %v5450
      %v5474 = vmul.f32 %v5334, %v5454
      %v5475 = vmul.f32 %v5335, %v5450
      %v5476 = vmul.f32 %v5336, %v5454
      %v5477 = vmul.f32 %v5337, %v5450
      %v5478 = vmul.f32 %v5338, %v5454
      %v5479 = vmul.f32 %v5339, %v5450
      %v5480 = vmul.f32 %v5340, %v5454
      %v5481 = vmul.f32 %v5341, %v5450
      %v5482 = vmul.f32 %v5342, %v5454
      %v5483 = vmul.f32 %v5343, %v5450
      %v5484 = vmul.f32 %v5344, %v5454
      %v5485 = vmul.f32 %v5345, %v5450
      %v5486 = vmul.f32 %v5346, %v5454
      %v5487 = vmul.f32 %v5347, %v5450
      %v5488 = vmul.f32 %v5348, %v5454
      %v5489 = vmul.f32 %v5349, %v5450
      %v5490 = vmul.f32 %v5350, %v5454
      %v5491 = vmul.f32 %v5351, %v5450
      %v5492 = vmul.f32 %v5352, %v5454
      %v5493 = vmul.f32 %v5353, %v5450
      %v5494 = vmul.f32 %v5354, %v5454
      %v5495 = vmul.f32 %v5355, %v5450
      %v5496 = vmul.f32 %v5356, %v5454
      %v5497 = vmul.f32 %v5357, %v5450
      %v5498 = vmul.f32 %v5358, %v5454
      %v5499 = vmul.f32 %v5359, %v5450
      %v5500 = vmul.f32 %v5360, %v5454
      %v5501 = vmul.f32 %v5361, %v5450
      %v5502 = vmul.f32 %v5362, %v5454
      %v5503 = vmul.f32 %v5363, %v5450
      %v5504 = vmul.f32 %v5364, %v5454
      %v5505 = vmul.f32 %v5365, %v5450
      %v5506 = vmul.f32 %v5366, %v5454
      %v5507 = vmul.f32 %v5367, %v5450
      %v5508 = vmul.f32 %v5368, %v5454
      %v5509 = vmul.f32 %v5369, %v5450
      %v5510 = vmul.f32 %v5370, %v5454
      %v5511 = vmul.f32 %v5371, %v5450
      %v5512 = vmul.f32 %v5372, %v5454
      %v5513 = vmul.f32 %v5373, %v5450
      %v5514 = vmul.f32 %v5374, %v5454
      %v5515 = vmul.f32 %v5375, %v5450
      %v5516 = vmul.f32 %v5376, %v5454
      %v5517 = vmul.f32 %v5377, %v5450
      %v5518 = vmul.f32 %v5378, %v5454
      %v5519 = vmul.f32 %v5379, %v5450
      %v5520 = vmul.f32 %v5380, %v5454
      %v5521 = vmul.f32 %v5381, %v5450
      %v5522 = vmul.f32 %v5382, %v5454
      %v5523 = vmul.f32 %v5383, %v5450
      %v5524 = vmul.f32 %v5384, %v5454
      %v5525 = vmul.f32 %v5385, %v5450
      %v5526 = vmul.f32 %v5386, %v5454
      %v5527 = vmul.f32 %v5387, %v5450
      %v5528 = vmul.f32 %v5388, %v5454
      %v5529 = vmul.f32 %v5389, %v5450
      %v5530 = vmul.f32 %v5390, %v5454
      %v5531 = vmul.f32 %v5391, %v5450
      %v5532 = vmul.f32 %v5392, %v5454
      %v5533 = vmul.f32 %v5393, %v5450
      %v5534 = vmul.f32 %v5394, %v5454
      %v5535 = vmul.f32 %v5395, %v5450
      %v5536 = vmul.f32 %v5396, %v5454
      %v5537 = vmul.f32 %v5397, %v5450
      %v5538 = vmul.f32 %v5398, %v5454
      %v5539 = vmul.f32 %v5399, %v5450
      %v5540 = vmul.f32 %v5400, %v5454
      %v5541 = vmul.f32 %v5401, %v5450
      %v5542 = vmul.f32 %v5402, %v5454
      %v5543 = vmul.f32 %v5403, %v5450
      %v5544 = vmul.f32 %v5404, %v5454
      %v5545 = vmul.f32 %v5405, %v5450
      %v5546 = vmul.f32 %v5406, %v5454
      %v5547 = vmul.f32 %v5407, %v5450
      %v5548 = vmul.f32 %v5408, %v5454
      %v5549 = vmul.f32 %v5409, %v5450
      %v5550 = vmul.f32 %v5410, %v5454
      %v5551 = vmul.f32 %v5411, %v5450
      %v5552 = vmul.f32 %v5412, %v5454
      %v5553 = vmul.f32 %v5413, %v5450
      %v5554 = vmul.f32 %v5414, %v5454
      %v5555 = vmul.f32 %v5415, %v5450
      %v5556 = vmul.f32 %v5416, %v5454
      %v5557 = vmul.f32 %v5417, %v5450
      %v5558 = vmul.f32 %v5418, %v5454
      %v5559 = vmul.f32 %v5419, %v5450
      %v5560 = vmul.f32 %v5420, %v5454
      %v5561 = vmul.f32 %v5421, %v5450
      %v5562 = vmul.f32 %v5422, %v5454
      %v5563 = vmul.f32 %v5423, %v5450
      %v5564 = vmul.f32 %v5424, %v5454
      %v5565 = vmul.f32 %v5425, %v5450
      %v5566 = vmul.f32 %v5426, %v5454
      %v5567 = vmul.f32 %v5427, %v5450
      %v5568 = vmul.f32 %v5428, %v5454
      %v5569 = vmul.f32 %v5429, %v5450
      %v5570 = vmul.f32 %v5430, %v5454
      %v5571 = vmul.f32 %v5431, %v5450
      %v5572 = vmul.f32 %v5432, %v5454
      %v5573 = vmul.f32 %v5433, %v5450
      %v5574 = vmul.f32 %v5434, %v5454
      %v5575 = vmul.f32 %v5435, %v5450
      %v5576 = vmul.f32 %v5436, %v5454
      %v5577 = vmul.f32 %v5437, %v5450
      %v5578 = vmul.f32 %v5438, %v5454
      %v5579 = vmul.f32 %v5439, %v5450
      %v5580 = vmul.f32 %v5440, %v5454
      %v5581 = vmul.f32 %v5441, %v5450
      %v5582 = vmul.f32 %v5442, %v5454
      %v5583 = vmul.f32 %v5443, %v5450
      %v5584 = vmul.f32 %v5444, %v5454
      %v5585 = vadd.f32 %v5457, %v5458
      %5586 = vadd.xlane.f32.xlu0 %v5585
      %v5587 = vpop.xlane.xlu0 %5586
      %v5588 = vadd.f32 %v5459, %v5460
      %5589 = vadd.xlane.f32.xlu0 %v5588
      %v5590 = vpop.xlane.xlu0 %5589
      %v5591 = vadd.f32 %v5461, %v5462
      %5592 = vadd.xlane.f32.xlu0 %v5591
      %v5593 = vpop.xlane.xlu0 %5592
      %v5594 = vadd.f32 %v5463, %v5464
      %5595 = vadd.xlane.f32.xlu0 %v5594
      %v5596 = vpop.xlane.xlu0 %5595
      %v5597 = vadd.f32 %v5465, %v5466
      %5598 = vadd.xlane.f32.xlu0 %v5597
      %v5599 = vpop.xlane.xlu0 %5598
      %v5600 = vadd.f32 %v5467, %v5468
      %5601 = vadd.xlane.f32.xlu0 %v5600
      %v5602 = vpop.xlane.xlu0 %5601
      %v5603 = vadd.f32 %v5469, %v5470
      %5604 = vadd.xlane.f32.xlu0 %v5603
      %v5605 = vpop.xlane.xlu0 %5604
      %v5606 = vadd.f32 %v5471, %v5472
      %5607 = vadd.xlane.f32.xlu0 %v5606
      %v5608 = vpop.xlane.xlu0 %5607
      %v5609 = vadd.f32 %v5473, %v5474
      %5610 = vadd.xlane.f32.xlu0 %v5609
      %v5611 = vpop.xlane.xlu0 %5610
      %v5612 = vadd.f32 %v5475, %v5476
      %5613 = vadd.xlane.f32.xlu0 %v5612
      %v5614 = vpop.xlane.xlu0 %5613
      %v5615 = vadd.f32 %v5477, %v5478
      %5616 = vadd.xlane.f32.xlu0 %v5615
      %v5617 = vpop.xlane.xlu0 %5616
      %v5618 = vadd.f32 %v5479, %v5480
      %5619 = vadd.xlane.f32.xlu0 %v5618
      %v5620 = vpop.xlane.xlu0 %5619
      %v5621 = vadd.f32 %v5481, %v5482
      %5622 = vadd.xlane.f32.xlu0 %v5621
      %v5623 = vpop.xlane.xlu0 %5622
      %v5624 = vadd.f32 %v5483, %v5484
      %5625 = vadd.xlane.f32.xlu0 %v5624
      %v5626 = vpop.xlane.xlu0 %5625
      %v5627 = vadd.f32 %v5485, %v5486
      %5628 = vadd.xlane.f32.xlu0 %v5627
      %v5629 = vpop.xlane.xlu0 %5628
      %v5630 = vadd.f32 %v5487, %v5488
      %5631 = vadd.xlane.f32.xlu0 %v5630
      %v5632 = vpop.xlane.xlu0 %5631
      %v5633 = vadd.f32 %v5489, %v5490
      %5634 = vadd.xlane.f32.xlu0 %v5633
      %v5635 = vpop.xlane.xlu0 %5634
      %v5636 = vadd.f32 %v5491, %v5492
      %5637 = vadd.xlane.f32.xlu0 %v5636
      %v5638 = vpop.xlane.xlu0 %5637
      %v5639 = vadd.f32 %v5493, %v5494
      %5640 = vadd.xlane.f32.xlu0 %v5639
      %v5641 = vpop.xlane.xlu0 %5640
      %v5642 = vadd.f32 %v5495, %v5496
      %5643 = vadd.xlane.f32.xlu0 %v5642
      %v5644 = vpop.xlane.xlu0 %5643
      %v5645 = vadd.f32 %v5497, %v5498
      %5646 = vadd.xlane.f32.xlu0 %v5645
      %v5647 = vpop.xlane.xlu0 %5646
      %v5648 = vadd.f32 %v5499, %v5500
      %5649 = vadd.xlane.f32.xlu0 %v5648
      %v5650 = vpop.xlane.xlu0 %5649
      %v5651 = vadd.f32 %v5501, %v5502
      %5652 = vadd.xlane.f32.xlu0 %v5651
      %v5653 = vpop.xlane.xlu0 %5652
      %v5654 = vadd.f32 %v5503, %v5504
      %5655 = vadd.xlane.f32.xlu0 %v5654
      %v5656 = vpop.xlane.xlu0 %5655
      %v5657 = vadd.f32 %v5505, %v5506
      %5658 = vadd.xlane.f32.xlu0 %v5657
      %v5659 = vpop.xlane.xlu0 %5658
      %v5660 = vadd.f32 %v5507, %v5508
      %5661 = vadd.xlane.f32.xlu0 %v5660
      %v5662 = vpop.xlane.xlu0 %5661
      %v5663 = vadd.f32 %v5509, %v5510
      %5664 = vadd.xlane.f32.xlu0 %v5663
      %v5665 = vpop.xlane.xlu0 %5664
      %v5666 = vadd.f32 %v5511, %v5512
      %5667 = vadd.xlane.f32.xlu0 %v5666
      %v5668 = vpop.xlane.xlu0 %5667
      %v5669 = vadd.f32 %v5513, %v5514
      %5670 = vadd.xlane.f32.xlu0 %v5669
      %v5671 = vpop.xlane.xlu0 %5670
      %v5672 = vadd.f32 %v5515, %v5516
      %5673 = vadd.xlane.f32.xlu0 %v5672
      %v5674 = vpop.xlane.xlu0 %5673
      %v5675 = vadd.f32 %v5517, %v5518
      %5676 = vadd.xlane.f32.xlu0 %v5675
      %v5677 = vpop.xlane.xlu0 %5676
      %v5678 = vadd.f32 %v5519, %v5520
      %5679 = vadd.xlane.f32.xlu0 %v5678
      %v5680 = vpop.xlane.xlu0 %5679
      %v5681 = vadd.f32 %v5521, %v5522
      %5682 = vadd.xlane.f32.xlu0 %v5681
      %v5683 = vpop.xlane.xlu0 %5682
      %v5684 = vadd.f32 %v5523, %v5524
      %5685 = vadd.xlane.f32.xlu0 %v5684
      %v5686 = vpop.xlane.xlu0 %5685
      %v5687 = vadd.f32 %v5525, %v5526
      %5688 = vadd.xlane.f32.xlu0 %v5687
      %v5689 = vpop.xlane.xlu0 %5688
      %v5690 = vadd.f32 %v5527, %v5528
      %5691 = vadd.xlane.f32.xlu0 %v5690
      %v5692 = vpop.xlane.xlu0 %5691
      %v5693 = vadd.f32 %v5529, %v5530
      %5694 = vadd.xlane.f32.xlu0 %v5693
      %v5695 = vpop.xlane.xlu0 %5694
      %v5696 = vadd.f32 %v5531, %v5532
      %5697 = vadd.xlane.f32.xlu0 %v5696
      %v5698 = vpop.xlane.xlu0 %5697
      %v5699 = vadd.f32 %v5533, %v5534
      %5700 = vadd.xlane.f32.xlu0 %v5699
      %v5701 = vpop.xlane.xlu0 %5700
      %v5702 = vadd.f32 %v5535, %v5536
      %5703 = vadd.xlane.f32.xlu0 %v5702
      %v5704 = vpop.xlane.xlu0 %5703
      %v5705 = vadd.f32 %v5537, %v5538
      %5706 = vadd.xlane.f32.xlu0 %v5705
      %v5707 = vpop.xlane.xlu0 %5706
      %v5708 = vadd.f32 %v5539, %v5540
      %5709 = vadd.xlane.f32.xlu0 %v5708
      %v5710 = vpop.xlane.xlu0 %5709
      %v5711 = vadd.f32 %v5541, %v5542
      %5712 = vadd.xlane.f32.xlu0 %v5711
      %v5713 = vpop.xlane.xlu0 %5712
      %v5714 = vadd.f32 %v5543, %v5544
      %5715 = vadd.xlane.f32.xlu0 %v5714
      %v5716 = vpop.xlane.xlu0 %5715
      %v5717 = vadd.f32 %v5545, %v5546
      %5718 = vadd.xlane.f32.xlu0 %v5717
      %v5719 = vpop.xlane.xlu0 %5718
      %v5720 = vadd.f32 %v5547, %v5548
      %5721 = vadd.xlane.f32.xlu0 %v5720
      %v5722 = vpop.xlane.xlu0 %5721
      %v5723 = vadd.f32 %v5549, %v5550
      %5724 = vadd.xlane.f32.xlu0 %v5723
      %v5725 = vpop.xlane.xlu0 %5724
      %v5726 = vadd.f32 %v5551, %v5552
      %5727 = vadd.xlane.f32.xlu0 %v5726
      %v5728 = vpop.xlane.xlu0 %5727
      %v5729 = vadd.f32 %v5553, %v5554
      %5730 = vadd.xlane.f32.xlu0 %v5729
      %v5731 = vpop.xlane.xlu0 %5730
      %v5732 = vadd.f32 %v5555, %v5556
      %5733 = vadd.xlane.f32.xlu0 %v5732
      %v5734 = vpop.xlane.xlu0 %5733
      %v5735 = vadd.f32 %v5557, %v5558
      %5736 = vadd.xlane.f32.xlu0 %v5735
      %v5737 = vpop.xlane.xlu0 %5736
      %v5738 = vadd.f32 %v5559, %v5560
      %5739 = vadd.xlane.f32.xlu0 %v5738
      %v5740 = vpop.xlane.xlu0 %5739
      %v5741 = vadd.f32 %v5561, %v5562
      %5742 = vadd.xlane.f32.xlu0 %v5741
      %v5743 = vpop.xlane.xlu0 %5742
      %v5744 = vadd.f32 %v5563, %v5564
      %5745 = vadd.xlane.f32.xlu0 %v5744
      %v5746 = vpop.xlane.xlu0 %5745
      %v5747 = vadd.f32 %v5565, %v5566
      %5748 = vadd.xlane.f32.xlu0 %v5747
      %v5749 = vpop.xlane.xlu0 %5748
      %v5750 = vadd.f32 %v5567, %v5568
      %5751 = vadd.xlane.f32.xlu0 %v5750
      %v5752 = vpop.xlane.xlu0 %5751
      %v5753 = vadd.f32 %v5569, %v5570
      %5754 = vadd.xlane.f32.xlu0 %v5753
      %v5755 = vpop.xlane.xlu0 %5754
      %v5756 = vadd.f32 %v5571, %v5572
      %5757 = vadd.xlane.f32.xlu0 %v5756
      %v5758 = vpop.xlane.xlu0 %5757
      %v5759 = vadd.f32 %v5573, %v5574
      %5760 = vadd.xlane.f32.xlu0 %v5759
      %v5761 = vpop.xlane.xlu0 %5760
      %v5762 = vadd.f32 %v5575, %v5576
      %5763 = vadd.xlane.f32.xlu0 %v5762
      %v5764 = vpop.xlane.xlu0 %5763
      %v5765 = vadd.f32 %v5577, %v5578
      %5766 = vadd.xlane.f32.xlu0 %v5765
      %v5767 = vpop.xlane.xlu0 %5766
      %v5768 = vadd.f32 %v5579, %v5580
      %5769 = vadd.xlane.f32.xlu0 %v5768
      %v5770 = vpop.xlane.xlu0 %5769
      %v5771 = vadd.f32 %v5581, %v5582
      %5772 = vadd.xlane.f32.xlu0 %v5771
      %v5773 = vpop.xlane.xlu0 %5772
      %v5774 = vadd.f32 %v5583, %v5584
      %5775 = vadd.xlane.f32.xlu0 %v5774
      %v5776 = vpop.xlane.xlu0 %5775
      %v5777 = vld [vmem:[#allocation2] sm:$0x1]
      %v5779 = vlaneseq
      %v5780 = vshrl.u32 %v5779, 7
      %v5781 = vsub.s32 0, %v5780
      %v5782 = vrot.slane %v5777, %v5781
      %v5784 = vadd.f32 %v5587, %v5782
      %v5785 = vadd.f32 %v5590, %v5782
      %v5786 = vadd.f32 %v5593, %v5782
      %v5787 = vadd.f32 %v5596, %v5782
      %v5788 = vadd.f32 %v5599, %v5782
      %v5789 = vadd.f32 %v5602, %v5782
      %v5790 = vadd.f32 %v5605, %v5782
      %v5791 = vadd.f32 %v5608, %v5782
      %v5792 = vadd.f32 %v5611, %v5782
      %v5793 = vadd.f32 %v5614, %v5782
      %v5794 = vadd.f32 %v5617, %v5782
      %v5795 = vadd.f32 %v5620, %v5782
      %v5796 = vadd.f32 %v5623, %v5782
      %v5797 = vadd.f32 %v5626, %v5782
      %v5798 = vadd.f32 %v5629, %v5782
      %v5799 = vadd.f32 %v5632, %v5782
      %v5800 = vadd.f32 %v5635, %v5782
      %v5801 = vadd.f32 %v5638, %v5782
      %v5802 = vadd.f32 %v5641, %v5782
      %v5803 = vadd.f32 %v5644, %v5782
      %v5804 = vadd.f32 %v5647, %v5782
      %v5805 = vadd.f32 %v5650, %v5782
      %v5806 = vadd.f32 %v5653, %v5782
      %v5807 = vadd.f32 %v5656, %v5782
      %v5808 = vadd.f32 %v5659, %v5782
      %v5809 = vadd.f32 %v5662, %v5782
      %v5810 = vadd.f32 %v5665, %v5782
      %v5811 = vadd.f32 %v5668, %v5782
      %v5812 = vadd.f32 %v5671, %v5782
      %v5813 = vadd.f32 %v5674, %v5782
      %v5814 = vadd.f32 %v5677, %v5782
      %v5815 = vadd.f32 %v5680, %v5782
      %v5816 = vadd.f32 %v5683, %v5782
      %v5817 = vadd.f32 %v5686, %v5782
      %v5818 = vadd.f32 %v5689, %v5782
      %v5819 = vadd.f32 %v5692, %v5782
      %v5820 = vadd.f32 %v5695, %v5782
      %v5821 = vadd.f32 %v5698, %v5782
      %v5822 = vadd.f32 %v5701, %v5782
      %v5823 = vadd.f32 %v5704, %v5782
      %v5824 = vadd.f32 %v5707, %v5782
      %v5825 = vadd.f32 %v5710, %v5782
      %v5826 = vadd.f32 %v5713, %v5782
      %v5827 = vadd.f32 %v5716, %v5782
      %v5828 = vadd.f32 %v5719, %v5782
      %v5829 = vadd.f32 %v5722, %v5782
      %v5830 = vadd.f32 %v5725, %v5782
      %v5831 = vadd.f32 %v5728, %v5782
      %v5832 = vadd.f32 %v5731, %v5782
      %v5833 = vadd.f32 %v5734, %v5782
      %v5834 = vadd.f32 %v5737, %v5782
      %v5835 = vadd.f32 %v5740, %v5782
      %v5836 = vadd.f32 %v5743, %v5782
      %v5837 = vadd.f32 %v5746, %v5782
      %v5838 = vadd.f32 %v5749, %v5782
      %v5839 = vadd.f32 %v5752, %v5782
      %v5840 = vadd.f32 %v5755, %v5782
      %v5841 = vadd.f32 %v5758, %v5782
      %v5842 = vadd.f32 %v5761, %v5782
      %v5843 = vadd.f32 %v5764, %v5782
      %v5844 = vadd.f32 %v5767, %v5782
      %v5845 = vadd.f32 %v5770, %v5782
      %v5846 = vadd.f32 %v5773, %v5782
      %v5847 = vadd.f32 %v5776, %v5782
      %v5848 = vmax.f32 %v5784, 0.0
      %v5849 = vmax.f32 %v5785, 0.0
      %v5850 = vmax.f32 %v5786, 0.0
      %v5851 = vmax.f32 %v5787, 0.0
      %v5852 = vmax.f32 %v5788, 0.0
      %v5853 = vmax.f32 %v5789, 0.0
      %v5854 = vmax.f32 %v5790, 0.0
      %v5855 = vmax.f32 %v5791, 0.0
      %v5856 = vmax.f32 %v5792, 0.0
      %v5857 = vmax.f32 %v5793, 0.0
      %v5858 = vmax.f32 %v5794, 0.0
      %v5859 = vmax.f32 %v5795, 0.0
      %v5860 = vmax.f32 %v5796, 0.0
      %v5861 = vmax.f32 %v5797, 0.0
      %v5862 = vmax.f32 %v5798, 0.0
      %v5863 = vmax.f32 %v5799, 0.0
      %v5864 = vmax.f32 %v5800, 0.0
      %v5865 = vmax.f32 %v5801, 0.0
      %v5866 = vmax.f32 %v5802, 0.0
      %v5867 = vmax.f32 %v5803, 0.0
      %v5868 = vmax.f32 %v5804, 0.0
      %v5869 = vmax.f32 %v5805, 0.0
      %v5870 = vmax.f32 %v5806, 0.0
      %v5871 = vmax.f32 %v5807, 0.0
      %v5872 = vmax.f32 %v5808, 0.0
      %v5873 = vmax.f32 %v5809, 0.0
      %v5874 = vmax.f32 %v5810, 0.0
      %v5875 = vmax.f32 %v5811, 0.0
      %v5876 = vmax.f32 %v5812, 0.0
      %v5877 = vmax.f32 %v5813, 0.0
      %v5878 = vmax.f32 %v5814, 0.0
      %v5879 = vmax.f32 %v5815, 0.0
      %v5880 = vmax.f32 %v5816, 0.0
      %v5881 = vmax.f32 %v5817, 0.0
      %v5882 = vmax.f32 %v5818, 0.0
      %v5883 = vmax.f32 %v5819, 0.0
      %v5884 = vmax.f32 %v5820, 0.0
      %v5885 = vmax.f32 %v5821, 0.0
      %v5886 = vmax.f32 %v5822, 0.0
      %v5887 = vmax.f32 %v5823, 0.0
      %v5888 = vmax.f32 %v5824, 0.0
      %v5889 = vmax.f32 %v5825, 0.0
      %v5890 = vmax.f32 %v5826, 0.0
      %v5891 = vmax.f32 %v5827, 0.0
      %v5892 = vmax.f32 %v5828, 0.0
      %v5893 = vmax.f32 %v5829, 0.0
      %v5894 = vmax.f32 %v5830, 0.0
      %v5895 = vmax.f32 %v5831, 0.0
      %v5896 = vmax.f32 %v5832, 0.0
      %v5897 = vmax.f32 %v5833, 0.0
      %v5898 = vmax.f32 %v5834, 0.0
      %v5899 = vmax.f32 %v5835, 0.0
      %v5900 = vmax.f32 %v5836, 0.0
      %v5901 = vmax.f32 %v5837, 0.0
      %v5902 = vmax.f32 %v5838, 0.0
      %v5903 = vmax.f32 %v5839, 0.0
      %v5904 = vmax.f32 %v5840, 0.0
      %v5905 = vmax.f32 %v5841, 0.0
      %v5906 = vmax.f32 %v5842, 0.0
      %v5907 = vmax.f32 %v5843, 0.0
      %v5908 = vmax.f32 %v5844, 0.0
      %v5909 = vmax.f32 %v5845, 0.0
      %v5910 = vmax.f32 %v5846, 0.0
      %v5911 = vmax.f32 %v5847, 0.0
      %vm5912 = vcmask 7168
      %5913 = vst.msk [vmem:[%s285] sm:$0xff] %vm5912, %v5848
      %5914 = vst.msk [vmem:[%s285 + $0x8] sm:$0xff] %vm5912, %v5849
      %5915 = vst.msk [vmem:[%s285 + $0x10] sm:$0xff] %vm5912, %v5850
      %5916 = vst.msk [vmem:[%s285 + $0x18] sm:$0xff] %vm5912, %v5851
      %5917 = vst.msk [vmem:[%s285 + $0x20] sm:$0xff] %vm5912, %v5852
      %5918 = vst.msk [vmem:[%s285 + $0x28] sm:$0xff] %vm5912, %v5853
      %5919 = vst.msk [vmem:[%s285 + $0x30] sm:$0xff] %vm5912, %v5854
      %5920 = vst.msk [vmem:[%s285 + $0x38] sm:$0xff] %vm5912, %v5855
      %5921 = vst.msk [vmem:[%s285 + $0x40] sm:$0xff] %vm5912, %v5856
      %5922 = vst.msk [vmem:[%s285 + $0x48] sm:$0xff] %vm5912, %v5857
      %5923 = vst.msk [vmem:[%s285 + $0x50] sm:$0xff] %vm5912, %v5858
      %5924 = vst.msk [vmem:[%s285 + $0x58] sm:$0xff] %vm5912, %v5859
      %5925 = vst.msk [vmem:[%s285 + $0x60] sm:$0xff] %vm5912, %v5860
      %5926 = vst.msk [vmem:[%s285 + $0x68] sm:$0xff] %vm5912, %v5861
      %5927 = vst.msk [vmem:[%s285 + $0x70] sm:$0xff] %vm5912, %v5862
      %5928 = vst.msk [vmem:[%s285 + $0x78] sm:$0xff] %vm5912, %v5863
      %5929 = vst.msk [vmem:[%s285 + $0x80] sm:$0xff] %vm5912, %v5864
      %5930 = vst.msk [vmem:[%s285 + $0x88] sm:$0xff] %vm5912, %v5865
      %5931 = vst.msk [vmem:[%s285 + $0x90] sm:$0xff] %vm5912, %v5866
      %5932 = vst.msk [vmem:[%s285 + $0x98] sm:$0xff] %vm5912, %v5867
      %5933 = vst.msk [vmem:[%s285 + $0xa0] sm:$0xff] %vm5912, %v5868
      %5934 = vst.msk [vmem:[%s285 + $0xa8] sm:$0xff] %vm5912, %v5869
      %5935 = vst.msk [vmem:[%s285 + $0xb0] sm:$0xff] %vm5912, %v5870
      %5936 = vst.msk [vmem:[%s285 + $0xb8] sm:$0xff] %vm5912, %v5871
      %5937 = vst.msk [vmem:[%s285 + $0xc0] sm:$0xff] %vm5912, %v5872
      %5938 = vst.msk [vmem:[%s285 + $0xc8] sm:$0xff] %vm5912, %v5873
      %5939 = vst.msk [vmem:[%s285 + $0xd0] sm:$0xff] %vm5912, %v5874
      %5940 = vst.msk [vmem:[%s285 + $0xd8] sm:$0xff] %vm5912, %v5875
      %5941 = vst.msk [vmem:[%s285 + $0xe0] sm:$0xff] %vm5912, %v5876
      %5942 = vst.msk [vmem:[%s285 + $0xe8] sm:$0xff] %vm5912, %v5877
      %5943 = vst.msk [vmem:[%s285 + $0xf0] sm:$0xff] %vm5912, %v5878
      %5944 = vst.msk [vmem:[%s285 + $0xf8] sm:$0xff] %vm5912, %v5879
      %5945 = vst.msk [vmem:[%s285 + $0x100] sm:$0xff] %vm5912, %v5880
      %5946 = vst.msk [vmem:[%s285 + $0x108] sm:$0xff] %vm5912, %v5881
      %5947 = vst.msk [vmem:[%s285 + $0x110] sm:$0xff] %vm5912, %v5882
      %5948 = vst.msk [vmem:[%s285 + $0x118] sm:$0xff] %vm5912, %v5883
      %5949 = vst.msk [vmem:[%s285 + $0x120] sm:$0xff] %vm5912, %v5884
      %5950 = vst.msk [vmem:[%s285 + $0x128] sm:$0xff] %vm5912, %v5885
      %5951 = vst.msk [vmem:[%s285 + $0x130] sm:$0xff] %vm5912, %v5886
      %5952 = vst.msk [vmem:[%s285 + $0x138] sm:$0xff] %vm5912, %v5887
      %5953 = vst.msk [vmem:[%s285 + $0x140] sm:$0xff] %vm5912, %v5888
      %5954 = vst.msk [vmem:[%s285 + $0x148] sm:$0xff] %vm5912, %v5889
      %5955 = vst.msk [vmem:[%s285 + $0x150] sm:$0xff] %vm5912, %v5890
      %5956 = vst.msk [vmem:[%s285 + $0x158] sm:$0xff] %vm5912, %v5891
      %5957 = vst.msk [vmem:[%s285 + $0x160] sm:$0xff] %vm5912, %v5892
      %5958 = vst.msk [vmem:[%s285 + $0x168] sm:$0xff] %vm5912, %v5893
      %5959 = vst.msk [vmem:[%s285 + $0x170] sm:$0xff] %vm5912, %v5894
      %5960 = vst.msk [vmem:[%s285 + $0x178] sm:$0xff] %vm5912, %v5895
      %5961 = vst.msk [vmem:[%s285 + $0x180] sm:$0xff] %vm5912, %v5896
      %5962 = vst.msk [vmem:[%s285 + $0x188] sm:$0xff] %vm5912, %v5897
      %5963 = vst.msk [vmem:[%s285 + $0x190] sm:$0xff] %vm5912, %v5898
      %5964 = vst.msk [vmem:[%s285 + $0x198] sm:$0xff] %vm5912, %v5899
      %5965 = vst.msk [vmem:[%s285 + $0x1a0] sm:$0xff] %vm5912, %v5900
      %5966 = vst.msk [vmem:[%s285 + $0x1a8] sm:$0xff] %vm5912, %v5901
      %5967 = vst.msk [vmem:[%s285 + $0x1b0] sm:$0xff] %vm5912, %v5902
      %5968 = vst.msk [vmem:[%s285 + $0x1b8] sm:$0xff] %vm5912, %v5903
      %5969 = vst.msk [vmem:[%s285 + $0x1c0] sm:$0xff] %vm5912, %v5904
      %5970 = vst.msk [vmem:[%s285 + $0x1c8] sm:$0xff] %vm5912, %v5905
      %5971 = vst.msk [vmem:[%s285 + $0x1d0] sm:$0xff] %vm5912, %v5906
      %5972 = vst.msk [vmem:[%s285 + $0x1d8] sm:$0xff] %vm5912, %v5907
      %5973 = vst.msk [vmem:[%s285 + $0x1e0] sm:$0xff] %vm5912, %v5908
      %5974 = vst.msk [vmem:[%s285 + $0x1e8] sm:$0xff] %vm5912, %v5909
      %5975 = vst.msk [vmem:[%s285 + $0x1f0] sm:$0xff] %vm5912, %v5910
      %5976 = vst.msk [vmem:[%s285 + $0x1f8] sm:$0xff] %vm5912, %v5911
      %s5977 = smul.u32 64, %s20
      %p5978 = scmp.lt.s32.totalorder %s5977, 127
      %s5979 = scalar_select %p5978, %s5977, 127
      %s5980 = smul.addr %s5979, 8
      %s5981 = scalar_lea.vmem %s7, %s5980
      // Predicated region
      $region49: #{tpu_custom_call.1} parent=47 // pred_check
        %p5982 = pneg %p190
      $region50: #{tpu_custom_call.1} parent=47 // pred_check_branch
        %5984 = sbr.rel (%p5982) target = $region52
      $region51: #{tpu_custom_call.1} parent=47 // pred_region
        %s5985 = smul.u32 64, %s20
      $region52: #{tpu_custom_call.1} parent=47 // pred_fallthru
        _
    $region48: #{tpu_custom_call.1} parent=5 // pred_fallthru
      _
    %p5986 = scmp.le.s32.totalorder 2, %s15
    // Predicated region
    $region53: #{tpu_custom_call.1} parent=5 // pred_check
      %p5987 = pneg %p5986
    $region54: #{tpu_custom_call.1} parent=5 // pred_check_branch
      %5989 = sbr.rel (%p5987) target = $region56
    $region55: #{tpu_custom_call.1} parent=5 // pred_region
      %s5990 = ssub.s32 %s15, 2
      // Predicated region
      $region57: #{tpu_custom_call.1} parent=55 // pred_check
        %p5991 = pneg %p196
      $region58: #{tpu_custom_call.1} parent=55 // pred_check_branch
        %5993 = sbr.rel (%p5991) target = $region60
      $region59: #{tpu_custom_call.1} parent=55 // pred_region
        %s5994 = smul.u32 64, %s21
        %p5995 = scmp.lt.s32.totalorder %s5994, 127
        %s5996 = scalar_select %p5995, %s5994, 127
        %s5997 = smul.addr %s5996, 8
        %s5998 = scalar_lea.vmem %s7, %s5997
      $region60: #{tpu_custom_call.1} parent=55 // pred_fallthru
        _
    $region56: #{tpu_custom_call.1} parent=5 // pred_fallthru
      _
  $region6: #{tpu_custom_call.1} parent=0 // loop_footer
    %s19 = sadd.s32 1, %s15
  $region7: #{tpu_custom_call.1} parent=0 // loop_footer_branch
    %14 = sbr.rel target = $region3
  $region8: #{tpu_custom_call.1} parent=0 // loop_exit
    _

</llo_original>
